<compile_context>
chip_gen: v6e
topology: v6e:2x2x1
jax: 0.10.0
libtpu: 0.0.40
codegen_flags: <defaults>
</compile_context>

<pallas_src>
import functools

import jax
import jax.numpy as jnp
from jax.experimental import pallas as pl
from jax.experimental.pallas import tpu as pltpu

BN_EPS = 1e-5
LANE = 128      # TPU vreg lane width


def _round_up(x, m):
    return (x + m - 1) // m * m


# ------------------------------ Pallas kernels ----------------------------- #

def _conv_stats_kernel(x_ref, w_ref, b_ref, *rest, stride, has_short):
    """Implicit-im2col 3x3 conv (+ optional fused 1x1 stride-s shortcut conv).

    x_ref : (s*s, Ho+2, Wo+2, Cin) bf16  phase-decomposed padded input slab
    w_ref : (9, Cin, Cp)           bf16  3x3 taps, output channels padded
    b_ref : (1, Cp)                f32   conv bias
    outs  : y (1, Ho, Wo, Cp) bf16 pre-BN activations
            stats (1, 2, Cp) f32 per-image [sum; sum-of-squares]
            (+ ys, stats_s for the fused shortcut conv when has_short)
    """
    if has_short:
        ws_ref, bs_ref, y_ref, st_ref, ys_ref, sts_ref = rest
    else:
        y_ref, st_ref = rest

    _, ho, wo, cp = y_ref.shape
    cin = w_ref.shape[1]
    m = ho * wo

    xv = x_ref[...]                                # (s*s, Ho+2, Wo+2, Cin)
    acc = jnp.zeros((m, cp), jnp.float32)
    x_center = None
    for dh in range(3):
        for dw in range(3):
            pidx = (dh % stride) * stride + (dw % stride)
            qh, qw = dh // stride, dw // stride
            xs = xv[pidx, qh:qh + ho, qw:qw + wo, :]      # (Ho, Wo, Cin) bf16
            xm = xs.reshape(m, cin)
            if (dh, dw) == (1, 1):
                x_center = xm     # 1x1 stride-s conv input == center tap
            acc = acc + jnp.dot(xm, w_ref[dh * 3 + dw],
                                preferred_element_type=jnp.float32)

    def emit(y_f32, yo_ref, so_ref):
        yb = y_f32.astype(jnp.bfloat16)
        yf = yb.astype(jnp.float32)          # stats from the rounded values
        yo_ref[...] = yb.reshape(1, ho, wo, cp)
        so_ref[0:1, 0:1, :] = jnp.sum(
            yf, axis=0, keepdims=True).reshape(1, 1, cp)
        so_ref[0:1, 1:2, :] = jnp.sum(
            yf * yf, axis=0, keepdims=True).reshape(1, 1, cp)

    emit(acc + b_ref[...], y_ref, st_ref)
    if has_short:
        ys = jnp.dot(x_center, ws_ref[...], preferred_element_type=jnp.float32)
        emit(ys + bs_ref[...], ys_ref, sts_ref)


def _bn_kernel(y_ref, st_ref, g_ref, bt_ref, *rest, count, mode, relu):
    """BatchNorm (batch stats, biased var) folded to y*a + c, with optional
    fused shortcut (BN-folded conv shortcut or raw identity) and ReLU.

    y_ref  : (1, Ho, Wo, Cp) bf16 pre-BN activations of one image
    st_ref : (N, 2, Cp) f32 per-image partial stats, reduced in-kernel
    """
    if mode == "conv":
        ys_ref, sts_ref, gs_ref, bts_ref, o_ref = rest
    elif mode == "identity":
        id_ref, o_ref = rest
    else:
        (o_ref,) = rest

    _, ho, wo, cp = y_ref.shape
    m = ho * wo
    inv_n = 1.0 / float(count)

    def fold(st_all, g, bt):
        st = jnp.sum(st_all, axis=0)                  # (2, Cp) total
        mean = st[0:1, :] * inv_n
        var = st[1:2, :] * inv_n - mean * mean        # biased var (PyTorch fwd)
        a = g * jax.lax.rsqrt(var + BN_EPS)
        c = bt - mean * a
        return a, c                                   # (1, Cp) each

    a, c = fold(st_ref[...], g_ref[...], bt_ref[...])
    y = y_ref[...].astype(jnp.float32).reshape(m, cp) * a + c
    if mode == "conv":
        a_s, c_s = fold(sts_ref[...], gs_ref[...], bts_ref[...])
        y = y + ys_ref[...].astype(jnp.float32).reshape(m, cp) * a_s + c_s
    elif mode == "identity":
        y = y + id_ref[...].astype(jnp.float32).reshape(m, cp)
    if relu:
        y = jnp.maximum(y, 0.0)
    o_ref[...] = y.astype(o_ref.dtype).reshape(1, ho, wo, cp)


# --------------------------- pallas_call wrappers --------------------------- #

def _conv_stats_pass(xph, w_taps, bias, ws=None, bs=None, *, stride, ho, wo):
    """Pass A: implicit-im2col conv (+ fused shortcut conv); bf16 pre-BN out
    plus per-image partial BN stats."""
    s2 = stride * stride
    n = xph.shape[0] // s2
    cin = xph.shape[-1]
    cp = w_taps.shape[-1]
    has_short = ws is not None

    kern = functools.partial(_conv_stats_kernel, stride=stride,
                             has_short=has_short)
    in_specs = [
        pl.BlockSpec((s2, ho + 2, wo + 2, cin), lambda i: (i, 0, 0, 0)),
        pl.BlockSpec((9, cin, cp), lambda i: (0, 0, 0)),
        pl.BlockSpec((1, cp), lambda i: (0, 0)),
    ]
    args = [xph, w_taps, bias]
    out_specs = [pl.BlockSpec((1, ho, wo, cp), lambda i: (i, 0, 0, 0)),
                 pl.BlockSpec((1, 2, cp), lambda i: (i, 0, 0))]
    out_shape = [jax.ShapeDtypeStruct((n, ho, wo, cp), jnp.bfloat16),
                 jax.ShapeDtypeStruct((n, 2, cp), jnp.float32)]
    if has_short:
        in_specs += [pl.BlockSpec((cin, cp), lambda i: (0, 0)),
                     pl.BlockSpec((1, cp), lambda i: (0, 0))]
        args += [ws, bs]
        out_specs += [pl.BlockSpec((1, ho, wo, cp), lambda i: (i, 0, 0, 0)),
                      pl.BlockSpec((1, 2, cp), lambda i: (i, 0, 0))]
        out_shape += [jax.ShapeDtypeStruct((n, ho, wo, cp), jnp.bfloat16),
                      jax.ShapeDtypeStruct((n, 2, cp), jnp.float32)]

    return pl.pallas_call(
        kern,
        grid=(n,),
        in_specs=in_specs,
        out_specs=tuple(out_specs),
        out_shape=tuple(out_shape),
        compiler_params=pltpu.CompilerParams(
            dimension_semantics=("parallel",)),
    )(*args)


def _bn_act_pass(y, stats, gamma, beta, *, count, relu, out_dtype,
                 mode=None, short=None):
    """Pass B: BN normalize (+ fused shortcut) (+ ReLU)."""
    n, ho, wo, cp = y.shape
    kern = functools.partial(_bn_kernel, count=count, mode=mode, relu=relu)
    in_specs = [pl.BlockSpec((1, ho, wo, cp), lambda i: (i, 0, 0, 0)),
                pl.BlockSpec((n, 2, cp), lambda i: (0, 0, 0)),
                pl.BlockSpec((1, cp), lambda i: (0, 0)),
                pl.BlockSpec((1, cp), lambda i: (0, 0))]
    args = [y, stats, gamma, beta]
    if mode == "conv":
        ys, sts, gs, bts = short
        in_specs += [pl.BlockSpec((1, ho, wo, cp), lambda i: (i, 0, 0, 0)),
                     pl.BlockSpec((n, 2, cp), lambda i: (0, 0, 0)),
                     pl.BlockSpec((1, cp), lambda i: (0, 0)),
                     pl.BlockSpec((1, cp), lambda i: (0, 0))]
        args += [ys, sts, gs, bts]
    elif mode == "identity":
        in_specs += [pl.BlockSpec((1, ho, wo, cp), lambda i: (i, 0, 0, 0))]
        args += [short]

    return pl.pallas_call(
        kern,
        grid=(n,),
        in_specs=in_specs,
        out_specs=pl.BlockSpec((1, ho, wo, cp), lambda i: (i, 0, 0, 0)),
        out_shape=jax.ShapeDtypeStruct((n, ho, wo, cp), out_dtype),
        compiler_params=pltpu.CompilerParams(
            dimension_semantics=("parallel",)),
    )(*args)


# ------------------------------ glue (JAX) ---------------------------------- #

def _phase_stack(xpad, stride, ho, wo):
    """(N, H+2, W+2, C) padded slab -> (N*stride^2, Ho+2, Wo+2, C) phase slabs
    so that every 3x3-tap read inside the kernel is a contiguous slice
    (no strided in-kernel access needed for stride > 1)."""
    if stride == 1:
        return xpad
    n, _, _, c = xpad.shape
    hq, wq = ho + 2, wo + 2
    phases = []
    for ph in range(stride):
        for pw in range(stride):
            sl = xpad[:, ph::stride, pw::stride, :][:, :hq, :wq, :]
            sl = jnp.pad(sl, ((0, 0), (0, hq - sl.shape[1]),
                              (0, wq - sl.shape[2]), (0, 0)))
            phases.append(sl)
    xph = jnp.stack(phases, axis=1)                   # (N, s*s, Hq, Wq, C)
    return xph.reshape(n * stride * stride, hq, wq, c)


def init_resblk_params(key, ch_in, ch_out):
    """Deterministic synthetic init (PyTorch-like uniform fan-in bounds)."""
    ks = jax.random.split(key, 12)

    def conv_w(k, kh, kw, ci, co):
        bound = 1.0 / float(jnp.sqrt(ci * kh * kw))
        return jax.random.uniform(k, (kh, kw, ci, co), jnp.float32,
                                  -bound, bound)

    def vec(k, c, lo, hi):
        return jax.random.uniform(k, (c,), jnp.float32, lo, hi)

    p = {
        "w1": conv_w(ks[0], 3, 3, ch_in, ch_out),
        "b1": vec(ks[1], ch_out, -0.1, 0.1),
        "g1": vec(ks[2], ch_out, 0.8, 1.2),
        "beta1": vec(ks[3], ch_out, -0.1, 0.1),
        "w2": conv_w(ks[4], 3, 3, ch_out, ch_out),
        "b2": vec(ks[5], ch_out, -0.1, 0.1),
        "g2": vec(ks[6], ch_out, 0.8, 1.2),
        "beta2": vec(ks[7], ch_out, -0.1, 0.1),
    }
    if ch_in != ch_out:
        p.update({
            "ws": conv_w(ks[8], 1, 1, ch_in, ch_out),
            "bs": vec(ks[9], ch_out, -0.1, 0.1),
            "gs": vec(ks[10], ch_out, 0.8, 1.2),
            "betas": vec(ks[11], ch_out, -0.1, 0.1),
        })
    return p


def resblk_forward(x_nchw, params, stride):
    """Pallas implementation of ResBlk.forward. x_nchw: [N, C_in, H, W]."""
    x = jnp.transpose(x_nchw, (0, 2, 3, 1)).astype(jnp.float32)    # NHWC
    n, h, w_sp, cin = x.shape
    cout = params["w1"].shape[-1]
    cp = _round_up(cout, LANE)                 # lane-dense padded channels
    ho = (h - 1) // stride + 1                 # 3x3, pad 1
    wo = (w_sp - 1) // stride + 1
    count = n * ho * wo                        # BN sample count

    def pad_vec(v):
        return jnp.pad(v, (0, cp - cout)).reshape(1, cp).astype(jnp.float32)

    w1 = jnp.pad(params["w1"].reshape(9, cin, cout),
                 ((0, 0), (0, 0), (0, cp - cout))).astype(jnp.bfloat16)
    w2 = jnp.pad(params["w2"].reshape(9, cout, cout),
                 ((0, 0), (0, cp - cout), (0, cp - cout))).astype(jnp.bfloat16)
    b1, g1, be1 = pad_vec(params["b1"]), pad_vec(params["g1"]), pad_vec(params["beta1"])
    b2, g2, be2 = pad_vec(params["b2"]), pad_vec(params["g2"]), pad_vec(params["beta2"])

    # Spatial pad + bf16 cast of the un-expanded input: one cheap XLA pass.
    xpad = jnp.pad(x, ((0, 0), (1, 1), (1, 1), (0, 0))).astype(jnp.bfloat16)
    xph = _phase_stack(xpad, stride, ho, wo)

    conv_short = cin != cout
    if conv_short:
        ws = jnp.pad(params["ws"].reshape(cin, cout),
                     ((0, 0), (0, cp - cout))).astype(jnp.bfloat16)
        bs, gs, bes = pad_vec(params["bs"]), pad_vec(params["gs"]), pad_vec(params["betas"])
        y1, st1, ys, sts = _conv_stats_pass(xph, w1, b1, ws, bs,
                                            stride=stride, ho=ho, wo=wo)
    else:
        # PyTorch's identity shortcut only shape-checks when stride == 1.
        assert stride == 1, "identity shortcut requires stride == 1"
        y1, st1 = _conv_stats_pass(xph, w1, b1, stride=stride, ho=ho, wo=wo)

    # bn1 + ReLU  ->  out1 bf16, lane-dense padded channels.
    out1 = _bn_act_pass(y1, st1, g1, be1, count=count, relu=True,
                        out_dtype=jnp.bfloat16)

    # conv2 (3x3, stride 1): implicit im2col straight from the padded out1.
    out1p = jnp.pad(out1, ((0, 0), (1, 1), (1, 1), (0, 0)))
    y2, st2 = _conv_stats_pass(out1p, w2, b2, stride=1, ho=ho, wo=wo)

    # bn2 + fused shortcut + ReLU.
    if conv_short:
        out = _bn_act_pass(y2, st2, g2, be2, count=count, relu=True,
                           out_dtype=jnp.float32, mode="conv",
                           short=(ys, sts, gs, bes))
    else:
        ident = jnp.pad(x, ((0, 0), (0, 0), (0, 0), (0, cp - cin)))
        out = _bn_act_pass(y2, st2, g2, be2, count=count, relu=True,
                           out_dtype=jnp.float32, mode="identity", short=ident)

    out = out[:, :, :, :cout]
    return jnp.transpose(out, (0, 3, 1, 2))                        # NCHW


# ----------------------------- JAX reference -------------------------------- #

def _ref_bn(y, g, beta):
    mean = jnp.mean(y, axis=(0, 1, 2), keepdims=True)
    var = jnp.mean(jnp.square(y - mean), axis=(0, 1, 2), keepdims=True)
    return (y - mean) * jax.lax.rsqrt(var + BN_EPS) * g + beta


def _ref_conv(x, w, b, stride, pad):
    y = jax.lax.conv_general_dilated(
        x, w, (stride, stride), [(pad, pad), (pad, pad)],
        dimension_numbers=("NHWC", "HWIO", "NHWC"),
        precision=jax.lax.Precision.HIGHEST)
    return y + b


def resblk_reference(x_nchw, params, stride):
    x = jnp.transpose(x_nchw, (0, 2, 3, 1)).astype(jnp.float32)
    cin = x.shape[-1]
    cout = params["w1"].shape[-1]
    out = jax.nn.relu(_ref_bn(_ref_conv(x, params["w1"], params["b1"],
                                        stride, 1),
                              params["g1"], params["beta1"]))
    out = _ref_bn(_ref_conv(out, params["w2"], params["b2"], 1, 1),
                  params["g2"], params["beta2"])
    if cin != cout:
        short = _ref_bn(_ref_conv(x, params["ws"], params["bs"], stride, 0),
                        params["gs"], params["betas"])
    else:
        short = x
    out = jax.nn.relu(short + out)
    return jnp.transpose(out, (0, 3, 1, 2))


# --------------------------------- main ------------------------------------- #

if __name__ == "__main__":
    key = jax.random.PRNGKey(0)
    k_x, k_p, k_x2, k_p2 = jax.random.split(key, 4)
    fwd = jax.jit(resblk_forward, static_argnums=2)

    # Tolerance: bf16 MXU operands + bf16 inter-pass activations vs. f32
    # HIGHEST reference (BN renormalizes, so error stays small but nonzero).
    ATOL, RTOL = 5e-2, 3e-2

    # Case 1: channel-changing block, stride-2 downsample (1x1 conv shortcut).
    N, CH_IN, CH_OUT, H, W, STRIDE = 2, 4, 8, 16, 16, 2
    x = jax.random.normal(k_x, (N, CH_IN, H, W), jnp.float32)     # NCHW
    params = init_resblk_params(k_p, CH_IN, CH_OUT)
    out = jax.block_until_ready(fwd(x, params, STRIDE))
    ref = jax.block_until_ready(resblk_reference(x, params, STRIDE))
    assert out.shape == (N, CH_OUT, H // STRIDE, W // STRIDE), out.shape
    assert jnp.allclose(out, ref, atol=ATOL, rtol=RTOL), \
        float(jnp.max(jnp.abs(out - ref)))

    # Case 2: identity shortcut (ch_in == ch_out, stride 1).
    x2 = jax.random.normal(k_x2, (N, CH_OUT, H, W), jnp.float32)
    params2 = init_resblk_params(k_p2, CH_OUT, CH_OUT)
    out2 = jax.block_until_ready(fwd(x2, params2, 1))
    ref2 = jax.block_until_ready(resblk_reference(x2, params2, 1))
    assert out2.shape == (N, CH_OUT, H, W), out2.shape
    assert jnp.allclose(out2, ref2, atol=ATOL, rtol=RTOL), \
        float(jnp.max(jnp.abs(out2 - ref2)))

    print("KERNEL_OK")
</pallas_src>

<mosaic_0001>
module attributes {stable_mosaic.version = 11 : i64} {
  func.func @_bn_kernel(%arg0: i32, %arg1: memref<1x8x8x128xbf16, #tpu.memory_space<vmem>>, %arg2: memref<2x2x128xf32, #tpu.memory_space<vmem>>, %arg3: memref<1x128xf32, #tpu.memory_space<vmem>>, %arg4: memref<1x128xf32, #tpu.memory_space<vmem>>, %arg5: memref<1x8x8x128xbf16, #tpu.memory_space<vmem>>) attributes {dimension_semantics = [#tpu.dimension_semantics<parallel>], iteration_bounds = array<i64: 2>, scalar_prefetch = 0 : i64, scratch_operands = 0 : i64, tpu.core_type = #tpu.core_type<tc>, window_params = [{transform_indices = @transform_0, window_bounds = array<i64: 1, 8, 8, 128>}, {pipeline_mode = #tpu.pipeline_mode<synchronous>, transform_indices = @transform_1, window_bounds = array<i64: 2, 2, 128>}, {pipeline_mode = #tpu.pipeline_mode<synchronous>, transform_indices = @transform_2, window_bounds = array<i64: 1, 128>}, {pipeline_mode = #tpu.pipeline_mode<synchronous>, transform_indices = @transform_3, window_bounds = array<i64: 1, 128>}, {transform_indices = @transform_4, window_bounds = array<i64: 1, 8, 8, 128>}]} {
    %c0 = arith.constant 0 : index
    %c0_0 = arith.constant 0 : index
    %c0_1 = arith.constant 0 : index
    %0 = vector.load %arg2[%c0, %c0_0, %c0_1] : memref<2x2x128xf32, #tpu.memory_space<vmem>>, vector<2x2x128xf32>
    %c0_2 = arith.constant 0 : index
    %c0_3 = arith.constant 0 : index
    %1 = vector.load %arg3[%c0_2, %c0_3] : memref<1x128xf32, #tpu.memory_space<vmem>>, vector<1x128xf32>
    %c0_4 = arith.constant 0 : index
    %c0_5 = arith.constant 0 : index
    %2 = vector.load %arg4[%c0_4, %c0_5] : memref<1x128xf32, #tpu.memory_space<vmem>>, vector<1x128xf32>
    %cst = arith.constant dense<0.000000e+00> : vector<2x128xf32>
    %3 = vector.multi_reduction <add>, %0, %cst [0] : vector<2x2x128xf32> to vector<2x128xf32>
    %4 = vector.extract_strided_slice %3 {offsets = [0, 0], sizes = [1, 128], strides = [1, 1]} : vector<2x128xf32> to vector<1x128xf32>
    %cst_6 = arith.constant 7.812500e-03 : f32
    %5 = vector.broadcast %cst_6 : f32 to vector<1x128xf32>
    %6 = arith.mulf %4, %5 : vector<1x128xf32>
    %7 = vector.extract_strided_slice %3 {offsets = [1, 0], sizes = [1, 128], strides = [1, 1]} : vector<2x128xf32> to vector<1x128xf32>
    %cst_7 = arith.constant 7.812500e-03 : f32
    %8 = vector.broadcast %cst_7 : f32 to vector<1x128xf32>
    %9 = arith.mulf %7, %8 : vector<1x128xf32>
    %10 = arith.mulf %6, %6 : vector<1x128xf32>
    %11 = arith.subf %9, %10 : vector<1x128xf32>
    %cst_8 = arith.constant 9.99999974E-6 : f32
    %12 = vector.broadcast %cst_8 : f32 to vector<1x128xf32>
    %13 = arith.addf %11, %12 : vector<1x128xf32>
    %14 = math.rsqrt %13 : vector<1x128xf32>
    %15 = arith.mulf %1, %14 : vector<1x128xf32>
    %16 = arith.mulf %6, %15 : vector<1x128xf32>
    %17 = arith.subf %2, %16 : vector<1x128xf32>
    %c0_9 = arith.constant 0 : index
    %c0_10 = arith.constant 0 : index
    %c0_11 = arith.constant 0 : index
    %c0_12 = arith.constant 0 : index
    %18 = vector.load %arg1[%c0_9, %c0_10, %c0_11, %c0_12] : memref<1x8x8x128xbf16, #tpu.memory_space<vmem>>, vector<1x8x8x128xbf16>
    %19 = arith.extf %18 : vector<1x8x8x128xbf16> to vector<1x8x8x128xf32>
    %20 = vector.shape_cast %19 : vector<1x8x8x128xf32> to vector<64x128xf32>
    %21 = vector.broadcast %15 : vector<1x128xf32> to vector<64x128xf32>
    %22 = arith.mulf %20, %21 : vector<64x128xf32>
    %23 = vector.broadcast %17 : vector<1x128xf32> to vector<64x128xf32>
    %24 = arith.addf %22, %23 : vector<64x128xf32>
    %cst_13 = arith.constant 0.000000e+00 : f32
    %25 = vector.broadcast %cst_13 : f32 to vector<64x128xf32>
    %26 = arith.maximumf %24, %25 : vector<64x128xf32>
    %27 = arith.truncf %26 : vector<64x128xf32> to vector<64x128xbf16>
    %28 = vector.shape_cast %27 : vector<64x128xbf16> to vector<1x8x8x128xbf16>
    %c0_14 = arith.constant 0 : index
    %c0_15 = arith.constant 0 : index
    %c0_16 = arith.constant 0 : index
    %c0_17 = arith.constant 0 : index
    %29 = vector.load %arg5[%c0_14, %c0_15, %c0_16, %c0_17] : memref<1x8x8x128xbf16, #tpu.memory_space<vmem>>, vector<1x8x8x128xbf16>
    tpu.vector_store %arg5[%c0_14, %c0_15, %c0_16, %c0_17], %28 {strides = array<i32>} : memref<1x8x8x128xbf16, #tpu.memory_space<vmem>>, vector<1x8x8x128xbf16>,
    return
  }
  func.func @transform_0(%arg0: i32) -> (i32, i32, i32, i32) {
    %c0_i32 = arith.constant 0 : i32
    %c0_i32_0 = arith.constant 0 : i32
    %c0_i32_1 = arith.constant 0 : i32
    %c0_i32_2 = arith.constant 0 : i32
    return %arg0, %c0_i32, %c0_i32_0, %c0_i32_1 : i32, i32, i32, i32
  }
  func.func @transform_1(%arg0: i32) -> (i32, i32, i32) {
    %c0_i32 = arith.constant 0 : i32
    %c0_i32_0 = arith.constant 0 : i32
    %c0_i32_1 = arith.constant 0 : i32
    %c0_i32_2 = arith.constant 0 : i32
    return %c0_i32, %c0_i32_0, %c0_i32_1 : i32, i32, i32
  }
  func.func @transform_2(%arg0: i32) -> (i32, i32) {
    %c0_i32 = arith.constant 0 : i32
    %c0_i32_0 = arith.constant 0 : i32
    %c0_i32_1 = arith.constant 0 : i32
    return %c0_i32, %c0_i32_0 : i32, i32
  }
  func.func @transform_3(%arg0: i32) -> (i32, i32) {
    %c0_i32 = arith.constant 0 : i32
    %c0_i32_0 = arith.constant 0 : i32
    %c0_i32_1 = arith.constant 0 : i32
    return %c0_i32, %c0_i32_0 : i32, i32
  }
  func.func @transform_4(%arg0: i32) -> (i32, i32, i32, i32) {
    %c0_i32 = arith.constant 0 : i32
    %c0_i32_0 = arith.constant 0 : i32
    %c0_i32_1 = arith.constant 0 : i32
    %c0_i32_2 = arith.constant 0 : i32
    return %arg0, %c0_i32, %c0_i32_0, %c0_i32_1 : i32, i32, i32, i32
  }
}

module attributes {stable_mosaic.version = 11 : i64} {
  func.func @_conv_stats_kernel(%arg0: i32, %arg1: memref<4x10x10x4xbf16, #tpu.memory_space<vmem>>, %arg2: memref<9x4x128xbf16, #tpu.memory_space<vmem>>, %arg3: memref<1x128xf32, #tpu.memory_space<vmem>>, %arg4: memref<4x128xbf16, #tpu.memory_space<vmem>>, %arg5: memref<1x128xf32, #tpu.memory_space<vmem>>, %arg6: memref<1x8x8x128xbf16, #tpu.memory_space<vmem>>, %arg7: memref<1x2x128xf32, #tpu.memory_space<vmem>>, %arg8: memref<1x8x8x128xbf16, #tpu.memory_space<vmem>>, %arg9: memref<1x2x128xf32, #tpu.memory_space<vmem>>) attributes {dimension_semantics = [#tpu.dimension_semantics<parallel>], iteration_bounds = array<i64: 2>, scalar_prefetch = 0 : i64, scratch_operands = 0 : i64, tpu.core_type = #tpu.core_type<tc>, window_params = [{transform_indices = @transform_0, window_bounds = array<i64: 4, 10, 10, 4>}, {pipeline_mode = #tpu.pipeline_mode<synchronous>, transform_indices = @transform_1, window_bounds = array<i64: 9, 4, 128>}, {pipeline_mode = #tpu.pipeline_mode<synchronous>, transform_indices = @transform_2, window_bounds = array<i64: 1, 128>}, {pipeline_mode = #tpu.pipeline_mode<synchronous>, transform_indices = @transform_3, window_bounds = array<i64: 4, 128>}, {pipeline_mode = #tpu.pipeline_mode<synchronous>, transform_indices = @transform_4, window_bounds = array<i64: 1, 128>}, {transform_indices = @transform_5, window_bounds = array<i64: 1, 8, 8, 128>}, {transform_indices = @transform_6, window_bounds = array<i64: 1, 2, 128>}, {transform_indices = @transform_7, window_bounds = array<i64: 1, 8, 8, 128>}, {transform_indices = @transform_8, window_bounds = array<i64: 1, 2, 128>}]} {
    %c0 = arith.constant 0 : index
    %c0_0 = arith.constant 0 : index
    %c0_1 = arith.constant 0 : index
    %c0_2 = arith.constant 0 : index
    %0 = vector.load %arg1[%c0, %c0_0, %c0_1, %c0_2] : memref<4x10x10x4xbf16, #tpu.memory_space<vmem>>, vector<4x10x10x4xbf16>
    %cst = arith.constant 0.000000e+00 : f32
    %1 = vector.broadcast %cst : f32 to vector<64x128xf32>
    %2 = vector.extract_strided_slice %0 {offsets = [0, 0, 0, 0], sizes = [1, 8, 8, 4], strides = [1, 1, 1, 1]} : vector<4x10x10x4xbf16> to vector<1x8x8x4xbf16>
    %3 = vector.shape_cast %2 : vector<1x8x8x4xbf16> to vector<8x8x4xbf16>
    %4 = vector.shape_cast %3 : vector<8x8x4xbf16> to vector<64x4xbf16>
    %c0_3 = arith.constant 0 : index
    %c0_4 = arith.constant 0 : index
    %c0_5 = arith.constant 0 : index
    %5 = vector.load %arg2[%c0_3, %c0_4, %c0_5] : memref<9x4x128xbf16, #tpu.memory_space<vmem>>, vector<1x4x128xbf16>
    %6 = vector.shape_cast %5 : vector<1x4x128xbf16> to vector<4x128xbf16>
    %cst_6 = arith.constant dense<0.000000e+00> : vector<64x128xf32>
    %7 = tpu.matmul %4, %6, %cst_6 {dimension_numbers = #tpu.dot_dimension_numbers<[1], [0], [0], [1], [0, 0, 1, 1], [], []>} : vector<64x4xbf16>, vector<4x128xbf16>, vector<64x128xf32> -> vector<64x128xf32>
    %8 = arith.addf %1, %7 : vector<64x128xf32>
    %9 = vector.extract_strided_slice %0 {offsets = [1, 0, 0, 0], sizes = [1, 8, 8, 4], strides = [1, 1, 1, 1]} : vector<4x10x10x4xbf16> to vector<1x8x8x4xbf16>
    %10 = vector.shape_cast %9 : vector<1x8x8x4xbf16> to vector<8x8x4xbf16>
    %11 = vector.shape_cast %10 : vector<8x8x4xbf16> to vector<64x4xbf16>
    %c1 = arith.constant 1 : index
    %c0_7 = arith.constant 0 : index
    %c0_8 = arith.constant 0 : index
    %12 = vector.load %arg2[%c1, %c0_7, %c0_8] : memref<9x4x128xbf16, #tpu.memory_space<vmem>>, vector<1x4x128xbf16>
    %13 = vector.shape_cast %12 : vector<1x4x128xbf16> to vector<4x128xbf16>
    %cst_9 = arith.constant dense<0.000000e+00> : vector<64x128xf32>
    %14 = tpu.matmul %11, %13, %cst_9 {dimension_numbers = #tpu.dot_dimension_numbers<[1], [0], [0], [1], [0, 0, 1, 1], [], []>} : vector<64x4xbf16>, vector<4x128xbf16>, vector<64x128xf32> -> vector<64x128xf32>
    %15 = arith.addf %8, %14 : vector<64x128xf32>
    %16 = vector.extract_strided_slice %0 {offsets = [0, 0, 1, 0], sizes = [1, 8, 8, 4], strides = [1, 1, 1, 1]} : vector<4x10x10x4xbf16> to vector<1x8x8x4xbf16>
    %17 = vector.shape_cast %16 : vector<1x8x8x4xbf16> to vector<8x8x4xbf16>
    %18 = vector.shape_cast %17 : vector<8x8x4xbf16> to vector<64x4xbf16>
    %c2 = arith.constant 2 : index
    %c0_10 = arith.constant 0 : index
    %c0_11 = arith.constant 0 : index
    %19 = vector.load %arg2[%c2, %c0_10, %c0_11] : memref<9x4x128xbf16, #tpu.memory_space<vmem>>, vector<1x4x128xbf16>
    %20 = vector.shape_cast %19 : vector<1x4x128xbf16> to vector<4x128xbf16>
    %cst_12 = arith.constant dense<0.000000e+00> : vector<64x128xf32>
    %21 = tpu.matmul %18, %20, %cst_12 {dimension_numbers = #tpu.dot_dimension_numbers<[1], [0], [0], [1], [0, 0, 1, 1], [], []>} : vector<64x4xbf16>, vector<4x128xbf16>, vector<64x128xf32> -> vector<64x128xf32>
    %22 = arith.addf %15, %21 : vector<64x128xf32>
    %23 = vector.extract_strided_slice %0 {offsets = [2, 0, 0, 0], sizes = [1, 8, 8, 4], strides = [1, 1, 1, 1]} : vector<4x10x10x4xbf16> to vector<1x8x8x4xbf16>
    %24 = vector.shape_cast %23 : vector<1x8x8x4xbf16> to vector<8x8x4xbf16>
    %25 = vector.shape_cast %24 : vector<8x8x4xbf16> to vector<64x4xbf16>
    %c3 = arith.constant 3 : index
    %c0_13 = arith.constant 0 : index
    %c0_14 = arith.constant 0 : index
    %26 = vector.load %arg2[%c3, %c0_13, %c0_14] : memref<9x4x128xbf16, #tpu.memory_space<vmem>>, vector<1x4x128xbf16>
    %27 = vector.shape_cast %26 : vector<1x4x128xbf16> to vector<4x128xbf16>
    %cst_15 = arith.constant dense<0.000000e+00> : vector<64x128xf32>
    %28 = tpu.matmul %25, %27, %cst_15 {dimension_numbers = #tpu.dot_dimension_numbers<[1], [0], [0], [1], [0, 0, 1, 1], [], []>} : vector<64x4xbf16>, vector<4x128xbf16>, vector<64x128xf32> -> vector<64x128xf32>
    %29 = arith.addf %22, %28 : vector<64x128xf32>
    %30 = vector.extract_strided_slice %0 {offsets = [3, 0, 0, 0], sizes = [1, 8, 8, 4], strides = [1, 1, 1, 1]} : vector<4x10x10x4xbf16> to vector<1x8x8x4xbf16>
    %31 = vector.shape_cast %30 : vector<1x8x8x4xbf16> to vector<8x8x4xbf16>
    %32 = vector.shape_cast %31 : vector<8x8x4xbf16> to vector<64x4xbf16>
    %c4 = arith.constant 4 : index
    %c0_16 = arith.constant 0 : index
    %c0_17 = arith.constant 0 : index
    %33 = vector.load %arg2[%c4, %c0_16, %c0_17] : memref<9x4x128xbf16, #tpu.memory_space<vmem>>, vector<1x4x128xbf16>
    %34 = vector.shape_cast %33 : vector<1x4x128xbf16> to vector<4x128xbf16>
    %cst_18 = arith.constant dense<0.000000e+00> : vector<64x128xf32>
    %35 = tpu.matmul %32, %34, %cst_18 {dimension_numbers = #tpu.dot_dimension_numbers<[1], [0], [0], [1], [0, 0, 1, 1], [], []>} : vector<64x4xbf16>, vector<4x128xbf16>, vector<64x128xf32> -> vector<64x128xf32>
    %36 = arith.addf %29, %35 : vector<64x128xf32>
    %37 = vector.extract_strided_slice %0 {offsets = [2, 0, 1, 0], sizes = [1, 8, 8, 4], strides = [1, 1, 1, 1]} : vector<4x10x10x4xbf16> to vector<1x8x8x4xbf16>
    %38 = vector.shape_cast %37 : vector<1x8x8x4xbf16> to vector<8x8x4xbf16>
    %39 = vector.shape_cast %38 : vector<8x8x4xbf16> to vector<64x4xbf16>
    %c5 = arith.constant 5 : index
    %c0_19 = arith.constant 0 : index
    %c0_20 = arith.constant 0 : index
    %40 = vector.load %arg2[%c5, %c0_19, %c0_20] : memref<9x4x128xbf16, #tpu.memory_space<vmem>>, vector<1x4x128xbf16>
    %41 = vector.shape_cast %40 : vector<1x4x128xbf16> to vector<4x128xbf16>
    %cst_21 = arith.constant dense<0.000000e+00> : vector<64x128xf32>
    %42 = tpu.matmul %39, %41, %cst_21 {dimension_numbers = #tpu.dot_dimension_numbers<[1], [0], [0], [1], [0, 0, 1, 1], [], []>} : vector<64x4xbf16>, vector<4x128xbf16>, vector<64x128xf32> -> vector<64x128xf32>
    %43 = arith.addf %36, %42 : vector<64x128xf32>
    %44 = vector.extract_strided_slice %0 {offsets = [0, 1, 0, 0], sizes = [1, 8, 8, 4], strides = [1, 1, 1, 1]} : vector<4x10x10x4xbf16> to vector<1x8x8x4xbf16>
    %45 = vector.shape_cast %44 : vector<1x8x8x4xbf16> to vector<8x8x4xbf16>
    %46 = vector.shape_cast %45 : vector<8x8x4xbf16> to vector<64x4xbf16>
    %c6 = arith.constant 6 : index
    %c0_22 = arith.constant 0 : index
    %c0_23 = arith.constant 0 : index
    %47 = vector.load %arg2[%c6, %c0_22, %c0_23] : memref<9x4x128xbf16, #tpu.memory_space<vmem>>, vector<1x4x128xbf16>
    %48 = vector.shape_cast %47 : vector<1x4x128xbf16> to vector<4x128xbf16>
    %cst_24 = arith.constant dense<0.000000e+00> : vector<64x128xf32>
    %49 = tpu.matmul %46, %48, %cst_24 {dimension_numbers = #tpu.dot_dimension_numbers<[1], [0], [0], [1], [0, 0, 1, 1], [], []>} : vector<64x4xbf16>, vector<4x128xbf16>, vector<64x128xf32> -> vector<64x128xf32>
    %50 = arith.addf %43, %49 : vector<64x128xf32>
    %51 = vector.extract_strided_slice %0 {offsets = [1, 1, 0, 0], sizes = [1, 8, 8, 4], strides = [1, 1, 1, 1]} : vector<4x10x10x4xbf16> to vector<1x8x8x4xbf16>
    %52 = vector.shape_cast %51 : vector<1x8x8x4xbf16> to vector<8x8x4xbf16>
    %53 = vector.shape_cast %52 : vector<8x8x4xbf16> to vector<64x4xbf16>
    %c7 = arith.constant 7 : index
    %c0_25 = arith.constant 0 : index
    %c0_26 = arith.constant 0 : index
    %54 = vector.load %arg2[%c7, %c0_25, %c0_26] : memref<9x4x128xbf16, #tpu.memory_space<vmem>>, vector<1x4x128xbf16>
    %55 = vector.shape_cast %54 : vector<1x4x128xbf16> to vector<4x128xbf16>
    %cst_27 = arith.constant dense<0.000000e+00> : vector<64x128xf32>
    %56 = tpu.matmul %53, %55, %cst_27 {dimension_numbers = #tpu.dot_dimension_numbers<[1], [0], [0], [1], [0, 0, 1, 1], [], []>} : vector<64x4xbf16>, vector<4x128xbf16>, vector<64x128xf32> -> vector<64x128xf32>
    %57 = arith.addf %50, %56 : vector<64x128xf32>
    %58 = vector.extract_strided_slice %0 {offsets = [0, 1, 1, 0], sizes = [1, 8, 8, 4], strides = [1, 1, 1, 1]} : vector<4x10x10x4xbf16> to vector<1x8x8x4xbf16>
    %59 = vector.shape_cast %58 : vector<1x8x8x4xbf16> to vector<8x8x4xbf16>
    %60 = vector.shape_cast %59 : vector<8x8x4xbf16> to vector<64x4xbf16>
    %c8 = arith.constant 8 : index
    %c0_28 = arith.constant 0 : index
    %c0_29 = arith.constant 0 : index
    %61 = vector.load %arg2[%c8, %c0_28, %c0_29] : memref<9x4x128xbf16, #tpu.memory_space<vmem>>, vector<1x4x128xbf16>
    %62 = vector.shape_cast %61 : vector<1x4x128xbf16> to vector<4x128xbf16>
    %cst_30 = arith.constant dense<0.000000e+00> : vector<64x128xf32>
    %63 = tpu.matmul %60, %62, %cst_30 {dimension_numbers = #tpu.dot_dimension_numbers<[1], [0], [0], [1], [0, 0, 1, 1], [], []>} : vector<64x4xbf16>, vector<4x128xbf16>, vector<64x128xf32> -> vector<64x128xf32>
    %64 = arith.addf %57, %63 : vector<64x128xf32>
    %c0_31 = arith.constant 0 : index
    %c0_32 = arith.constant 0 : index
    %65 = vector.load %arg3[%c0_31, %c0_32] : memref<1x128xf32, #tpu.memory_space<vmem>>, vector<1x128xf32>
    %66 = vector.broadcast %65 : vector<1x128xf32> to vector<64x128xf32>
    %67 = arith.addf %64, %66 : vector<64x128xf32>
    %68 = arith.truncf %67 : vector<64x128xf32> to vector<64x128xbf16>
    %69 = arith.extf %68 : vector<64x128xbf16> to vector<64x128xf32>
    %70 = vector.shape_cast %68 : vector<64x128xbf16> to vector<1x8x8x128xbf16>
    %c0_33 = arith.constant 0 : index
    %c0_34 = arith.constant 0 : index
    %c0_35 = arith.constant 0 : index
    %c0_36 = arith.constant 0 : index
    %71 = vector.load %arg6[%c0_33, %c0_34, %c0_35, %c0_36] : memref<1x8x8x128xbf16, #tpu.memory_space<vmem>>, vector<1x8x8x128xbf16>
    tpu.vector_store %arg6[%c0_33, %c0_34, %c0_35, %c0_36], %70 {strides = array<i32>} : memref<1x8x8x128xbf16, #tpu.memory_space<vmem>>, vector<1x8x8x128xbf16>,
    %cst_37 = arith.constant dense<0.000000e+00> : vector<128xf32>
    %72 = vector.multi_reduction <add>, %69, %cst_37 [0] : vector<64x128xf32> to vector<128xf32>
    %73 = vector.shape_cast %72 : vector<128xf32> to vector<1x128xf32>
    %74 = vector.shape_cast %73 : vector<1x128xf32> to vector<1x1x128xf32>
    %c0_38 = arith.constant 0 : index
    %c0_39 = arith.constant 0 : index
    %c0_40 = arith.constant 0 : index
    %75 = vector.load %arg7[%c0_38, %c0_39, %c0_40] : memref<1x2x128xf32, #tpu.memory_space<vmem>>, vector<1x1x128xf32>
    tpu.vector_store %arg7[%c0_38, %c0_39, %c0_40], %74 {strides = array<i32>} : memref<1x2x128xf32, #tpu.memory_space<vmem>>, vector<1x1x128xf32>,
    %76 = arith.mulf %69, %69 : vector<64x128xf32>
    %cst_41 = arith.constant dense<0.000000e+00> : vector<128xf32>
    %77 = vector.multi_reduction <add>, %76, %cst_41 [0] : vector<64x128xf32> to vector<128xf32>
    %78 = vector.shape_cast %77 : vector<128xf32> to vector<1x128xf32>
    %79 = vector.shape_cast %78 : vector<1x128xf32> to vector<1x1x128xf32>
    %c0_42 = arith.constant 0 : index
    %c1_43 = arith.constant 1 : index
    %c0_44 = arith.constant 0 : index
    %80 = vector.load %arg7[%c0_42, %c1_43, %c0_44] : memref<1x2x128xf32, #tpu.memory_space<vmem>>, vector<1x1x128xf32>
    tpu.vector_store %arg7[%c0_42, %c1_43, %c0_44], %79 {strides = array<i32>} : memref<1x2x128xf32, #tpu.memory_space<vmem>>, vector<1x1x128xf32>,
    %c0_45 = arith.constant 0 : index
    %c0_46 = arith.constant 0 : index
    %81 = vector.load %arg4[%c0_45, %c0_46] : memref<4x128xbf16, #tpu.memory_space<vmem>>, vector<4x128xbf16>
    %cst_47 = arith.constant dense<0.000000e+00> : vector<64x128xf32>
    %82 = tpu.matmul %32, %81, %cst_47 {dimension_numbers = #tpu.dot_dimension_numbers<[1], [0], [0], [1], [0, 0, 1, 1], [], []>} : vector<64x4xbf16>, vector<4x128xbf16>, vector<64x128xf32> -> vector<64x128xf32>
    %c0_48 = arith.constant 0 : index
    %c0_49 = arith.constant 0 : index
    %83 = vector.load %arg5[%c0_48, %c0_49] : memref<1x128xf32, #tpu.memory_space<vmem>>, vector<1x128xf32>
    %84 = vector.broadcast %83 : vector<1x128xf32> to vector<64x128xf32>
    %85 = arith.addf %82, %84 : vector<64x128xf32>
    %86 = arith.truncf %85 : vector<64x128xf32> to vector<64x128xbf16>
    %87 = arith.extf %86 : vector<64x128xbf16> to vector<64x128xf32>
    %88 = vector.shape_cast %86 : vector<64x128xbf16> to vector<1x8x8x128xbf16>
    %c0_50 = arith.constant 0 : index
    %c0_51 = arith.constant 0 : index
    %c0_52 = arith.constant 0 : index
    %c0_53 = arith.constant 0 : index
    %89 = vector.load %arg8[%c0_50, %c0_51, %c0_52, %c0_53] : memref<1x8x8x128xbf16, #tpu.memory_space<vmem>>, vector<1x8x8x128xbf16>
    tpu.vector_store %arg8[%c0_50, %c0_51, %c0_52, %c0_53], %88 {strides = array<i32>} : memref<1x8x8x128xbf16, #tpu.memory_space<vmem>>, vector<1x8x8x128xbf16>,
    %cst_54 = arith.constant dense<0.000000e+00> : vector<128xf32>
    %90 = vector.multi_reduction <add>, %87, %cst_54 [0] : vector<64x128xf32> to vector<128xf32>
    %91 = vector.shape_cast %90 : vector<128xf32> to vector<1x128xf32>
    %92 = vector.shape_cast %91 : vector<1x128xf32> to vector<1x1x128xf32>
    %c0_55 = arith.constant 0 : index
    %c0_56 = arith.constant 0 : index
    %c0_57 = arith.constant 0 : index
    %93 = vector.load %arg9[%c0_55, %c0_56, %c0_57] : memref<1x2x128xf32, #tpu.memory_space<vmem>>, vector<1x1x128xf32>
    tpu.vector_store %arg9[%c0_55, %c0_56, %c0_57], %92 {strides = array<i32>} : memref<1x2x128xf32, #tpu.memory_space<vmem>>, vector<1x1x128xf32>,
    %94 = arith.mulf %87, %87 : vector<64x128xf32>
    %cst_58 = arith.constant dense<0.000000e+00> : vector<128xf32>
    %95 = vector.multi_reduction <add>, %94, %cst_58 [0] : vector<64x128xf32> to vector<128xf32>
    %96 = vector.shape_cast %95 : vector<128xf32> to vector<1x128xf32>
    %97 = vector.shape_cast %96 : vector<1x128xf32> to vector<1x1x128xf32>
    %c0_59 = arith.constant 0 : index
    %c1_60 = arith.constant 1 : index
    %c0_61 = arith.constant 0 : index
    %98 = vector.load %arg9[%c0_59, %c1_60, %c0_61] : memref<1x2x128xf32, #tpu.memory_space<vmem>>, vector<1x1x128xf32>
    tpu.vector_store %arg9[%c0_59, %c1_60, %c0_61], %97 {strides = array<i32>} : memref<1x2x128xf32, #tpu.memory_space<vmem>>, vector<1x1x128xf32>,
    return
  }
  func.func @transform_0(%arg0: i32) -> (i32, i32, i32, i32) {
    %c0_i32 = arith.constant 0 : i32
    %c0_i32_0 = arith.constant 0 : i32
    %c0_i32_1 = arith.constant 0 : i32
    %c0_i32_2 = arith.constant 0 : i32
    return %arg0, %c0_i32, %c0_i32_0, %c0_i32_1 : i32, i32, i32, i32
  }
  func.func @transform_1(%arg0: i32) -> (i32, i32, i32) {
    %c0_i32 = arith.constant 0 : i32
    %c0_i32_0 = arith.constant 0 : i32
    %c0_i32_1 = arith.constant 0 : i32
    %c0_i32_2 = arith.constant 0 : i32
    return %c0_i32, %c0_i32_0, %c0_i32_1 : i32, i32, i32
  }
  func.func @transform_2(%arg0: i32) -> (i32, i32) {
    %c0_i32 = arith.constant 0 : i32
    %c0_i32_0 = arith.constant 0 : i32
    %c0_i32_1 = arith.constant 0 : i32
    return %c0_i32, %c0_i32_0 : i32, i32
  }
  func.func @transform_3(%arg0: i32) -> (i32, i32) {
    %c0_i32 = arith.constant 0 : i32
    %c0_i32_0 = arith.constant 0 : i32
    %c0_i32_1 = arith.constant 0 : i32
    return %c0_i32, %c0_i32_0 : i32, i32
  }
  func.func @transform_4(%arg0: i32) -> (i32, i32) {
    %c0_i32 = arith.constant 0 : i32
    %c0_i32_0 = arith.constant 0 : i32
    %c0_i32_1 = arith.constant 0 : i32
    return %c0_i32, %c0_i32_0 : i32, i32
  }
  func.func @transform_5(%arg0: i32) -> (i32, i32, i32, i32) {
    %c0_i32 = arith.constant 0 : i32
    %c0_i32_0 = arith.constant 0 : i32
    %c0_i32_1 = arith.constant 0 : i32
    %c0_i32_2 = arith.constant 0 : i32
    return %arg0, %c0_i32, %c0_i32_0, %c0_i32_1 : i32, i32, i32, i32
  }
  func.func @transform_6(%arg0: i32) -> (i32, i32, i32) {
    %c0_i32 = arith.constant 0 : i32
    %c0_i32_0 = arith.constant 0 : i32
    %c0_i32_1 = arith.constant 0 : i32
    return %arg0, %c0_i32, %c0_i32_0 : i32, i32, i32
  }
  func.func @transform_7(%arg0: i32) -> (i32, i32, i32, i32) {
    %c0_i32 = arith.constant 0 : i32
    %c0_i32_0 = arith.constant 0 : i32
    %c0_i32_1 = arith.constant 0 : i32
    %c0_i32_2 = arith.constant 0 : i32
    return %arg0, %c0_i32, %c0_i32_0, %c0_i32_1 : i32, i32, i32, i32
  }
  func.func @transform_8(%arg0: i32) -> (i32, i32, i32) {
    %c0_i32 = arith.constant 0 : i32
    %c0_i32_0 = arith.constant 0 : i32
    %c0_i32_1 = arith.constant 0 : i32
    return %arg0, %c0_i32, %c0_i32_0 : i32, i32, i32
  }
}

module attributes {stable_mosaic.version = 11 : i64} {
  func.func @_conv_stats_kernel(%arg0: i32, %arg1: memref<1x10x10x128xbf16, #tpu.memory_space<vmem>>, %arg2: memref<9x128x128xbf16, #tpu.memory_space<vmem>>, %arg3: memref<1x128xf32, #tpu.memory_space<vmem>>, %arg4: memref<1x8x8x128xbf16, #tpu.memory_space<vmem>>, %arg5: memref<1x2x128xf32, #tpu.memory_space<vmem>>) attributes {dimension_semantics = [#tpu.dimension_semantics<parallel>], iteration_bounds = array<i64: 2>, scalar_prefetch = 0 : i64, scratch_operands = 0 : i64, tpu.core_type = #tpu.core_type<tc>, window_params = [{transform_indices = @transform_0, window_bounds = array<i64: 1, 10, 10, 128>}, {pipeline_mode = #tpu.pipeline_mode<synchronous>, transform_indices = @transform_1, window_bounds = array<i64: 9, 128, 128>}, {pipeline_mode = #tpu.pipeline_mode<synchronous>, transform_indices = @transform_2, window_bounds = array<i64: 1, 128>}, {transform_indices = @transform_3, window_bounds = array<i64: 1, 8, 8, 128>}, {transform_indices = @transform_4, window_bounds = array<i64: 1, 2, 128>}]} {
    %c0 = arith.constant 0 : index
    %c0_0 = arith.constant 0 : index
    %c0_1 = arith.constant 0 : index
    %c0_2 = arith.constant 0 : index
    %0 = vector.load %arg1[%c0, %c0_0, %c0_1, %c0_2] : memref<1x10x10x128xbf16, #tpu.memory_space<vmem>>, vector<1x10x10x128xbf16>
    %cst = arith.constant 0.000000e+00 : f32
    %1 = vector.broadcast %cst : f32 to vector<64x128xf32>
    %2 = vector.extract_strided_slice %0 {offsets = [0, 0, 0, 0], sizes = [1, 8, 8, 128], strides = [1, 1, 1, 1]} : vector<1x10x10x128xbf16> to vector<1x8x8x128xbf16>
    %3 = vector.shape_cast %2 : vector<1x8x8x128xbf16> to vector<8x8x128xbf16>
    %4 = vector.shape_cast %3 : vector<8x8x128xbf16> to vector<64x128xbf16>
    %c0_3 = arith.constant 0 : index
    %c0_4 = arith.constant 0 : index
    %c0_5 = arith.constant 0 : index
    %5 = vector.load %arg2[%c0_3, %c0_4, %c0_5] : memref<9x128x128xbf16, #tpu.memory_space<vmem>>, vector<1x128x128xbf16>
    %6 = vector.shape_cast %5 : vector<1x128x128xbf16> to vector<128x128xbf16>
    %cst_6 = arith.constant dense<0.000000e+00> : vector<64x128xf32>
    %7 = tpu.matmul %4, %6, %cst_6 {dimension_numbers = #tpu.dot_dimension_numbers<[1], [0], [0], [1], [0, 0, 1, 1], [], []>} : vector<64x128xbf16>, vector<128x128xbf16>, vector<64x128xf32> -> vector<64x128xf32>
    %8 = arith.addf %1, %7 : vector<64x128xf32>
    %9 = vector.extract_strided_slice %0 {offsets = [0, 0, 1, 0], sizes = [1, 8, 8, 128], strides = [1, 1, 1, 1]} : vector<1x10x10x128xbf16> to vector<1x8x8x128xbf16>
    %10 = vector.shape_cast %9 : vector<1x8x8x128xbf16> to vector<8x8x128xbf16>
    %11 = vector.shape_cast %10 : vector<8x8x128xbf16> to vector<64x128xbf16>
    %c1 = arith.constant 1 : index
    %c0_7 = arith.constant 0 : index
    %c0_8 = arith.constant 0 : index
    %12 = vector.load %arg2[%c1, %c0_7, %c0_8] : memref<9x128x128xbf16, #tpu.memory_space<vmem>>, vector<1x128x128xbf16>
    %13 = vector.shape_cast %12 : vector<1x128x128xbf16> to vector<128x128xbf16>
    %cst_9 = arith.constant dense<0.000000e+00> : vector<64x128xf32>
    %14 = tpu.matmul %11, %13, %cst_9 {dimension_numbers = #tpu.dot_dimension_numbers<[1], [0], [0], [1], [0, 0, 1, 1], [], []>} : vector<64x128xbf16>, vector<128x128xbf16>, vector<64x128xf32> -> vector<64x128xf32>
    %15 = arith.addf %8, %14 : vector<64x128xf32>
    %16 = vector.extract_strided_slice %0 {offsets = [0, 0, 2, 0], sizes = [1, 8, 8, 128], strides = [1, 1, 1, 1]} : vector<1x10x10x128xbf16> to vector<1x8x8x128xbf16>
    %17 = vector.shape_cast %16 : vector<1x8x8x128xbf16> to vector<8x8x128xbf16>
    %18 = vector.shape_cast %17 : vector<8x8x128xbf16> to vector<64x128xbf16>
    %c2 = arith.constant 2 : index
    %c0_10 = arith.constant 0 : index
    %c0_11 = arith.constant 0 : index
    %19 = vector.load %arg2[%c2, %c0_10, %c0_11] : memref<9x128x128xbf16, #tpu.memory_space<vmem>>, vector<1x128x128xbf16>
    %20 = vector.shape_cast %19 : vector<1x128x128xbf16> to vector<128x128xbf16>
    %cst_12 = arith.constant dense<0.000000e+00> : vector<64x128xf32>
    %21 = tpu.matmul %18, %20, %cst_12 {dimension_numbers = #tpu.dot_dimension_numbers<[1], [0], [0], [1], [0, 0, 1, 1], [], []>} : vector<64x128xbf16>, vector<128x128xbf16>, vector<64x128xf32> -> vector<64x128xf32>
    %22 = arith.addf %15, %21 : vector<64x128xf32>
    %23 = vector.extract_strided_slice %0 {offsets = [0, 1, 0, 0], sizes = [1, 8, 8, 128], strides = [1, 1, 1, 1]} : vector<1x10x10x128xbf16> to vector<1x8x8x128xbf16>
    %24 = vector.shape_cast %23 : vector<1x8x8x128xbf16> to vector<8x8x128xbf16>
    %25 = vector.shape_cast %24 : vector<8x8x128xbf16> to vector<64x128xbf16>
    %c3 = arith.constant 3 : index
    %c0_13 = arith.constant 0 : index
    %c0_14 = arith.constant 0 : index
    %26 = vector.load %arg2[%c3, %c0_13, %c0_14] : memref<9x128x128xbf16, #tpu.memory_space<vmem>>, vector<1x128x128xbf16>
    %27 = vector.shape_cast %26 : vector<1x128x128xbf16> to vector<128x128xbf16>
    %cst_15 = arith.constant dense<0.000000e+00> : vector<64x128xf32>
    %28 = tpu.matmul %25, %27, %cst_15 {dimension_numbers = #tpu.dot_dimension_numbers<[1], [0], [0], [1], [0, 0, 1, 1], [], []>} : vector<64x128xbf16>, vector<128x128xbf16>, vector<64x128xf32> -> vector<64x128xf32>
    %29 = arith.addf %22, %28 : vector<64x128xf32>
    %30 = vector.extract_strided_slice %0 {offsets = [0, 1, 1, 0], sizes = [1, 8, 8, 128], strides = [1, 1, 1, 1]} : vector<1x10x10x128xbf16> to vector<1x8x8x128xbf16>
    %31 = vector.shape_cast %30 : vector<1x8x8x128xbf16> to vector<8x8x128xbf16>
    %32 = vector.shape_cast %31 : vector<8x8x128xbf16> to vector<64x128xbf16>
    %c4 = arith.constant 4 : index
    %c0_16 = arith.constant 0 : index
    %c0_17 = arith.constant 0 : index
    %33 = vector.load %arg2[%c4, %c0_16, %c0_17] : memref<9x128x128xbf16, #tpu.memory_space<vmem>>, vector<1x128x128xbf16>
    %34 = vector.shape_cast %33 : vector<1x128x128xbf16> to vector<128x128xbf16>
    %cst_18 = arith.constant dense<0.000000e+00> : vector<64x128xf32>
    %35 = tpu.matmul %32, %34, %cst_18 {dimension_numbers = #tpu.dot_dimension_numbers<[1], [0], [0], [1], [0, 0, 1, 1], [], []>} : vector<64x128xbf16>, vector<128x128xbf16>, vector<64x128xf32> -> vector<64x128xf32>
    %36 = arith.addf %29, %35 : vector<64x128xf32>
    %37 = vector.extract_strided_slice %0 {offsets = [0, 1, 2, 0], sizes = [1, 8, 8, 128], strides = [1, 1, 1, 1]} : vector<1x10x10x128xbf16> to vector<1x8x8x128xbf16>
    %38 = vector.shape_cast %37 : vector<1x8x8x128xbf16> to vector<8x8x128xbf16>
    %39 = vector.shape_cast %38 : vector<8x8x128xbf16> to vector<64x128xbf16>
    %c5 = arith.constant 5 : index
    %c0_19 = arith.constant 0 : index
    %c0_20 = arith.constant 0 : index
    %40 = vector.load %arg2[%c5, %c0_19, %c0_20] : memref<9x128x128xbf16, #tpu.memory_space<vmem>>, vector<1x128x128xbf16>
    %41 = vector.shape_cast %40 : vector<1x128x128xbf16> to vector<128x128xbf16>
    %cst_21 = arith.constant dense<0.000000e+00> : vector<64x128xf32>
    %42 = tpu.matmul %39, %41, %cst_21 {dimension_numbers = #tpu.dot_dimension_numbers<[1], [0], [0], [1], [0, 0, 1, 1], [], []>} : vector<64x128xbf16>, vector<128x128xbf16>, vector<64x128xf32> -> vector<64x128xf32>
    %43 = arith.addf %36, %42 : vector<64x128xf32>
    %44 = vector.extract_strided_slice %0 {offsets = [0, 2, 0, 0], sizes = [1, 8, 8, 128], strides = [1, 1, 1, 1]} : vector<1x10x10x128xbf16> to vector<1x8x8x128xbf16>
    %45 = vector.shape_cast %44 : vector<1x8x8x128xbf16> to vector<8x8x128xbf16>
    %46 = vector.shape_cast %45 : vector<8x8x128xbf16> to vector<64x128xbf16>
    %c6 = arith.constant 6 : index
    %c0_22 = arith.constant 0 : index
    %c0_23 = arith.constant 0 : index
    %47 = vector.load %arg2[%c6, %c0_22, %c0_23] : memref<9x128x128xbf16, #tpu.memory_space<vmem>>, vector<1x128x128xbf16>
    %48 = vector.shape_cast %47 : vector<1x128x128xbf16> to vector<128x128xbf16>
    %cst_24 = arith.constant dense<0.000000e+00> : vector<64x128xf32>
    %49 = tpu.matmul %46, %48, %cst_24 {dimension_numbers = #tpu.dot_dimension_numbers<[1], [0], [0], [1], [0, 0, 1, 1], [], []>} : vector<64x128xbf16>, vector<128x128xbf16>, vector<64x128xf32> -> vector<64x128xf32>
    %50 = arith.addf %43, %49 : vector<64x128xf32>
    %51 = vector.extract_strided_slice %0 {offsets = [0, 2, 1, 0], sizes = [1, 8, 8, 128], strides = [1, 1, 1, 1]} : vector<1x10x10x128xbf16> to vector<1x8x8x128xbf16>
    %52 = vector.shape_cast %51 : vector<1x8x8x128xbf16> to vector<8x8x128xbf16>
    %53 = vector.shape_cast %52 : vector<8x8x128xbf16> to vector<64x128xbf16>
    %c7 = arith.constant 7 : index
    %c0_25 = arith.constant 0 : index
    %c0_26 = arith.constant 0 : index
    %54 = vector.load %arg2[%c7, %c0_25, %c0_26] : memref<9x128x128xbf16, #tpu.memory_space<vmem>>, vector<1x128x128xbf16>
    %55 = vector.shape_cast %54 : vector<1x128x128xbf16> to vector<128x128xbf16>
    %cst_27 = arith.constant dense<0.000000e+00> : vector<64x128xf32>
    %56 = tpu.matmul %53, %55, %cst_27 {dimension_numbers = #tpu.dot_dimension_numbers<[1], [0], [0], [1], [0, 0, 1, 1], [], []>} : vector<64x128xbf16>, vector<128x128xbf16>, vector<64x128xf32> -> vector<64x128xf32>
    %57 = arith.addf %50, %56 : vector<64x128xf32>
    %58 = vector.extract_strided_slice %0 {offsets = [0, 2, 2, 0], sizes = [1, 8, 8, 128], strides = [1, 1, 1, 1]} : vector<1x10x10x128xbf16> to vector<1x8x8x128xbf16>
    %59 = vector.shape_cast %58 : vector<1x8x8x128xbf16> to vector<8x8x128xbf16>
    %60 = vector.shape_cast %59 : vector<8x8x128xbf16> to vector<64x128xbf16>
    %c8 = arith.constant 8 : index
    %c0_28 = arith.constant 0 : index
    %c0_29 = arith.constant 0 : index
    %61 = vector.load %arg2[%c8, %c0_28, %c0_29] : memref<9x128x128xbf16, #tpu.memory_space<vmem>>, vector<1x128x128xbf16>
    %62 = vector.shape_cast %61 : vector<1x128x128xbf16> to vector<128x128xbf16>
    %cst_30 = arith.constant dense<0.000000e+00> : vector<64x128xf32>
    %63 = tpu.matmul %60, %62, %cst_30 {dimension_numbers = #tpu.dot_dimension_numbers<[1], [0], [0], [1], [0, 0, 1, 1], [], []>} : vector<64x128xbf16>, vector<128x128xbf16>, vector<64x128xf32> -> vector<64x128xf32>
    %64 = arith.addf %57, %63 : vector<64x128xf32>
    %c0_31 = arith.constant 0 : index
    %c0_32 = arith.constant 0 : index
    %65 = vector.load %arg3[%c0_31, %c0_32] : memref<1x128xf32, #tpu.memory_space<vmem>>, vector<1x128xf32>
    %66 = vector.broadcast %65 : vector<1x128xf32> to vector<64x128xf32>
    %67 = arith.addf %64, %66 : vector<64x128xf32>
    %68 = arith.truncf %67 : vector<64x128xf32> to vector<64x128xbf16>
    %69 = arith.extf %68 : vector<64x128xbf16> to vector<64x128xf32>
    %70 = vector.shape_cast %68 : vector<64x128xbf16> to vector<1x8x8x128xbf16>
    %c0_33 = arith.constant 0 : index
    %c0_34 = arith.constant 0 : index
    %c0_35 = arith.constant 0 : index
    %c0_36 = arith.constant 0 : index
    %71 = vector.load %arg4[%c0_33, %c0_34, %c0_35, %c0_36] : memref<1x8x8x128xbf16, #tpu.memory_space<vmem>>, vector<1x8x8x128xbf16>
    tpu.vector_store %arg4[%c0_33, %c0_34, %c0_35, %c0_36], %70 {strides = array<i32>} : memref<1x8x8x128xbf16, #tpu.memory_space<vmem>>, vector<1x8x8x128xbf16>,
    %cst_37 = arith.constant dense<0.000000e+00> : vector<128xf32>
    %72 = vector.multi_reduction <add>, %69, %cst_37 [0] : vector<64x128xf32> to vector<128xf32>
    %73 = vector.shape_cast %72 : vector<128xf32> to vector<1x128xf32>
    %74 = vector.shape_cast %73 : vector<1x128xf32> to vector<1x1x128xf32>
    %c0_38 = arith.constant 0 : index
    %c0_39 = arith.constant 0 : index
    %c0_40 = arith.constant 0 : index
    %75 = vector.load %arg5[%c0_38, %c0_39, %c0_40] : memref<1x2x128xf32, #tpu.memory_space<vmem>>, vector<1x1x128xf32>
    tpu.vector_store %arg5[%c0_38, %c0_39, %c0_40], %74 {strides = array<i32>} : memref<1x2x128xf32, #tpu.memory_space<vmem>>, vector<1x1x128xf32>,
    %76 = arith.mulf %69, %69 : vector<64x128xf32>
    %cst_41 = arith.constant dense<0.000000e+00> : vector<128xf32>
    %77 = vector.multi_reduction <add>, %76, %cst_41 [0] : vector<64x128xf32> to vector<128xf32>
    %78 = vector.shape_cast %77 : vector<128xf32> to vector<1x128xf32>
    %79 = vector.shape_cast %78 : vector<1x128xf32> to vector<1x1x128xf32>
    %c0_42 = arith.constant 0 : index
    %c1_43 = arith.constant 1 : index
    %c0_44 = arith.constant 0 : index
    %80 = vector.load %arg5[%c0_42, %c1_43, %c0_44] : memref<1x2x128xf32, #tpu.memory_space<vmem>>, vector<1x1x128xf32>
    tpu.vector_store %arg5[%c0_42, %c1_43, %c0_44], %79 {strides = array<i32>} : memref<1x2x128xf32, #tpu.memory_space<vmem>>, vector<1x1x128xf32>,
    return
  }
  func.func @transform_0(%arg0: i32) -> (i32, i32, i32, i32) {
    %c0_i32 = arith.constant 0 : i32
    %c0_i32_0 = arith.constant 0 : i32
    %c0_i32_1 = arith.constant 0 : i32
    %c0_i32_2 = arith.constant 0 : i32
    return %arg0, %c0_i32, %c0_i32_0, %c0_i32_1 : i32, i32, i32, i32
  }
  func.func @transform_1(%arg0: i32) -> (i32, i32, i32) {
    %c0_i32 = arith.constant 0 : i32
    %c0_i32_0 = arith.constant 0 : i32
    %c0_i32_1 = arith.constant 0 : i32
    %c0_i32_2 = arith.constant 0 : i32
    return %c0_i32, %c0_i32_0, %c0_i32_1 : i32, i32, i32
  }
  func.func @transform_2(%arg0: i32) -> (i32, i32) {
    %c0_i32 = arith.constant 0 : i32
    %c0_i32_0 = arith.constant 0 : i32
    %c0_i32_1 = arith.constant 0 : i32
    return %c0_i32, %c0_i32_0 : i32, i32
  }
  func.func @transform_3(%arg0: i32) -> (i32, i32, i32, i32) {
    %c0_i32 = arith.constant 0 : i32
    %c0_i32_0 = arith.constant 0 : i32
    %c0_i32_1 = arith.constant 0 : i32
    %c0_i32_2 = arith.constant 0 : i32
    return %arg0, %c0_i32, %c0_i32_0, %c0_i32_1 : i32, i32, i32, i32
  }
  func.func @transform_4(%arg0: i32) -> (i32, i32, i32) {
    %c0_i32 = arith.constant 0 : i32
    %c0_i32_0 = arith.constant 0 : i32
    %c0_i32_1 = arith.constant 0 : i32
    return %arg0, %c0_i32, %c0_i32_0 : i32, i32, i32
  }
}

module attributes {stable_mosaic.version = 11 : i64} {
  func.func @_bn_kernel(%arg0: i32, %arg1: memref<1x8x8x128xbf16, #tpu.memory_space<vmem>>, %arg2: memref<2x2x128xf32, #tpu.memory_space<vmem>>, %arg3: memref<1x128xf32, #tpu.memory_space<vmem>>, %arg4: memref<1x128xf32, #tpu.memory_space<vmem>>, %arg5: memref<1x8x8x128xbf16, #tpu.memory_space<vmem>>, %arg6: memref<2x2x128xf32, #tpu.memory_space<vmem>>, %arg7: memref<1x128xf32, #tpu.memory_space<vmem>>, %arg8: memref<1x128xf32, #tpu.memory_space<vmem>>, %arg9: memref<1x8x8x128xf32, #tpu.memory_space<vmem>>) attributes {dimension_semantics = [#tpu.dimension_semantics<parallel>], iteration_bounds = array<i64: 2>, scalar_prefetch = 0 : i64, scratch_operands = 0 : i64, tpu.core_type = #tpu.core_type<tc>, window_params = [{transform_indices = @transform_0, window_bounds = array<i64: 1, 8, 8, 128>}, {pipeline_mode = #tpu.pipeline_mode<synchronous>, transform_indices = @transform_1, window_bounds = array<i64: 2, 2, 128>}, {pipeline_mode = #tpu.pipeline_mode<synchronous>, transform_indices = @transform_2, window_bounds = array<i64: 1, 128>}, {pipeline_mode = #tpu.pipeline_mode<synchronous>, transform_indices = @transform_3, window_bounds = array<i64: 1, 128>}, {transform_indices = @transform_4, window_bounds = array<i64: 1, 8, 8, 128>}, {pipeline_mode = #tpu.pipeline_mode<synchronous>, transform_indices = @transform_5, window_bounds = array<i64: 2, 2, 128>}, {pipeline_mode = #tpu.pipeline_mode<synchronous>, transform_indices = @transform_6, window_bounds = array<i64: 1, 128>}, {pipeline_mode = #tpu.pipeline_mode<synchronous>, transform_indices = @transform_7, window_bounds = array<i64: 1, 128>}, {transform_indices = @transform_8, window_bounds = array<i64: 1, 8, 8, 128>}]} {
    %c0 = arith.constant 0 : index
    %c0_0 = arith.constant 0 : index
    %c0_1 = arith.constant 0 : index
    %0 = vector.load %arg2[%c0, %c0_0, %c0_1] : memref<2x2x128xf32, #tpu.memory_space<vmem>>, vector<2x2x128xf32>
    %c0_2 = arith.constant 0 : index
    %c0_3 = arith.constant 0 : index
    %1 = vector.load %arg3[%c0_2, %c0_3] : memref<1x128xf32, #tpu.memory_space<vmem>>, vector<1x128xf32>
    %c0_4 = arith.constant 0 : index
    %c0_5 = arith.constant 0 : index
    %2 = vector.load %arg4[%c0_4, %c0_5] : memref<1x128xf32, #tpu.memory_space<vmem>>, vector<1x128xf32>
    %cst = arith.constant dense<0.000000e+00> : vector<2x128xf32>
    %3 = vector.multi_reduction <add>, %0, %cst [0] : vector<2x2x128xf32> to vector<2x128xf32>
    %4 = vector.extract_strided_slice %3 {offsets = [0, 0], sizes = [1, 128], strides = [1, 1]} : vector<2x128xf32> to vector<1x128xf32>
    %cst_6 = arith.constant 7.812500e-03 : f32
    %5 = vector.broadcast %cst_6 : f32 to vector<1x128xf32>
    %6 = arith.mulf %4, %5 : vector<1x128xf32>
    %7 = vector.extract_strided_slice %3 {offsets = [1, 0], sizes = [1, 128], strides = [1, 1]} : vector<2x128xf32> to vector<1x128xf32>
    %cst_7 = arith.constant 7.812500e-03 : f32
    %8 = vector.broadcast %cst_7 : f32 to vector<1x128xf32>
    %9 = arith.mulf %7, %8 : vector<1x128xf32>
    %10 = arith.mulf %6, %6 : vector<1x128xf32>
    %11 = arith.subf %9, %10 : vector<1x128xf32>
    %cst_8 = arith.constant 9.99999974E-6 : f32
    %12 = vector.broadcast %cst_8 : f32 to vector<1x128xf32>
    %13 = arith.addf %11, %12 : vector<1x128xf32>
    %14 = math.rsqrt %13 : vector<1x128xf32>
    %15 = arith.mulf %1, %14 : vector<1x128xf32>
    %16 = arith.mulf %6, %15 : vector<1x128xf32>
    %17 = arith.subf %2, %16 : vector<1x128xf32>
    %c0_9 = arith.constant 0 : index
    %c0_10 = arith.constant 0 : index
    %c0_11 = arith.constant 0 : index
    %c0_12 = arith.constant 0 : index
    %18 = vector.load %arg1[%c0_9, %c0_10, %c0_11, %c0_12] : memref<1x8x8x128xbf16, #tpu.memory_space<vmem>>, vector<1x8x8x128xbf16>
    %19 = arith.extf %18 : vector<1x8x8x128xbf16> to vector<1x8x8x128xf32>
    %20 = vector.shape_cast %19 : vector<1x8x8x128xf32> to vector<64x128xf32>
    %21 = vector.broadcast %15 : vector<1x128xf32> to vector<64x128xf32>
    %22 = arith.mulf %20, %21 : vector<64x128xf32>
    %23 = vector.broadcast %17 : vector<1x128xf32> to vector<64x128xf32>
    %24 = arith.addf %22, %23 : vector<64x128xf32>
    %c0_13 = arith.constant 0 : index
    %c0_14 = arith.constant 0 : index
    %c0_15 = arith.constant 0 : index
    %25 = vector.load %arg6[%c0_13, %c0_14, %c0_15] : memref<2x2x128xf32, #tpu.memory_space<vmem>>, vector<2x2x128xf32>
    %c0_16 = arith.constant 0 : index
    %c0_17 = arith.constant 0 : index
    %26 = vector.load %arg7[%c0_16, %c0_17] : memref<1x128xf32, #tpu.memory_space<vmem>>, vector<1x128xf32>
    %c0_18 = arith.constant 0 : index
    %c0_19 = arith.constant 0 : index
    %27 = vector.load %arg8[%c0_18, %c0_19] : memref<1x128xf32, #tpu.memory_space<vmem>>, vector<1x128xf32>
    %cst_20 = arith.constant dense<0.000000e+00> : vector<2x128xf32>
    %28 = vector.multi_reduction <add>, %25, %cst_20 [0] : vector<2x2x128xf32> to vector<2x128xf32>
    %29 = vector.extract_strided_slice %28 {offsets = [0, 0], sizes = [1, 128], strides = [1, 1]} : vector<2x128xf32> to vector<1x128xf32>
    %cst_21 = arith.constant 7.812500e-03 : f32
    %30 = vector.broadcast %cst_21 : f32 to vector<1x128xf32>
    %31 = arith.mulf %29, %30 : vector<1x128xf32>
    %32 = vector.extract_strided_slice %28 {offsets = [1, 0], sizes = [1, 128], strides = [1, 1]} : vector<2x128xf32> to vector<1x128xf32>
    %cst_22 = arith.constant 7.812500e-03 : f32
    %33 = vector.broadcast %cst_22 : f32 to vector<1x128xf32>
    %34 = arith.mulf %32, %33 : vector<1x128xf32>
    %35 = arith.mulf %31, %31 : vector<1x128xf32>
    %36 = arith.subf %34, %35 : vector<1x128xf32>
    %cst_23 = arith.constant 9.99999974E-6 : f32
    %37 = vector.broadcast %cst_23 : f32 to vector<1x128xf32>
    %38 = arith.addf %36, %37 : vector<1x128xf32>
    %39 = math.rsqrt %38 : vector<1x128xf32>
    %40 = arith.mulf %26, %39 : vector<1x128xf32>
    %41 = arith.mulf %31, %40 : vector<1x128xf32>
    %42 = arith.subf %27, %41 : vector<1x128xf32>
    %c0_24 = arith.constant 0 : index
    %c0_25 = arith.constant 0 : index
    %c0_26 = arith.constant 0 : index
    %c0_27 = arith.constant 0 : index
    %43 = vector.load %arg5[%c0_24, %c0_25, %c0_26, %c0_27] : memref<1x8x8x128xbf16, #tpu.memory_space<vmem>>, vector<1x8x8x128xbf16>
    %44 = arith.extf %43 : vector<1x8x8x128xbf16> to vector<1x8x8x128xf32>
    %45 = vector.shape_cast %44 : vector<1x8x8x128xf32> to vector<64x128xf32>
    %46 = vector.broadcast %40 : vector<1x128xf32> to vector<64x128xf32>
    %47 = arith.mulf %45, %46 : vector<64x128xf32>
    %48 = arith.addf %24, %47 : vector<64x128xf32>
    %49 = vector.broadcast %42 : vector<1x128xf32> to vector<64x128xf32>
    %50 = arith.addf %48, %49 : vector<64x128xf32>
    %cst_28 = arith.constant 0.000000e+00 : f32
    %51 = vector.broadcast %cst_28 : f32 to vector<64x128xf32>
    %52 = arith.maximumf %50, %51 : vector<64x128xf32>
    %53 = vector.shape_cast %52 : vector<64x128xf32> to vector<1x8x8x128xf32>
    %c0_29 = arith.constant 0 : index
    %c0_30 = arith.constant 0 : index
    %c0_31 = arith.constant 0 : index
    %c0_32 = arith.constant 0 : index
    %54 = vector.load %arg9[%c0_29, %c0_30, %c0_31, %c0_32] : memref<1x8x8x128xf32, #tpu.memory_space<vmem>>, vector<1x8x8x128xf32>
    tpu.vector_store %arg9[%c0_29, %c0_30, %c0_31, %c0_32], %53 {strides = array<i32>} : memref<1x8x8x128xf32, #tpu.memory_space<vmem>>, vector<1x8x8x128xf32>,
    return
  }
  func.func @transform_0(%arg0: i32) -> (i32, i32, i32, i32) {
    %c0_i32 = arith.constant 0 : i32
    %c0_i32_0 = arith.constant 0 : i32
    %c0_i32_1 = arith.constant 0 : i32
    %c0_i32_2 = arith.constant 0 : i32
    return %arg0, %c0_i32, %c0_i32_0, %c0_i32_1 : i32, i32, i32, i32
  }
  func.func @transform_1(%arg0: i32) -> (i32, i32, i32) {
    %c0_i32 = arith.constant 0 : i32
    %c0_i32_0 = arith.constant 0 : i32
    %c0_i32_1 = arith.constant 0 : i32
    %c0_i32_2 = arith.constant 0 : i32
    return %c0_i32, %c0_i32_0, %c0_i32_1 : i32, i32, i32
  }
  func.func @transform_2(%arg0: i32) -> (i32, i32) {
    %c0_i32 = arith.constant 0 : i32
    %c0_i32_0 = arith.constant 0 : i32
    %c0_i32_1 = arith.constant 0 : i32
    return %c0_i32, %c0_i32_0 : i32, i32
  }
  func.func @transform_3(%arg0: i32) -> (i32, i32) {
    %c0_i32 = arith.constant 0 : i32
    %c0_i32_0 = arith.constant 0 : i32
    %c0_i32_1 = arith.constant 0 : i32
    return %c0_i32, %c0_i32_0 : i32, i32
  }
  func.func @transform_4(%arg0: i32) -> (i32, i32, i32, i32) {
    %c0_i32 = arith.constant 0 : i32
    %c0_i32_0 = arith.constant 0 : i32
    %c0_i32_1 = arith.constant 0 : i32
    %c0_i32_2 = arith.constant 0 : i32
    return %arg0, %c0_i32, %c0_i32_0, %c0_i32_1 : i32, i32, i32, i32
  }
  func.func @transform_5(%arg0: i32) -> (i32, i32, i32) {
    %c0_i32 = arith.constant 0 : i32
    %c0_i32_0 = arith.constant 0 : i32
    %c0_i32_1 = arith.constant 0 : i32
    %c0_i32_2 = arith.constant 0 : i32
    return %c0_i32, %c0_i32_0, %c0_i32_1 : i32, i32, i32
  }
  func.func @transform_6(%arg0: i32) -> (i32, i32) {
    %c0_i32 = arith.constant 0 : i32
    %c0_i32_0 = arith.constant 0 : i32
    %c0_i32_1 = arith.constant 0 : i32
    return %c0_i32, %c0_i32_0 : i32, i32
  }
  func.func @transform_7(%arg0: i32) -> (i32, i32) {
    %c0_i32 = arith.constant 0 : i32
    %c0_i32_0 = arith.constant 0 : i32
    %c0_i32_1 = arith.constant 0 : i32
    return %c0_i32, %c0_i32_0 : i32, i32
  }
  func.func @transform_8(%arg0: i32) -> (i32, i32, i32, i32) {
    %c0_i32 = arith.constant 0 : i32
    %c0_i32_0 = arith.constant 0 : i32
    %c0_i32_1 = arith.constant 0 : i32
    %c0_i32_2 = arith.constant 0 : i32
    return %arg0, %c0_i32, %c0_i32_0, %c0_i32_1 : i32, i32, i32, i32
  }
}

</mosaic_0001>

<llo_original>
// kernel: resblk_forward.5
$region0: #{resblk_forward.5}
  #allocation0 [shape = 'u32[]', space=smem, size = 0x4, offset = 0x4, fixed_abs, tag = 'smem constant byte address 0x4 - core index']
  #allocation1 [shape = 'u32[144,128]{1,0:T(1,128)}', space=vmem, size = 0x12000, scoped, tag = 'internal scratch']
  %s0 = inlined_call_operand.vmem [shape: bf16[2,8,8,128], index: 0, kind: input, shape index: {}]
  %s1 = inlined_call_operand.vmem [shape: f32[2,2,128], index: 1, kind: input, shape index: {}]
  %s2 = inlined_call_operand.vmem [shape: f32[1,128], index: 2, kind: input, shape index: {}]
  %s3 = inlined_call_operand.vmem [shape: f32[1,128], index: 3, kind: input, shape index: {}]
  %s4 = inlined_call_operand.vmem [shape: bf16[2,8,8,128], index: 4, kind: output, shape index: {}]
  %s5 = sld [smem:[#allocation0]]
  $region49: #{resblk_forward.5} parent=0
    _
  %s7 = ssub.s32 1, %s5
  %s8 = scalar_select 0, %s7, %s5
  loop: start=0, step=1, limit=4
  $region2: #{resblk_forward.5} parent=0 // loop_pre_header
    _
  $region3: #{resblk_forward.5} parent=0 // loop_header
    %s10 = sphi 0, %s14
    %p11 = scmp.ge.s32.totalorder %s10, 4
    %s20 = sphi 0, %s22
    %s23 = sphi 0, %s20
    %s24 = sphi 0, %s23
    %s40 = sphi 0, %s24
    %s44 = sphi 0, %s44
    %s46 = sphi 0, %s44
    %s47 = sphi 0, %s46
    %s61 = sphi 0, %s47
    %s65 = sphi 0, %s65
    %s67 = sphi 0, %s65
    %s68 = sphi 0, %s67
    %s82 = sphi 0, %s68
    %s86 = sphi 0, %s86
    %s88 = sphi 0, %s86
    %s89 = sphi 0, %s88
    %s103 = sphi 0, %s89
    %s109 = sphi 0, %s111
    %s112 = sphi 0, %s109
    %s113 = sphi 0, %s112
    %s129 = sphi 0, %s113
  $region4: #{resblk_forward.5} parent=0 // loop_header_branch
    %13 = sbr.rel (%p11) target = $region8
  $region5: #{resblk_forward.5} parent=0 // loop_body
    %s15 = ssub.s32 %s10, 1
    %s16 = ssub.s32 %s10, 2
    %s17 = sadd.s32 %s10, 1
    %s18 = ssub.s32 %s10, %s17
    %p19 = scmp.eq.s32.totalorder %s18, 0
    %s21 = sadd.s32 %s20, 1
    %s22 = scalar_select %p19, %s20, %s21
    %p25 = pneg %p19
    %p26 = scmp.eq.s32.totalorder %s10, 1
    %p27 = por %p25, %p26
    %p28 = scmp.ne.s32.totalorder %s20, %s23
    %p29 = scmp.eq.s32.totalorder %s10, 0
    %p30 = por %p28, %p29
    %p31 = scmp.ne.s32.totalorder %s20, %s23
    %p32 = scmp.eq.s32.totalorder %s15, 1
    %p33 = por %p31, %p32
    %p34 = scmp.ne.s32.totalorder %s23, %s24
    %p35 = scmp.eq.s32.totalorder %s15, 0
    %p36 = por %p34, %p35
    %p37 = scmp.ne.s32.totalorder %s23, %s24
    %p38 = scmp.eq.s32.totalorder %s16, 1
    %p39 = por %p37, %p38
    %p41 = scmp.ne.s32.totalorder %s24, %s40
    %p42 = scmp.eq.s32.totalorder %s16, 0
    %p43 = por %p41, %p42
    %s45 = sadd.s32 %s44, 1
    %p48 = scmp.eq.s32.totalorder %s10, 1
    %p49 = scmp.ne.s32.totalorder %s44, %s46
    %p50 = scmp.eq.s32.totalorder %s10, 0
    %p51 = por %p49, %p50
    %p52 = scmp.ne.s32.totalorder %s44, %s46
    %p53 = scmp.eq.s32.totalorder %s15, 1
    %p54 = por %p52, %p53
    %p55 = scmp.ne.s32.totalorder %s46, %s47
    %p56 = scmp.eq.s32.totalorder %s15, 0
    %p57 = por %p55, %p56
    %p58 = scmp.ne.s32.totalorder %s46, %s47
    %p59 = scmp.eq.s32.totalorder %s16, 1
    %p60 = por %p58, %p59
    %p62 = scmp.ne.s32.totalorder %s47, %s61
    %p63 = scmp.eq.s32.totalorder %s16, 0
    %p64 = por %p62, %p63
    %s66 = sadd.s32 %s65, 1
    %p69 = scmp.eq.s32.totalorder %s10, 1
    %p70 = scmp.ne.s32.totalorder %s65, %s67
    %p71 = scmp.eq.s32.totalorder %s10, 0
    %p72 = por %p70, %p71
    %p73 = scmp.ne.s32.totalorder %s65, %s67
    %p74 = scmp.eq.s32.totalorder %s15, 1
    %p75 = por %p73, %p74
    %p76 = scmp.ne.s32.totalorder %s67, %s68
    %p77 = scmp.eq.s32.totalorder %s15, 0
    %p78 = por %p76, %p77
    %p79 = scmp.ne.s32.totalorder %s67, %s68
    %p80 = scmp.eq.s32.totalorder %s16, 1
    %p81 = por %p79, %p80
    %p83 = scmp.ne.s32.totalorder %s68, %s82
    %p84 = scmp.eq.s32.totalorder %s16, 0
    %p85 = por %p83, %p84
    %s87 = sadd.s32 %s86, 1
    %p90 = scmp.eq.s32.totalorder %s10, 1
    %p91 = scmp.ne.s32.totalorder %s86, %s88
    %p92 = scmp.eq.s32.totalorder %s10, 0
    %p93 = por %p91, %p92
    %p94 = scmp.ne.s32.totalorder %s86, %s88
    %p95 = scmp.eq.s32.totalorder %s15, 1
    %p96 = por %p94, %p95
    %p97 = scmp.ne.s32.totalorder %s88, %s89
    %p98 = scmp.eq.s32.totalorder %s15, 0
    %p99 = por %p97, %p98
    %p100 = scmp.ne.s32.totalorder %s88, %s89
    %p101 = scmp.eq.s32.totalorder %s16, 1
    %p102 = por %p100, %p101
    %p104 = scmp.ne.s32.totalorder %s89, %s103
    %p105 = scmp.eq.s32.totalorder %s16, 0
    %p106 = por %p104, %p105
    %s107 = ssub.s32 %s10, %s17
    %p108 = scmp.eq.s32.totalorder %s107, 0
    %s110 = sadd.s32 %s109, 1
    %s111 = scalar_select %p108, %s109, %s110
    %p114 = pneg %p108
    %p115 = scmp.eq.s32.totalorder %s10, 1
    %p116 = por %p114, %p115
    %p117 = scmp.ne.s32.totalorder %s109, %s112
    %p118 = scmp.eq.s32.totalorder %s10, 0
    %p119 = por %p117, %p118
    %p120 = scmp.ne.s32.totalorder %s109, %s112
    %p121 = scmp.eq.s32.totalorder %s15, 1
    %p122 = por %p120, %p121
    %p123 = scmp.ne.s32.totalorder %s112, %s113
    %p124 = scmp.eq.s32.totalorder %s15, 0
    %p125 = por %p123, %p124
    %p126 = scmp.ne.s32.totalorder %s112, %s113
    %p127 = scmp.eq.s32.totalorder %s16, 1
    %p128 = por %p126, %p127
    %p130 = scmp.ne.s32.totalorder %s113, %s129
    %p131 = scmp.eq.s32.totalorder %s16, 0
    %p132 = por %p130, %p131
    %p133 = scmp.le.s32.totalorder 1, %s10
    %p134 = scmp.lt.s32.totalorder %s10, 3
    %p135 = pnand %p133, %p134
    %p136 = pneg %p135
    // Predicated region
    $region9: #{resblk_forward.5} parent=5 // pred_check
      _
    $region10: #{resblk_forward.5} parent=5 // pred_check_branch
      %138 = sbr.rel (%p135) target = $region12
    $region11: #{resblk_forward.5} parent=5 // pred_region
      %s139 = ssub.s32 %s10, 1
      // Predicated region
      $region13: #{resblk_forward.5} parent=11 // pred_check
        %p140 = pneg %p57
      $region14: #{resblk_forward.5} parent=11 // pred_check_branch
        %142 = sbr.rel (%p140) target = $region16
      $region15: #{resblk_forward.5} parent=11 // pred_region
        _
      $region16: #{resblk_forward.5} parent=11 // pred_fallthru
        _
      // Predicated region
      $region17: #{resblk_forward.5} parent=11 // pred_check
        %p143 = pneg %p78
      $region18: #{resblk_forward.5} parent=11 // pred_check_branch
        %145 = sbr.rel (%p143) target = $region20
      $region19: #{resblk_forward.5} parent=11 // pred_region
        _
      $region20: #{resblk_forward.5} parent=11 // pred_fallthru
        _
      // Predicated region
      $region21: #{resblk_forward.5} parent=11 // pred_check
        %p146 = pneg %p99
      $region22: #{resblk_forward.5} parent=11 // pred_check_branch
        %148 = sbr.rel (%p146) target = $region24
      $region23: #{resblk_forward.5} parent=11 // pred_region
        _
      $region24: #{resblk_forward.5} parent=11 // pred_fallthru
        _
    $region12: #{resblk_forward.5} parent=5 // pred_fallthru
      _
    %p149 = scmp.lt.s32.totalorder %s10, 2
    // Predicated region
    $region25: #{resblk_forward.5} parent=5 // pred_check
      %p150 = pneg %p149
    $region26: #{resblk_forward.5} parent=5 // pred_check_branch
      %152 = sbr.rel (%p150) target = $region28
    $region27: #{resblk_forward.5} parent=5 // pred_region
      // Predicated region
      $region29: #{resblk_forward.5} parent=27 // pred_check
        %p153 = pneg %p30
      $region30: #{resblk_forward.5} parent=27 // pred_check_branch
        %155 = sbr.rel (%p153) target = $region32
      $region31: #{resblk_forward.5} parent=27 // pred_region
        %p156 = scmp.lt.s32.totalorder %s10, 1
        %s157 = scalar_select %p156, %s10, 1
        %s158 = smul.addr %s157, 8
        %s159 = smul.addr %s158, 4
        %s160 = scalar_lea.vmem %s0, %s159
      $region32: #{resblk_forward.5} parent=27 // pred_fallthru
        _
    $region28: #{resblk_forward.5} parent=5 // pred_fallthru
      _
    %p161 = scmp.le.s32.totalorder 1, %s10
    %p162 = scmp.lt.s32.totalorder %s10, 3
    %p163 = pnand %p161, %p162
    %p164 = pneg %p163
    // Predicated region
    $region33: #{resblk_forward.5} parent=5 // pred_check
      _
    $region34: #{resblk_forward.5} parent=5 // pred_check_branch
      %166 = sbr.rel (%p163) target = $region36
    $region35: #{resblk_forward.5} parent=5 // pred_region
      %s167 = ssub.s32 %s10, 1
      %p168 = scmp.lt.s32.totalorder %s15, 1
      %s169 = scalar_select %p168, %s15, 1
      %s170 = smul.addr %s169, 8
      %s171 = smul.addr %s170, 4
      %s172 = scalar_lea.vmem %s0, %s171
      %p173 = pneg %p36
      %p174 = pneg %p33
      %p175 = pneg %p57
      %p176 = pneg %p54
      %p177 = pneg %p78
      %p178 = pneg %p75
      %p179 = pneg %p99
      %p180 = pneg %p96
      %p181 = pneg %p125
      %p182 = pneg %p122
      %p183 = scmp.lt.s32.totalorder %s15, 1
      %s184 = scalar_select %p183, %s15, 1
      %s185 = smul.addr %s184, 8
      %s186 = smul.addr %s185, 4
      %s187 = scalar_lea.vmem %s4, %s186
      %p188 = scmp.lt.s32.totalorder %s15, 1
      %s189 = scalar_select %p188, %s15, 1
      %s190 = smul.addr %s189, 8
      %s191 = smul.addr %s190, 4
      %s192 = scalar_lea.vmem %s0, %s191
      %p193 = scmp.lt.s32.totalorder %s15, 1
      %s194 = scalar_select %p193, %s15, 1
      %s195 = smul.addr %s194, 8
      %s196 = smul.addr %s195, 4
      %s197 = scalar_lea.vmem %s4, %s196
      %v198 = vld [vmem:[%s1] sm:$0x3]
      %v199 = vld [vmem:[%s1 + $0x2] sm:$0x3]
      %v200 = vld [vmem:[%s2] sm:$0x1]
      %v201 = vld [vmem:[%s3] sm:$0x1]
      %vm202 = vcmask 1041408
      %v203 = vsel %vm202, %v198, 0.0
      %v204 = vsel %vm202, %v199, 0.0
      %v205 = vadd.f32 %v203, %v204
      %v206 = vmul.f32 %v205, 0.0078125
      %v207 = vmul.f32 %v206, %v206
      %v209 = vrot.slane %v207, 7
      %v211 = vsub.f32 %v206, %v209
      %v212 = vadd.f32 %v211, 1e-05
      %v213 = vrsqrt.pop %v212
      %v216 = vunpack.c.l.s4 1966171168
      %v217 = vunpack.c.0.s8 %v216
      %v218 = vlaneseq
      %v219 = vshrl.u32 %v218, 7
      %v220 = vsub.s32 %v217, %v219
      %v221 = vrot.slane %v213, %v220
      %v222 = vcombine.high %v221, %v221
      %v224 = vunpack.c.l.s4 1966171168
      %v225 = vunpack.c.0.s8 %v224
      %v226 = vlaneseq
      %v227 = vshrl.u32 %v226, 7
      %v228 = vsub.s32 %v225, %v227
      %v229 = vrot.slane %v222, %v228
      %v231 = vmul.f32 %v200, %v229
      %v232 = vmul.f32 %v206, %v231
      %v233 = vsub.f32 %v201, %v232
      %v234 = vld [vmem:[%s192] sm:$0xf]
      %v235 = vld [vmem:[%s192 + $0x4] sm:$0xf]
      %v236 = vld [vmem:[%s192 + $0x8] sm:$0xf]
      %v237 = vld [vmem:[%s192 + $0xc] sm:$0xf]
      %v238 = vld [vmem:[%s192 + $0x10] sm:$0xf]
      %v239 = vld [vmem:[%s192 + $0x14] sm:$0xf]
      %v240 = vld [vmem:[%s192 + $0x18] sm:$0xf]
      %v241 = vld [vmem:[%s192 + $0x1c] sm:$0xf]
      %v242 = vunpack.c.l.bf16 %v234
      %v243 = vunpack.c.l.bf16 %v235
      %v244 = vunpack.c.l.bf16 %v236
      %v245 = vunpack.c.l.bf16 %v237
      %v246 = vunpack.c.l.bf16 %v238
      %v247 = vunpack.c.l.bf16 %v239
      %v248 = vunpack.c.l.bf16 %v240
      %v249 = vunpack.c.l.bf16 %v241
      %v251 = vlaneseq
      %v252 = vshrl.u32 %v251, 7
      %v253 = vsub.s32 0, %v252
      %v254 = vrot.slane %v231, %v253
      %v256 = vmul.f32 %v242, %v254
      %v257 = vmul.f32 %v243, %v254
      %v258 = vmul.f32 %v244, %v254
      %v259 = vmul.f32 %v245, %v254
      %v260 = vmul.f32 %v246, %v254
      %v261 = vmul.f32 %v247, %v254
      %v262 = vmul.f32 %v248, %v254
      %v263 = vmul.f32 %v249, %v254
      %v265 = vlaneseq
      %v266 = vshrl.u32 %v265, 7
      %v267 = vsub.s32 0, %v266
      %v268 = vrot.slane %v233, %v267
      %v270 = vadd.f32 %v256, %v268
      %v271 = vadd.f32 %v257, %v268
      %v272 = vadd.f32 %v258, %v268
      %v273 = vadd.f32 %v259, %v268
      %v274 = vadd.f32 %v260, %v268
      %v275 = vadd.f32 %v261, %v268
      %v276 = vadd.f32 %v262, %v268
      %v277 = vadd.f32 %v263, %v268
      %v278 = vmax.f32 %v270, 0.0
      %v279 = vmax.f32 %v271, 0.0
      %v280 = vmax.f32 %v272, 0.0
      %v281 = vmax.f32 %v273, 0.0
      %v282 = vmax.f32 %v274, 0.0
      %v283 = vmax.f32 %v275, 0.0
      %v284 = vmax.f32 %v276, 0.0
      %v285 = vmax.f32 %v277, 0.0
      %v286 = vpack.c.bf16 %v279, %v278
      %v287 = vpack.c.bf16 %v281, %v280
      %v288 = vpack.c.bf16 %v283, %v282
      %v289 = vpack.c.bf16 %v285, %v284
      %v294 = vunpack.c.l.b16 %v286
      %v295 = vunpack.c.h.b16 %v286
      %v296 = vunpack.c.l.b16 %v287
      %v297 = vunpack.c.h.b16 %v287
      %v298 = vunpack.c.l.b16 %v288
      %v299 = vunpack.c.h.b16 %v288
      %v300 = vunpack.c.l.b16 %v289
      %v301 = vunpack.c.h.b16 %v289
      %v302 = vpack.c.b16 %v294, %v294
      %v303 = vpack.c.b16 %v295, %v295
      %v304 = vpack.c.b16 %v296, %v296
      %v305 = vpack.c.b16 %v297, %v297
      %v306 = vpack.c.b16 %v298, %v298
      %v307 = vpack.c.b16 %v299, %v299
      %v308 = vpack.c.b16 %v300, %v300
      %v309 = vpack.c.b16 %v301, %v301
      %318 = vst [vmem:[%s197] sm:$0xf] %v302
      %319 = vst [vmem:[%s197 + $0x4] sm:$0xf] %v303
      %320 = vst [vmem:[%s197 + $0x8] sm:$0xf] %v304
      %321 = vst [vmem:[%s197 + $0xc] sm:$0xf] %v305
      %322 = vst [vmem:[%s197 + $0x10] sm:$0xf] %v306
      %323 = vst [vmem:[%s197 + $0x14] sm:$0xf] %v307
      %324 = vst [vmem:[%s197 + $0x18] sm:$0xf] %v308
      %325 = vst [vmem:[%s197 + $0x1c] sm:$0xf] %v309
      %p326 = scmp.lt.s32.totalorder %s15, 1
      %s327 = scalar_select %p326, %s15, 1
      %s328 = smul.addr %s327, 8
      %s329 = smul.addr %s328, 4
      %s330 = scalar_lea.vmem %s4, %s329
      // Predicated region
      $region37: #{resblk_forward.5} parent=35 // pred_check
        %p331 = pneg %p122
      $region38: #{resblk_forward.5} parent=35 // pred_check_branch
        %333 = sbr.rel (%p331) target = $region40
      $region39: #{resblk_forward.5} parent=35 // pred_region
        _
      $region40: #{resblk_forward.5} parent=35 // pred_fallthru
        _
    $region36: #{resblk_forward.5} parent=5 // pred_fallthru
      _
    %p334 = scmp.le.s32.totalorder 2, %s10
    // Predicated region
    $region41: #{resblk_forward.5} parent=5 // pred_check
      %p335 = pneg %p334
    $region42: #{resblk_forward.5} parent=5 // pred_check_branch
      %337 = sbr.rel (%p335) target = $region44
    $region43: #{resblk_forward.5} parent=5 // pred_region
      %s338 = ssub.s32 %s10, 2
      // Predicated region
      $region45: #{resblk_forward.5} parent=43 // pred_check
        %p339 = pneg %p128
      $region46: #{resblk_forward.5} parent=43 // pred_check_branch
        %341 = sbr.rel (%p339) target = $region48
      $region47: #{resblk_forward.5} parent=43 // pred_region
        %p342 = scmp.lt.s32.totalorder %s16, 1
        %s343 = scalar_select %p342, %s16, 1
        %s344 = smul.addr %s343, 8
        %s345 = smul.addr %s344, 4
        %s346 = scalar_lea.vmem %s4, %s345
      $region48: #{resblk_forward.5} parent=43 // pred_fallthru
        _
    $region44: #{resblk_forward.5} parent=5 // pred_fallthru
      _
  $region6: #{resblk_forward.5} parent=0 // loop_footer
    %s14 = sadd.s32 1, %s10
  $region7: #{resblk_forward.5} parent=0 // loop_footer_branch
    %9 = sbr.rel target = $region3
  $region8: #{resblk_forward.5} parent=0 // loop_exit
    _

// kernel: resblk_forward.4
$region0: #{resblk_forward.4}
  #allocation0 [shape = 'u32[]', space=smem, size = 0x4, offset = 0x4, fixed_abs, tag = 'smem constant byte address 0x4 - core index']
  #allocation1 [shape = 'u32[144,128]{1,0:T(1,128)}', space=vmem, size = 0x12000, scoped, tag = 'internal scratch']
  %s0 = inlined_call_operand.vmem [shape: bf16[8,10,10,4], index: 0, kind: input, shape index: {}]
  %s1 = inlined_call_operand.vmem [shape: bf16[9,4,128], index: 1, kind: input, shape index: {}]
  %s2 = inlined_call_operand.vmem [shape: f32[1,128], index: 2, kind: input, shape index: {}]
  %s3 = inlined_call_operand.vmem [shape: bf16[4,128], index: 3, kind: input, shape index: {}]
  %s4 = inlined_call_operand.vmem [shape: f32[1,128], index: 4, kind: input, shape index: {}]
  %s5 = inlined_call_operand.vmem [shape: bf16[2,8,8,128], index: 5, kind: output, shape index: {0}]
  %s6 = inlined_call_operand.vmem [shape: f32[2,2,128], index: 6, kind: output, shape index: {1}]
  %s7 = inlined_call_operand.vmem [shape: bf16[2,8,8,128], index: 7, kind: output, shape index: {2}]
  %s8 = inlined_call_operand.vmem [shape: f32[2,2,128], index: 8, kind: output, shape index: {3}]
  %9 = xla_tuple %s5, %s6, %s7, %s8
  %s10 = sld [smem:[#allocation0]]
  $region77: #{resblk_forward.4} parent=0
    _
  %s12 = ssub.s32 1, %s10
  %s13 = scalar_select 0, %s12, %s10
  loop: start=0, step=1, limit=4
  $region2: #{resblk_forward.4} parent=0 // loop_pre_header
    _
  $region3: #{resblk_forward.4} parent=0 // loop_header
    %s15 = sphi 0, %s19
    %p16 = scmp.ge.s32.totalorder %s15, 4
    %s25 = sphi 0, %s27
    %s28 = sphi 0, %s25
    %s29 = sphi 0, %s28
    %s45 = sphi 0, %s29
    %s49 = sphi 0, %s49
    %s51 = sphi 0, %s49
    %s52 = sphi 0, %s51
    %s66 = sphi 0, %s52
    %s70 = sphi 0, %s70
    %s72 = sphi 0, %s70
    %s73 = sphi 0, %s72
    %s87 = sphi 0, %s73
    %s91 = sphi 0, %s91
    %s93 = sphi 0, %s91
    %s94 = sphi 0, %s93
    %s108 = sphi 0, %s94
    %s112 = sphi 0, %s112
    %s114 = sphi 0, %s112
    %s115 = sphi 0, %s114
    %s129 = sphi 0, %s115
    %s135 = sphi 0, %s137
    %s138 = sphi 0, %s135
    %s139 = sphi 0, %s138
    %s155 = sphi 0, %s139
    %s161 = sphi 0, %s163
    %s164 = sphi 0, %s161
    %s165 = sphi 0, %s164
    %s181 = sphi 0, %s165
    %s187 = sphi 0, %s189
    %s190 = sphi 0, %s187
    %s191 = sphi 0, %s190
    %s207 = sphi 0, %s191
    %s213 = sphi 0, %s215
    %s216 = sphi 0, %s213
    %s217 = sphi 0, %s216
    %s233 = sphi 0, %s217
  $region4: #{resblk_forward.4} parent=0 // loop_header_branch
    %18 = sbr.rel (%p16) target = $region8
  $region5: #{resblk_forward.4} parent=0 // loop_body
    %s20 = ssub.s32 %s15, 1
    %s21 = ssub.s32 %s15, 2
    %s22 = sadd.s32 %s15, 1
    %s23 = ssub.s32 %s15, %s22
    %p24 = scmp.eq.s32.totalorder %s23, 0
    %s26 = sadd.s32 %s25, 1
    %s27 = scalar_select %p24, %s25, %s26
    %p30 = pneg %p24
    %p31 = scmp.eq.s32.totalorder %s15, 1
    %p32 = por %p30, %p31
    %p33 = scmp.ne.s32.totalorder %s25, %s28
    %p34 = scmp.eq.s32.totalorder %s15, 0
    %p35 = por %p33, %p34
    %p36 = scmp.ne.s32.totalorder %s25, %s28
    %p37 = scmp.eq.s32.totalorder %s20, 1
    %p38 = por %p36, %p37
    %p39 = scmp.ne.s32.totalorder %s28, %s29
    %p40 = scmp.eq.s32.totalorder %s20, 0
    %p41 = por %p39, %p40
    %p42 = scmp.ne.s32.totalorder %s28, %s29
    %p43 = scmp.eq.s32.totalorder %s21, 1
    %p44 = por %p42, %p43
    %p46 = scmp.ne.s32.totalorder %s29, %s45
    %p47 = scmp.eq.s32.totalorder %s21, 0
    %p48 = por %p46, %p47
    %s50 = sadd.s32 %s49, 1
    %p53 = scmp.eq.s32.totalorder %s15, 1
    %p54 = scmp.ne.s32.totalorder %s49, %s51
    %p55 = scmp.eq.s32.totalorder %s15, 0
    %p56 = por %p54, %p55
    %p57 = scmp.ne.s32.totalorder %s49, %s51
    %p58 = scmp.eq.s32.totalorder %s20, 1
    %p59 = por %p57, %p58
    %p60 = scmp.ne.s32.totalorder %s51, %s52
    %p61 = scmp.eq.s32.totalorder %s20, 0
    %p62 = por %p60, %p61
    %p63 = scmp.ne.s32.totalorder %s51, %s52
    %p64 = scmp.eq.s32.totalorder %s21, 1
    %p65 = por %p63, %p64
    %p67 = scmp.ne.s32.totalorder %s52, %s66
    %p68 = scmp.eq.s32.totalorder %s21, 0
    %p69 = por %p67, %p68
    %s71 = sadd.s32 %s70, 1
    %p74 = scmp.eq.s32.totalorder %s15, 1
    %p75 = scmp.ne.s32.totalorder %s70, %s72
    %p76 = scmp.eq.s32.totalorder %s15, 0
    %p77 = por %p75, %p76
    %p78 = scmp.ne.s32.totalorder %s70, %s72
    %p79 = scmp.eq.s32.totalorder %s20, 1
    %p80 = por %p78, %p79
    %p81 = scmp.ne.s32.totalorder %s72, %s73
    %p82 = scmp.eq.s32.totalorder %s20, 0
    %p83 = por %p81, %p82
    %p84 = scmp.ne.s32.totalorder %s72, %s73
    %p85 = scmp.eq.s32.totalorder %s21, 1
    %p86 = por %p84, %p85
    %p88 = scmp.ne.s32.totalorder %s73, %s87
    %p89 = scmp.eq.s32.totalorder %s21, 0
    %p90 = por %p88, %p89
    %s92 = sadd.s32 %s91, 1
    %p95 = scmp.eq.s32.totalorder %s15, 1
    %p96 = scmp.ne.s32.totalorder %s91, %s93
    %p97 = scmp.eq.s32.totalorder %s15, 0
    %p98 = por %p96, %p97
    %p99 = scmp.ne.s32.totalorder %s91, %s93
    %p100 = scmp.eq.s32.totalorder %s20, 1
    %p101 = por %p99, %p100
    %p102 = scmp.ne.s32.totalorder %s93, %s94
    %p103 = scmp.eq.s32.totalorder %s20, 0
    %p104 = por %p102, %p103
    %p105 = scmp.ne.s32.totalorder %s93, %s94
    %p106 = scmp.eq.s32.totalorder %s21, 1
    %p107 = por %p105, %p106
    %p109 = scmp.ne.s32.totalorder %s94, %s108
    %p110 = scmp.eq.s32.totalorder %s21, 0
    %p111 = por %p109, %p110
    %s113 = sadd.s32 %s112, 1
    %p116 = scmp.eq.s32.totalorder %s15, 1
    %p117 = scmp.ne.s32.totalorder %s112, %s114
    %p118 = scmp.eq.s32.totalorder %s15, 0
    %p119 = por %p117, %p118
    %p120 = scmp.ne.s32.totalorder %s112, %s114
    %p121 = scmp.eq.s32.totalorder %s20, 1
    %p122 = por %p120, %p121
    %p123 = scmp.ne.s32.totalorder %s114, %s115
    %p124 = scmp.eq.s32.totalorder %s20, 0
    %p125 = por %p123, %p124
    %p126 = scmp.ne.s32.totalorder %s114, %s115
    %p127 = scmp.eq.s32.totalorder %s21, 1
    %p128 = por %p126, %p127
    %p130 = scmp.ne.s32.totalorder %s115, %s129
    %p131 = scmp.eq.s32.totalorder %s21, 0
    %p132 = por %p130, %p131
    %s133 = ssub.s32 %s15, %s22
    %p134 = scmp.eq.s32.totalorder %s133, 0
    %s136 = sadd.s32 %s135, 1
    %s137 = scalar_select %p134, %s135, %s136
    %p140 = pneg %p134
    %p141 = scmp.eq.s32.totalorder %s15, 1
    %p142 = por %p140, %p141
    %p143 = scmp.ne.s32.totalorder %s135, %s138
    %p144 = scmp.eq.s32.totalorder %s15, 0
    %p145 = por %p143, %p144
    %p146 = scmp.ne.s32.totalorder %s135, %s138
    %p147 = scmp.eq.s32.totalorder %s20, 1
    %p148 = por %p146, %p147
    %p149 = scmp.ne.s32.totalorder %s138, %s139
    %p150 = scmp.eq.s32.totalorder %s20, 0
    %p151 = por %p149, %p150
    %p152 = scmp.ne.s32.totalorder %s138, %s139
    %p153 = scmp.eq.s32.totalorder %s21, 1
    %p154 = por %p152, %p153
    %p156 = scmp.ne.s32.totalorder %s139, %s155
    %p157 = scmp.eq.s32.totalorder %s21, 0
    %p158 = por %p156, %p157
    %s159 = ssub.s32 %s15, %s22
    %p160 = scmp.eq.s32.totalorder %s159, 0
    %s162 = sadd.s32 %s161, 1
    %s163 = scalar_select %p160, %s161, %s162
    %p166 = pneg %p160
    %p167 = scmp.eq.s32.totalorder %s15, 1
    %p168 = por %p166, %p167
    %p169 = scmp.ne.s32.totalorder %s161, %s164
    %p170 = scmp.eq.s32.totalorder %s15, 0
    %p171 = por %p169, %p170
    %p172 = scmp.ne.s32.totalorder %s161, %s164
    %p173 = scmp.eq.s32.totalorder %s20, 1
    %p174 = por %p172, %p173
    %p175 = scmp.ne.s32.totalorder %s164, %s165
    %p176 = scmp.eq.s32.totalorder %s20, 0
    %p177 = por %p175, %p176
    %p178 = scmp.ne.s32.totalorder %s164, %s165
    %p179 = scmp.eq.s32.totalorder %s21, 1
    %p180 = por %p178, %p179
    %p182 = scmp.ne.s32.totalorder %s165, %s181
    %p183 = scmp.eq.s32.totalorder %s21, 0
    %p184 = por %p182, %p183
    %s185 = ssub.s32 %s15, %s22
    %p186 = scmp.eq.s32.totalorder %s185, 0
    %s188 = sadd.s32 %s187, 1
    %s189 = scalar_select %p186, %s187, %s188
    %p192 = pneg %p186
    %p193 = scmp.eq.s32.totalorder %s15, 1
    %p194 = por %p192, %p193
    %p195 = scmp.ne.s32.totalorder %s187, %s190
    %p196 = scmp.eq.s32.totalorder %s15, 0
    %p197 = por %p195, %p196
    %p198 = scmp.ne.s32.totalorder %s187, %s190
    %p199 = scmp.eq.s32.totalorder %s20, 1
    %p200 = por %p198, %p199
    %p201 = scmp.ne.s32.totalorder %s190, %s191
    %p202 = scmp.eq.s32.totalorder %s20, 0
    %p203 = por %p201, %p202
    %p204 = scmp.ne.s32.totalorder %s190, %s191
    %p205 = scmp.eq.s32.totalorder %s21, 1
    %p206 = por %p204, %p205
    %p208 = scmp.ne.s32.totalorder %s191, %s207
    %p209 = scmp.eq.s32.totalorder %s21, 0
    %p210 = por %p208, %p209
    %s211 = ssub.s32 %s15, %s22
    %p212 = scmp.eq.s32.totalorder %s211, 0
    %s214 = sadd.s32 %s213, 1
    %s215 = scalar_select %p212, %s213, %s214
    %p218 = pneg %p212
    %p219 = scmp.eq.s32.totalorder %s15, 1
    %p220 = por %p218, %p219
    %p221 = scmp.ne.s32.totalorder %s213, %s216
    %p222 = scmp.eq.s32.totalorder %s15, 0
    %p223 = por %p221, %p222
    %p224 = scmp.ne.s32.totalorder %s213, %s216
    %p225 = scmp.eq.s32.totalorder %s20, 1
    %p226 = por %p224, %p225
    %p227 = scmp.ne.s32.totalorder %s216, %s217
    %p228 = scmp.eq.s32.totalorder %s20, 0
    %p229 = por %p227, %p228
    %p230 = scmp.ne.s32.totalorder %s216, %s217
    %p231 = scmp.eq.s32.totalorder %s21, 1
    %p232 = por %p230, %p231
    %p234 = scmp.ne.s32.totalorder %s217, %s233
    %p235 = scmp.eq.s32.totalorder %s21, 0
    %p236 = por %p234, %p235
    %p237 = scmp.le.s32.totalorder 1, %s15
    %p238 = scmp.lt.s32.totalorder %s15, 3
    %p239 = pnand %p237, %p238
    %p240 = pneg %p239
    // Predicated region
    $region9: #{resblk_forward.4} parent=5 // pred_check
      _
    $region10: #{resblk_forward.4} parent=5 // pred_check_branch
      %242 = sbr.rel (%p239) target = $region12
    $region11: #{resblk_forward.4} parent=5 // pred_region
      %s243 = ssub.s32 %s15, 1
      // Predicated region
      $region13: #{resblk_forward.4} parent=11 // pred_check
        %p244 = pneg %p62
      $region14: #{resblk_forward.4} parent=11 // pred_check_branch
        %246 = sbr.rel (%p244) target = $region16
      $region15: #{resblk_forward.4} parent=11 // pred_region
        _
      $region16: #{resblk_forward.4} parent=11 // pred_fallthru
        _
      // Predicated region
      $region17: #{resblk_forward.4} parent=11 // pred_check
        %p247 = pneg %p83
      $region18: #{resblk_forward.4} parent=11 // pred_check_branch
        %249 = sbr.rel (%p247) target = $region20
      $region19: #{resblk_forward.4} parent=11 // pred_region
        _
      $region20: #{resblk_forward.4} parent=11 // pred_fallthru
        _
      // Predicated region
      $region21: #{resblk_forward.4} parent=11 // pred_check
        %p250 = pneg %p104
      $region22: #{resblk_forward.4} parent=11 // pred_check_branch
        %252 = sbr.rel (%p250) target = $region24
      $region23: #{resblk_forward.4} parent=11 // pred_region
        _
      $region24: #{resblk_forward.4} parent=11 // pred_fallthru
        _
      // Predicated region
      $region25: #{resblk_forward.4} parent=11 // pred_check
        %p253 = pneg %p125
      $region26: #{resblk_forward.4} parent=11 // pred_check_branch
        %255 = sbr.rel (%p253) target = $region28
      $region27: #{resblk_forward.4} parent=11 // pred_region
        _
      $region28: #{resblk_forward.4} parent=11 // pred_fallthru
        _
    $region12: #{resblk_forward.4} parent=5 // pred_fallthru
      _
    %p256 = scmp.lt.s32.totalorder %s15, 2
    // Predicated region
    $region29: #{resblk_forward.4} parent=5 // pred_check
      %p257 = pneg %p256
    $region30: #{resblk_forward.4} parent=5 // pred_check_branch
      %259 = sbr.rel (%p257) target = $region32
    $region31: #{resblk_forward.4} parent=5 // pred_region
      // Predicated region
      $region33: #{resblk_forward.4} parent=31 // pred_check
        %p260 = pneg %p35
      $region34: #{resblk_forward.4} parent=31 // pred_check_branch
        %262 = sbr.rel (%p260) target = $region36
      $region35: #{resblk_forward.4} parent=31 // pred_region
        %s263 = smul.u32 4, %s15
        %p264 = scmp.lt.s32.totalorder %s263, 7
        %s265 = scalar_select %p264, %s263, 7
        %s266 = smul.addr %s265, 20
        %s267 = smul.addr %s266, 4
        %s268 = scalar_lea.vmem %s0, %s267
        %s269 = smul.u32 4, %s15
      $region36: #{resblk_forward.4} parent=31 // pred_fallthru
        _
    $region32: #{resblk_forward.4} parent=5 // pred_fallthru
      _
    %p270 = scmp.le.s32.totalorder 1, %s15
    %p271 = scmp.lt.s32.totalorder %s15, 3
    %p272 = pnand %p270, %p271
    %p273 = pneg %p272
    // Predicated region
    $region37: #{resblk_forward.4} parent=5 // pred_check
      _
    $region38: #{resblk_forward.4} parent=5 // pred_check_branch
      %275 = sbr.rel (%p272) target = $region40
    $region39: #{resblk_forward.4} parent=5 // pred_region
      %s276 = ssub.s32 %s15, 1
      %s277 = smul.u32 4, %s20
      %p278 = scmp.lt.s32.totalorder %s277, 7
      %s279 = scalar_select %p278, %s277, 7
      %s280 = smul.addr %s279, 20
      %s281 = smul.addr %s280, 4
      %s282 = scalar_lea.vmem %s0, %s281
      %p283 = pneg %p41
      %p284 = pneg %p38
      %p285 = pneg %p62
      %p286 = pneg %p59
      %p287 = pneg %p83
      %p288 = pneg %p80
      %p289 = pneg %p104
      %p290 = pneg %p101
      %p291 = pneg %p125
      %p292 = pneg %p122
      %p293 = pneg %p151
      %p294 = pneg %p148
      %p295 = scmp.lt.s32.totalorder %s20, 1
      %s296 = scalar_select %p295, %s20, 1
      %s297 = smul.addr %s296, 8
      %s298 = smul.addr %s297, 4
      %s299 = scalar_lea.vmem %s5, %s298
      %p300 = pneg %p177
      %p301 = pneg %p174
      %p302 = scmp.lt.s32.totalorder %s20, 1
      %s303 = scalar_select %p302, %s20, 1
      %s304 = smul.addr %s303, 2
      %s305 = scalar_lea.vmem %s6, %s304
      %p306 = pneg %p203
      %p307 = pneg %p200
      %p308 = scmp.lt.s32.totalorder %s20, 1
      %s309 = scalar_select %p308, %s20, 1
      %s310 = smul.addr %s309, 8
      %s311 = smul.addr %s310, 4
      %s312 = scalar_lea.vmem %s7, %s311
      %p313 = pneg %p229
      %p314 = pneg %p226
      %p315 = scmp.lt.s32.totalorder %s20, 1
      %s316 = scalar_select %p315, %s20, 1
      %s317 = smul.addr %s316, 2
      %s318 = scalar_lea.vmem %s8, %s317
      %s319 = smul.u32 4, %s20
      %p320 = scmp.lt.s32.totalorder %s319, 7
      %s321 = scalar_select %p320, %s319, 7
      %s322 = smul.addr %s321, 20
      %s323 = smul.addr %s322, 4
      %s324 = scalar_lea.vmem %s0, %s323
      %s325 = smul.u32 4, %s20
      %p326 = scmp.lt.s32.totalorder %s20, 1
      %s327 = scalar_select %p326, %s20, 1
      %s328 = smul.addr %s327, 8
      %s329 = smul.addr %s328, 4
      %s330 = scalar_lea.vmem %s5, %s329
      %p331 = scmp.lt.s32.totalorder %s20, 1
      %s332 = scalar_select %p331, %s20, 1
      %s333 = smul.addr %s332, 2
      %s334 = scalar_lea.vmem %s6, %s333
      %p335 = scmp.lt.s32.totalorder %s20, 1
      %s336 = scalar_select %p335, %s20, 1
      %s337 = smul.addr %s336, 8
      %s338 = smul.addr %s337, 4
      %s339 = scalar_lea.vmem %s7, %s338
      %p340 = scmp.lt.s32.totalorder %s20, 1
      %s341 = scalar_select %p340, %s20, 1
      %s342 = smul.addr %s341, 2
      %s343 = scalar_lea.vmem %s8, %s342
      %v345 = vld [vmem:[%s324] sm:$0xf]
      %v346 = vld [vmem:[%s324 + $0x4] sm:$0x1]
      %v347 = vld [vmem:[%s324 + $0x8] sm:$0xf]
      %v348 = vld [vmem:[%s324 + $0xc] sm:$0x1]
      %v349 = vld [vmem:[%s324 + $0x10] sm:$0xf]
      %v350 = vld [vmem:[%s324 + $0x14] sm:$0x1]
      %v351 = vld [vmem:[%s324 + $0x18] sm:$0xf]
      %v352 = vld [vmem:[%s324 + $0x1c] sm:$0x1]
      %v353 = vld [vmem:[%s324 + $0x20] sm:$0xf]
      %v354 = vld [vmem:[%s324 + $0x24] sm:$0x1]
      %v355 = vld [vmem:[%s324 + $0x28] sm:$0xf]
      %v356 = vld [vmem:[%s324 + $0x2c] sm:$0x1]
      %v357 = vld [vmem:[%s324 + $0x30] sm:$0xf]
      %v358 = vld [vmem:[%s324 + $0x34] sm:$0x1]
      %v359 = vld [vmem:[%s324 + $0x38] sm:$0xf]
      %v360 = vld [vmem:[%s324 + $0x3c] sm:$0x1]
      %v361 = vld [vmem:[%s324 + $0x40] sm:$0xf]
      %v362 = vld [vmem:[%s324 + $0x44] sm:$0x1]
      %v363 = vld [vmem:[%s324 + $0x50] sm:$0xf]
      %v364 = vld [vmem:[%s324 + $0x58] sm:$0xf]
      %v365 = vld [vmem:[%s324 + $0x60] sm:$0xf]
      %v366 = vld [vmem:[%s324 + $0x68] sm:$0xf]
      %v367 = vld [vmem:[%s324 + $0x70] sm:$0xf]
      %v368 = vld [vmem:[%s324 + $0x78] sm:$0xf]
      %v369 = vld [vmem:[%s324 + $0x80] sm:$0xf]
      %v370 = vld [vmem:[%s324 + $0x88] sm:$0xf]
      %v371 = vld [vmem:[%s324 + $0x90] sm:$0xf]
      %v372 = vld [vmem:[%s324 + $0xa0] sm:$0xf]
      %v373 = vld [vmem:[%s324 + $0xa4] sm:$0x1]
      %v374 = vld [vmem:[%s324 + $0xa8] sm:$0xf]
      %v375 = vld [vmem:[%s324 + $0xac] sm:$0x1]
      %v376 = vld [vmem:[%s324 + $0xb0] sm:$0xf]
      %v377 = vld [vmem:[%s324 + $0xb4] sm:$0x1]
      %v378 = vld [vmem:[%s324 + $0xb8] sm:$0xf]
      %v379 = vld [vmem:[%s324 + $0xbc] sm:$0x1]
      %v380 = vld [vmem:[%s324 + $0xc0] sm:$0xf]
      %v381 = vld [vmem:[%s324 + $0xc4] sm:$0x1]
      %v382 = vld [vmem:[%s324 + $0xc8] sm:$0xf]
      %v383 = vld [vmem:[%s324 + $0xcc] sm:$0x1]
      %v384 = vld [vmem:[%s324 + $0xd0] sm:$0xf]
      %v385 = vld [vmem:[%s324 + $0xd4] sm:$0x1]
      %v386 = vld [vmem:[%s324 + $0xd8] sm:$0xf]
      %v387 = vld [vmem:[%s324 + $0xdc] sm:$0x1]
      %v388 = vld [vmem:[%s324 + $0xf0] sm:$0xf]
      %v389 = vld [vmem:[%s324 + $0xf8] sm:$0xf]
      %v390 = vld [vmem:[%s324 + $0x100] sm:$0xf]
      %v391 = vld [vmem:[%s324 + $0x108] sm:$0xf]
      %v392 = vld [vmem:[%s324 + $0x110] sm:$0xf]
      %v393 = vld [vmem:[%s324 + $0x118] sm:$0xf]
      %v394 = vld [vmem:[%s324 + $0x120] sm:$0xf]
      %v395 = vld [vmem:[%s324 + $0x128] sm:$0xf]
      %v396 = vld [vmem:[%s1] sm:$0x3]
      %s397 = scalar_lea.vmem %s1, 2
      %v398 = vld [vmem:[%s397] sm:$0x3]
      %v407 = vunpack.c.l.b16 %v363
      %v408 = vunpack.c.l.b16 %v364
      %v409 = vunpack.c.l.b16 %v365
      %v410 = vunpack.c.l.b16 %v366
      %v411 = vunpack.c.l.b16 %v367
      %v412 = vunpack.c.l.b16 %v368
      %v413 = vunpack.c.l.b16 %v369
      %v414 = vunpack.c.l.b16 %v370
      %v415 = vpack.c.b16 %v408, %v407
      %v416 = vpack.c.b16 %v410, %v409
      %v417 = vpack.c.b16 %v412, %v411
      %v418 = vpack.c.b16 %v414, %v413
      %vm419 = vcmask 31744
      %v421 = vsel %vm419, %v415, 0
      %v424 = vsel %vm419, %v416, 0
      %v427 = vsel %vm419, %v417, 0
      %v430 = vsel %vm419, %v418, 0
      %vm432 = vcmask 1041408
      %v434 = vsel %vm432, %v398, 0
      %436 = vmatprep.subr.bf16.mxu0 0
      %437 = vmatpush1.bf16.msra.mxu0 0
      %438 = vmatprep.subr.bf16.mxu0 0
      %439 = vmatpush1.bf16.msra.mxu0 0
      %440 = vmatprep.subr.bf16.mxu0 0
      %441 = vmatpush1.bf16.msra.mxu0 0
      %442 = vmatprep.subr.bf16.mxu0 0
      %443 = vmatpush1.bf16.msra.mxu0 0
      %444 = vmatprep.subr.bf16.mxu0 0
      %445 = vmatpush1.bf16.msra.mxu0 0
      %446 = vmatprep.subr.bf16.mxu0 0
      %447 = vmatpush1.bf16.msra.mxu0 0
      %448 = vmatprep.subr.bf16.mxu0 0
      %449 = vmatpush1.bf16.msra.mxu0 0
      %450 = vmatprep.subr.bf16.mxu0 0
      %451 = vmatpush1.bf16.msra.mxu0 %v434
      %452 = vmatprep.subr.bf16.mxu0 0
      %453 = vmatpush2.bf16.msra.mxu0 0
      %454 = vmatprep.subr.bf16.mxu0 0
      %455 = vmatpush2.bf16.msra.mxu0 0
      %456 = vmatprep.subr.bf16.mxu0 0
      %457 = vmatpush2.bf16.msra.mxu0 0
      %458 = vmatprep.subr.bf16.mxu0 0
      %459 = vmatpush2.bf16.msra.mxu0 0
      %460 = vmatprep.subr.bf16.mxu0 0
      %461 = vmatpush2.bf16.msra.mxu0 0
      %462 = vmatprep.subr.bf16.mxu0 0
      %463 = vmatpush2.bf16.msra.mxu0 0
      %464 = vmatprep.subr.bf16.mxu0 0
      %465 = vmatpush2.bf16.msra.mxu0 0
      %466 = vmatprep.subr.bf16.mxu0 0
      %467 = vmatpush2.bf16.msra.mxu0 0
      %468 = vmatprep.mubr.bf16.mxu0 0
      %469 = vmatmul.mubr.bf16.gmra.mxu0 %v421
      %v470 = vpop.f32.mrf.mxu0
      %v471 = vadd.f32 0.0, %v470
      %v472 = vpop.f32.mrf.mxu0
      %v473 = vpop.f32.mrf.mxu0
      %v474 = vadd.f32 0.0, %v473
      %v475 = vpop.f32.mrf.mxu0
      %476 = vmatprep.mubr.bf16.mxu0 0
      %477 = vmatmul.mubr.bf16.gmra.mxu0 %v424
      %v478 = vpop.f32.mrf.mxu0
      %v479 = vadd.f32 0.0, %v478
      %v480 = vpop.f32.mrf.mxu0
      %v481 = vpop.f32.mrf.mxu0
      %v482 = vadd.f32 0.0, %v481
      %v483 = vpop.f32.mrf.mxu0
      %484 = vmatprep.mubr.bf16.mxu0 0
      %485 = vmatmul.mubr.bf16.gmra.mxu0 %v427
      %v486 = vpop.f32.mrf.mxu0
      %v487 = vadd.f32 0.0, %v486
      %v488 = vpop.f32.mrf.mxu0
      %v489 = vpop.f32.mrf.mxu0
      %v490 = vadd.f32 0.0, %v489
      %v491 = vpop.f32.mrf.mxu0
      %492 = vmatprep.mubr.bf16.mxu0 0
      %493 = vmatmul.mubr.bf16.gmra.mxu0 %v430
      %v494 = vpop.f32.mrf.mxu0
      %v495 = vadd.f32 0.0, %v494
      %v496 = vpop.f32.mrf.mxu0
      %v497 = vpop.f32.mrf.mxu0
      %v498 = vadd.f32 0.0, %v497
      %v499 = vpop.f32.mrf.mxu0
      %500 = vdwg.mxu0
      %v509 = vunpack.c.l.b16 %v345
      %v510 = vunpack.c.l.b16 %v347
      %v511 = vunpack.c.l.b16 %v349
      %v512 = vunpack.c.l.b16 %v351
      %v513 = vunpack.c.l.b16 %v353
      %v514 = vunpack.c.l.b16 %v355
      %v515 = vunpack.c.l.b16 %v357
      %v516 = vunpack.c.l.b16 %v359
      %v517 = vpack.c.b16 %v510, %v509
      %v518 = vpack.c.b16 %v512, %v511
      %v519 = vpack.c.b16 %v514, %v513
      %v520 = vpack.c.b16 %v516, %v515
      %v522 = vsel %vm419, %v517, 0
      %v525 = vsel %vm419, %v518, 0
      %v528 = vsel %vm419, %v519, 0
      %v531 = vsel %vm419, %v520, 0
      %v534 = vsel %vm432, %v396, 0
      %536 = vmatprep.subr.bf16.mxu0 0
      %537 = vmatpush1.bf16.msra.mxu0 0
      %538 = vmatprep.subr.bf16.mxu0 0
      %539 = vmatpush1.bf16.msra.mxu0 0
      %540 = vmatprep.subr.bf16.mxu0 0
      %541 = vmatpush1.bf16.msra.mxu0 0
      %542 = vmatprep.subr.bf16.mxu0 0
      %543 = vmatpush1.bf16.msra.mxu0 0
      %544 = vmatprep.subr.bf16.mxu0 0
      %545 = vmatpush1.bf16.msra.mxu0 0
      %546 = vmatprep.subr.bf16.mxu0 0
      %547 = vmatpush1.bf16.msra.mxu0 0
      %548 = vmatprep.subr.bf16.mxu0 0
      %549 = vmatpush1.bf16.msra.mxu0 0
      %550 = vmatprep.subr.bf16.mxu0 0
      %551 = vmatpush1.bf16.msra.mxu0 %v534
      %552 = vmatprep.subr.bf16.mxu0 0
      %553 = vmatpush2.bf16.msra.mxu0 0
      %554 = vmatprep.subr.bf16.mxu0 0
      %555 = vmatpush2.bf16.msra.mxu0 0
      %556 = vmatprep.subr.bf16.mxu0 0
      %557 = vmatpush2.bf16.msra.mxu0 0
      %558 = vmatprep.subr.bf16.mxu0 0
      %559 = vmatpush2.bf16.msra.mxu0 0
      %560 = vmatprep.subr.bf16.mxu0 0
      %561 = vmatpush2.bf16.msra.mxu0 0
      %562 = vmatprep.subr.bf16.mxu0 0
      %563 = vmatpush2.bf16.msra.mxu0 0
      %564 = vmatprep.subr.bf16.mxu0 0
      %565 = vmatpush2.bf16.msra.mxu0 0
      %566 = vmatprep.subr.bf16.mxu0 0
      %567 = vmatpush2.bf16.msra.mxu0 0
      %568 = vmatprep.mubr.bf16.mxu0 0
      %569 = vmatmul.mubr.bf16.gmra.mxu0 %v522
      %v570 = vpop.f32.mrf.mxu0
      %v571 = vadd.f32 %v471, %v570
      %v572 = vpop.f32.mrf.mxu0
      %v573 = vpop.f32.mrf.mxu0
      %v574 = vadd.f32 %v474, %v573
      %v575 = vpop.f32.mrf.mxu0
      %576 = vmatprep.mubr.bf16.mxu0 0
      %577 = vmatmul.mubr.bf16.gmra.mxu0 %v525
      %v578 = vpop.f32.mrf.mxu0
      %v579 = vadd.f32 %v479, %v578
      %v580 = vpop.f32.mrf.mxu0
      %v581 = vpop.f32.mrf.mxu0
      %v582 = vadd.f32 %v482, %v581
      %v583 = vpop.f32.mrf.mxu0
      %584 = vmatprep.mubr.bf16.mxu0 0
      %585 = vmatmul.mubr.bf16.gmra.mxu0 %v528
      %v586 = vpop.f32.mrf.mxu0
      %v587 = vadd.f32 %v487, %v586
      %v588 = vpop.f32.mrf.mxu0
      %v589 = vpop.f32.mrf.mxu0
      %v590 = vadd.f32 %v490, %v589
      %v591 = vpop.f32.mrf.mxu0
      %592 = vmatprep.mubr.bf16.mxu0 0
      %593 = vmatmul.mubr.bf16.gmra.mxu0 %v531
      %v594 = vpop.f32.mrf.mxu0
      %v595 = vadd.f32 %v495, %v594
      %v596 = vpop.f32.mrf.mxu0
      %v597 = vpop.f32.mrf.mxu0
      %v598 = vadd.f32 %v498, %v597
      %v599 = vpop.f32.mrf.mxu0
      %600 = vdwg.mxu0
      %vm601 = vsmask.f32 3328
      %vm602 = vsmask.f32 7440
      %vm603 = vmor %vm601, %vm602
      %v605 = vshrl.u32 %v345, 16
      %v607 = vrot.slane %v605, 4
      %v608 = vshll.u32 %v345, 16
      %v610 = vrot.slane %v608, 5
      %v611 = vor.u32 %v607, %v610
      %v612 = vrot.slane %v611, 4
      %v614 = vshll.u32 %v346, 16
      %v616 = vrot.slane %v614, 5
      %v617 = vsel %vm603, %v612, %v616
      %v619 = vshrl.u32 %v347, 16
      %v621 = vrot.slane %v619, 4
      %v622 = vshll.u32 %v347, 16
      %v624 = vrot.slane %v622, 5
      %v625 = vor.u32 %v621, %v624
      %v626 = vrot.slane %v625, 4
      %v628 = vshll.u32 %v348, 16
      %v630 = vrot.slane %v628, 5
      %v631 = vsel %vm603, %v626, %v630
      %v633 = vshrl.u32 %v349, 16
      %v635 = vrot.slane %v633, 4
      %v636 = vshll.u32 %v349, 16
      %v638 = vrot.slane %v636, 5
      %v639 = vor.u32 %v635, %v638
      %v640 = vrot.slane %v639, 4
      %v642 = vshll.u32 %v350, 16
      %v644 = vrot.slane %v642, 5
      %v645 = vsel %vm603, %v640, %v644
      %v647 = vshrl.u32 %v351, 16
      %v649 = vrot.slane %v647, 4
      %v650 = vshll.u32 %v351, 16
      %v652 = vrot.slane %v650, 5
      %v653 = vor.u32 %v649, %v652
      %v654 = vrot.slane %v653, 4
      %v656 = vshll.u32 %v352, 16
      %v658 = vrot.slane %v656, 5
      %v659 = vsel %vm603, %v654, %v658
      %v661 = vshrl.u32 %v353, 16
      %v663 = vrot.slane %v661, 4
      %v664 = vshll.u32 %v353, 16
      %v666 = vrot.slane %v664, 5
      %v667 = vor.u32 %v663, %v666
      %v668 = vrot.slane %v667, 4
      %v670 = vshll.u32 %v354, 16
      %v672 = vrot.slane %v670, 5
      %v673 = vsel %vm603, %v668, %v672
      %v675 = vshrl.u32 %v355, 16
      %v677 = vrot.slane %v675, 4
      %v678 = vshll.u32 %v355, 16
      %v680 = vrot.slane %v678, 5
      %v681 = vor.u32 %v677, %v680
      %v682 = vrot.slane %v681, 4
      %v684 = vshll.u32 %v356, 16
      %v686 = vrot.slane %v684, 5
      %v687 = vsel %vm603, %v682, %v686
      %v689 = vshrl.u32 %v357, 16
      %v691 = vrot.slane %v689, 4
      %v692 = vshll.u32 %v357, 16
      %v694 = vrot.slane %v692, 5
      %v695 = vor.u32 %v691, %v694
      %v696 = vrot.slane %v695, 4
      %v698 = vshll.u32 %v358, 16
      %v700 = vrot.slane %v698, 5
      %v701 = vsel %vm603, %v696, %v700
      %v703 = vshrl.u32 %v359, 16
      %v705 = vrot.slane %v703, 4
      %v706 = vshll.u32 %v359, 16
      %v708 = vrot.slane %v706, 5
      %v709 = vor.u32 %v705, %v708
      %v710 = vrot.slane %v709, 4
      %v712 = vshll.u32 %v360, 16
      %v714 = vrot.slane %v712, 5
      %v715 = vsel %vm603, %v710, %v714
      %s716 = scalar_lea.vmem %s1, 4
      %v717 = vld [vmem:[%s716] sm:$0x3]
      %v718 = vunpack.c.l.b16 %v617
      %v719 = vunpack.c.l.b16 %v631
      %v720 = vunpack.c.l.b16 %v645
      %v721 = vunpack.c.l.b16 %v659
      %v722 = vunpack.c.l.b16 %v673
      %v723 = vunpack.c.l.b16 %v687
      %v724 = vunpack.c.l.b16 %v701
      %v725 = vunpack.c.l.b16 %v715
      %v726 = vpack.c.b16 %v719, %v718
      %v727 = vpack.c.b16 %v721, %v720
      %v728 = vpack.c.b16 %v723, %v722
      %v729 = vpack.c.b16 %v725, %v724
      %v731 = vsel %vm419, %v726, 0
      %v734 = vsel %vm419, %v727, 0
      %v737 = vsel %vm419, %v728, 0
      %v740 = vsel %vm419, %v729, 0
      %v743 = vsel %vm432, %v717, 0
      %745 = vmatprep.subr.bf16.mxu0 0
      %746 = vmatpush1.bf16.msra.mxu0 0
      %747 = vmatprep.subr.bf16.mxu0 0
      %748 = vmatpush1.bf16.msra.mxu0 0
      %749 = vmatprep.subr.bf16.mxu0 0
      %750 = vmatpush1.bf16.msra.mxu0 0
      %751 = vmatprep.subr.bf16.mxu0 0
      %752 = vmatpush1.bf16.msra.mxu0 0
      %753 = vmatprep.subr.bf16.mxu0 0
      %754 = vmatpush1.bf16.msra.mxu0 0
      %755 = vmatprep.subr.bf16.mxu0 0
      %756 = vmatpush1.bf16.msra.mxu0 0
      %757 = vmatprep.subr.bf16.mxu0 0
      %758 = vmatpush1.bf16.msra.mxu0 0
      %759 = vmatprep.subr.bf16.mxu0 0
      %760 = vmatpush1.bf16.msra.mxu0 %v743
      %761 = vmatprep.subr.bf16.mxu0 0
      %762 = vmatpush2.bf16.msra.mxu0 0
      %763 = vmatprep.subr.bf16.mxu0 0
      %764 = vmatpush2.bf16.msra.mxu0 0
      %765 = vmatprep.subr.bf16.mxu0 0
      %766 = vmatpush2.bf16.msra.mxu0 0
      %767 = vmatprep.subr.bf16.mxu0 0
      %768 = vmatpush2.bf16.msra.mxu0 0
      %769 = vmatprep.subr.bf16.mxu0 0
      %770 = vmatpush2.bf16.msra.mxu0 0
      %771 = vmatprep.subr.bf16.mxu0 0
      %772 = vmatpush2.bf16.msra.mxu0 0
      %773 = vmatprep.subr.bf16.mxu0 0
      %774 = vmatpush2.bf16.msra.mxu0 0
      %775 = vmatprep.subr.bf16.mxu0 0
      %776 = vmatpush2.bf16.msra.mxu0 0
      %777 = vmatprep.mubr.bf16.mxu0 0
      %778 = vmatmul.mubr.bf16.gmra.mxu0 %v731
      %v779 = vpop.f32.mrf.mxu0
      %v780 = vadd.f32 0.0, %v779
      %v781 = vpop.f32.mrf.mxu0
      %v782 = vpop.f32.mrf.mxu0
      %v783 = vadd.f32 0.0, %v782
      %v784 = vpop.f32.mrf.mxu0
      %785 = vmatprep.mubr.bf16.mxu0 0
      %786 = vmatmul.mubr.bf16.gmra.mxu0 %v734
      %v787 = vpop.f32.mrf.mxu0
      %v788 = vadd.f32 0.0, %v787
      %v789 = vpop.f32.mrf.mxu0
      %v790 = vpop.f32.mrf.mxu0
      %v791 = vadd.f32 0.0, %v790
      %v792 = vpop.f32.mrf.mxu0
      %793 = vmatprep.mubr.bf16.mxu0 0
      %794 = vmatmul.mubr.bf16.gmra.mxu0 %v737
      %v795 = vpop.f32.mrf.mxu0
      %v796 = vadd.f32 0.0, %v795
      %v797 = vpop.f32.mrf.mxu0
      %v798 = vpop.f32.mrf.mxu0
      %v799 = vadd.f32 0.0, %v798
      %v800 = vpop.f32.mrf.mxu0
      %801 = vmatprep.mubr.bf16.mxu0 0
      %802 = vmatmul.mubr.bf16.gmra.mxu0 %v740
      %v803 = vpop.f32.mrf.mxu0
      %v804 = vadd.f32 0.0, %v803
      %v805 = vpop.f32.mrf.mxu0
      %v806 = vpop.f32.mrf.mxu0
      %v807 = vadd.f32 0.0, %v806
      %v808 = vpop.f32.mrf.mxu0
      %809 = vdwg.mxu0
      %v810 = vadd.f32 %v571, %v780
      %v811 = vadd.f32 %v574, %v783
      %v812 = vadd.f32 %v579, %v788
      %v813 = vadd.f32 %v582, %v791
      %v814 = vadd.f32 %v587, %v796
      %v815 = vadd.f32 %v590, %v799
      %v816 = vadd.f32 %v595, %v804
      %v817 = vadd.f32 %v598, %v807
      %s818 = scalar_lea.vmem %s1, 6
      %v819 = vld [vmem:[%s818] sm:$0x3]
      %v828 = vunpack.c.l.b16 %v372
      %v829 = vunpack.c.l.b16 %v374
      %v830 = vunpack.c.l.b16 %v376
      %v831 = vunpack.c.l.b16 %v378
      %v832 = vunpack.c.l.b16 %v380
      %v833 = vunpack.c.l.b16 %v382
      %v834 = vunpack.c.l.b16 %v384
      %v835 = vunpack.c.l.b16 %v386
      %v836 = vpack.c.b16 %v829, %v828
      %v837 = vpack.c.b16 %v831, %v830
      %v838 = vpack.c.b16 %v833, %v832
      %v839 = vpack.c.b16 %v835, %v834
      %v841 = vsel %vm419, %v836, 0
      %v844 = vsel %vm419, %v837, 0
      %v847 = vsel %vm419, %v838, 0
      %v850 = vsel %vm419, %v839, 0
      %v853 = vsel %vm432, %v819, 0
      %855 = vmatprep.subr.bf16.mxu0 0
      %856 = vmatpush1.bf16.msra.mxu0 0
      %857 = vmatprep.subr.bf16.mxu0 0
      %858 = vmatpush1.bf16.msra.mxu0 0
      %859 = vmatprep.subr.bf16.mxu0 0
      %860 = vmatpush1.bf16.msra.mxu0 0
      %861 = vmatprep.subr.bf16.mxu0 0
      %862 = vmatpush1.bf16.msra.mxu0 0
      %863 = vmatprep.subr.bf16.mxu0 0
      %864 = vmatpush1.bf16.msra.mxu0 0
      %865 = vmatprep.subr.bf16.mxu0 0
      %866 = vmatpush1.bf16.msra.mxu0 0
      %867 = vmatprep.subr.bf16.mxu0 0
      %868 = vmatpush1.bf16.msra.mxu0 0
      %869 = vmatprep.subr.bf16.mxu0 0
      %870 = vmatpush1.bf16.msra.mxu0 %v853
      %871 = vmatprep.subr.bf16.mxu0 0
      %872 = vmatpush2.bf16.msra.mxu0 0
      %873 = vmatprep.subr.bf16.mxu0 0
      %874 = vmatpush2.bf16.msra.mxu0 0
      %875 = vmatprep.subr.bf16.mxu0 0
      %876 = vmatpush2.bf16.msra.mxu0 0
      %877 = vmatprep.subr.bf16.mxu0 0
      %878 = vmatpush2.bf16.msra.mxu0 0
      %879 = vmatprep.subr.bf16.mxu0 0
      %880 = vmatpush2.bf16.msra.mxu0 0
      %881 = vmatprep.subr.bf16.mxu0 0
      %882 = vmatpush2.bf16.msra.mxu0 0
      %883 = vmatprep.subr.bf16.mxu0 0
      %884 = vmatpush2.bf16.msra.mxu0 0
      %885 = vmatprep.subr.bf16.mxu0 0
      %886 = vmatpush2.bf16.msra.mxu0 0
      %887 = vmatprep.mubr.bf16.mxu0 0
      %888 = vmatmul.mubr.bf16.gmra.mxu0 %v841
      %v889 = vpop.f32.mrf.mxu0
      %v890 = vadd.f32 0.0, %v889
      %v891 = vpop.f32.mrf.mxu0
      %v892 = vpop.f32.mrf.mxu0
      %v893 = vadd.f32 0.0, %v892
      %v894 = vpop.f32.mrf.mxu0
      %895 = vmatprep.mubr.bf16.mxu0 0
      %896 = vmatmul.mubr.bf16.gmra.mxu0 %v844
      %v897 = vpop.f32.mrf.mxu0
      %v898 = vadd.f32 0.0, %v897
      %v899 = vpop.f32.mrf.mxu0
      %v900 = vpop.f32.mrf.mxu0
      %v901 = vadd.f32 0.0, %v900
      %v902 = vpop.f32.mrf.mxu0
      %903 = vmatprep.mubr.bf16.mxu0 0
      %904 = vmatmul.mubr.bf16.gmra.mxu0 %v847
      %v905 = vpop.f32.mrf.mxu0
      %v906 = vadd.f32 0.0, %v905
      %v907 = vpop.f32.mrf.mxu0
      %v908 = vpop.f32.mrf.mxu0
      %v909 = vadd.f32 0.0, %v908
      %v910 = vpop.f32.mrf.mxu0
      %911 = vmatprep.mubr.bf16.mxu0 0
      %912 = vmatmul.mubr.bf16.gmra.mxu0 %v850
      %v913 = vpop.f32.mrf.mxu0
      %v914 = vadd.f32 0.0, %v913
      %v915 = vpop.f32.mrf.mxu0
      %v916 = vpop.f32.mrf.mxu0
      %v917 = vadd.f32 0.0, %v916
      %v918 = vpop.f32.mrf.mxu0
      %919 = vdwg.mxu0
      %v920 = vadd.f32 %v810, %v890
      %v921 = vadd.f32 %v811, %v893
      %v922 = vadd.f32 %v812, %v898
      %v923 = vadd.f32 %v813, %v901
      %v924 = vadd.f32 %v814, %v906
      %v925 = vadd.f32 %v815, %v909
      %v926 = vadd.f32 %v816, %v914
      %v927 = vadd.f32 %v817, %v917
      %s928 = scalar_lea.vmem %s1, 8
      %v929 = vld [vmem:[%s928] sm:$0x3]
      %v938 = vunpack.c.l.b16 %v388
      %v939 = vunpack.c.l.b16 %v389
      %v940 = vunpack.c.l.b16 %v390
      %v941 = vunpack.c.l.b16 %v391
      %v942 = vunpack.c.l.b16 %v392
      %v943 = vunpack.c.l.b16 %v393
      %v944 = vunpack.c.l.b16 %v394
      %v945 = vunpack.c.l.b16 %v395
      %v946 = vpack.c.b16 %v939, %v938
      %v947 = vpack.c.b16 %v941, %v940
      %v948 = vpack.c.b16 %v943, %v942
      %v949 = vpack.c.b16 %v945, %v944
      %v951 = vsel %vm419, %v946, 0
      %v954 = vsel %vm419, %v947, 0
      %v957 = vsel %vm419, %v948, 0
      %v960 = vsel %vm419, %v949, 0
      %v963 = vsel %vm432, %v929, 0
      %965 = vmatprep.subr.bf16.mxu0 0
      %966 = vmatpush1.bf16.msra.mxu0 0
      %967 = vmatprep.subr.bf16.mxu0 0
      %968 = vmatpush1.bf16.msra.mxu0 0
      %969 = vmatprep.subr.bf16.mxu0 0
      %970 = vmatpush1.bf16.msra.mxu0 0
      %971 = vmatprep.subr.bf16.mxu0 0
      %972 = vmatpush1.bf16.msra.mxu0 0
      %973 = vmatprep.subr.bf16.mxu0 0
      %974 = vmatpush1.bf16.msra.mxu0 0
      %975 = vmatprep.subr.bf16.mxu0 0
      %976 = vmatpush1.bf16.msra.mxu0 0
      %977 = vmatprep.subr.bf16.mxu0 0
      %978 = vmatpush1.bf16.msra.mxu0 0
      %979 = vmatprep.subr.bf16.mxu0 0
      %980 = vmatpush1.bf16.msra.mxu0 %v963
      %981 = vmatprep.subr.bf16.mxu0 0
      %982 = vmatpush2.bf16.msra.mxu0 0
      %983 = vmatprep.subr.bf16.mxu0 0
      %984 = vmatpush2.bf16.msra.mxu0 0
      %985 = vmatprep.subr.bf16.mxu0 0
      %986 = vmatpush2.bf16.msra.mxu0 0
      %987 = vmatprep.subr.bf16.mxu0 0
      %988 = vmatpush2.bf16.msra.mxu0 0
      %989 = vmatprep.subr.bf16.mxu0 0
      %990 = vmatpush2.bf16.msra.mxu0 0
      %991 = vmatprep.subr.bf16.mxu0 0
      %992 = vmatpush2.bf16.msra.mxu0 0
      %993 = vmatprep.subr.bf16.mxu0 0
      %994 = vmatpush2.bf16.msra.mxu0 0
      %995 = vmatprep.subr.bf16.mxu0 0
      %996 = vmatpush2.bf16.msra.mxu0 0
      %997 = vmatprep.mubr.bf16.mxu0 0
      %998 = vmatmul.mubr.bf16.gmra.mxu0 %v951
      %v999 = vpop.f32.mrf.mxu0
      %v1000 = vadd.f32 0.0, %v999
      %v1001 = vpop.f32.mrf.mxu0
      %v1002 = vpop.f32.mrf.mxu0
      %v1003 = vadd.f32 0.0, %v1002
      %v1004 = vpop.f32.mrf.mxu0
      %1005 = vmatprep.mubr.bf16.mxu0 0
      %1006 = vmatmul.mubr.bf16.gmra.mxu0 %v954
      %v1007 = vpop.f32.mrf.mxu0
      %v1008 = vadd.f32 0.0, %v1007
      %v1009 = vpop.f32.mrf.mxu0
      %v1010 = vpop.f32.mrf.mxu0
      %v1011 = vadd.f32 0.0, %v1010
      %v1012 = vpop.f32.mrf.mxu0
      %1013 = vmatprep.mubr.bf16.mxu0 0
      %1014 = vmatmul.mubr.bf16.gmra.mxu0 %v957
      %v1015 = vpop.f32.mrf.mxu0
      %v1016 = vadd.f32 0.0, %v1015
      %v1017 = vpop.f32.mrf.mxu0
      %v1018 = vpop.f32.mrf.mxu0
      %v1019 = vadd.f32 0.0, %v1018
      %v1020 = vpop.f32.mrf.mxu0
      %1021 = vmatprep.mubr.bf16.mxu0 0
      %1022 = vmatmul.mubr.bf16.gmra.mxu0 %v960
      %v1023 = vpop.f32.mrf.mxu0
      %v1024 = vadd.f32 0.0, %v1023
      %v1025 = vpop.f32.mrf.mxu0
      %v1026 = vpop.f32.mrf.mxu0
      %v1027 = vadd.f32 0.0, %v1026
      %v1028 = vpop.f32.mrf.mxu0
      %1029 = vdwg.mxu0
      %v1030 = vadd.f32 %v920, %v1000
      %v1031 = vadd.f32 %v921, %v1003
      %v1032 = vadd.f32 %v922, %v1008
      %v1033 = vadd.f32 %v923, %v1011
      %v1034 = vadd.f32 %v924, %v1016
      %v1035 = vadd.f32 %v925, %v1019
      %v1036 = vadd.f32 %v926, %v1024
      %v1037 = vadd.f32 %v927, %v1027
      %v1039 = vshrl.u32 %v372, 16
      %v1041 = vrot.slane %v1039, 4
      %v1042 = vshll.u32 %v372, 16
      %v1044 = vrot.slane %v1042, 5
      %v1045 = vor.u32 %v1041, %v1044
      %v1046 = vrot.slane %v1045, 4
      %v1048 = vshll.u32 %v373, 16
      %v1050 = vrot.slane %v1048, 5
      %v1051 = vsel %vm603, %v1046, %v1050
      %v1053 = vshrl.u32 %v374, 16
      %v1055 = vrot.slane %v1053, 4
      %v1056 = vshll.u32 %v374, 16
      %v1058 = vrot.slane %v1056, 5
      %v1059 = vor.u32 %v1055, %v1058
      %v1060 = vrot.slane %v1059, 4
      %v1062 = vshll.u32 %v375, 16
      %v1064 = vrot.slane %v1062, 5
      %v1065 = vsel %vm603, %v1060, %v1064
      %v1067 = vshrl.u32 %v376, 16
      %v1069 = vrot.slane %v1067, 4
      %v1070 = vshll.u32 %v376, 16
      %v1072 = vrot.slane %v1070, 5
      %v1073 = vor.u32 %v1069, %v1072
      %v1074 = vrot.slane %v1073, 4
      %v1076 = vshll.u32 %v377, 16
      %v1078 = vrot.slane %v1076, 5
      %v1079 = vsel %vm603, %v1074, %v1078
      %v1081 = vshrl.u32 %v378, 16
      %v1083 = vrot.slane %v1081, 4
      %v1084 = vshll.u32 %v378, 16
      %v1086 = vrot.slane %v1084, 5
      %v1087 = vor.u32 %v1083, %v1086
      %v1088 = vrot.slane %v1087, 4
      %v1090 = vshll.u32 %v379, 16
      %v1092 = vrot.slane %v1090, 5
      %v1093 = vsel %vm603, %v1088, %v1092
      %v1095 = vshrl.u32 %v380, 16
      %v1097 = vrot.slane %v1095, 4
      %v1098 = vshll.u32 %v380, 16
      %v1100 = vrot.slane %v1098, 5
      %v1101 = vor.u32 %v1097, %v1100
      %v1102 = vrot.slane %v1101, 4
      %v1104 = vshll.u32 %v381, 16
      %v1106 = vrot.slane %v1104, 5
      %v1107 = vsel %vm603, %v1102, %v1106
      %v1109 = vshrl.u32 %v382, 16
      %v1111 = vrot.slane %v1109, 4
      %v1112 = vshll.u32 %v382, 16
      %v1114 = vrot.slane %v1112, 5
      %v1115 = vor.u32 %v1111, %v1114
      %v1116 = vrot.slane %v1115, 4
      %v1118 = vshll.u32 %v383, 16
      %v1120 = vrot.slane %v1118, 5
      %v1121 = vsel %vm603, %v1116, %v1120
      %v1123 = vshrl.u32 %v384, 16
      %v1125 = vrot.slane %v1123, 4
      %v1126 = vshll.u32 %v384, 16
      %v1128 = vrot.slane %v1126, 5
      %v1129 = vor.u32 %v1125, %v1128
      %v1130 = vrot.slane %v1129, 4
      %v1132 = vshll.u32 %v385, 16
      %v1134 = vrot.slane %v1132, 5
      %v1135 = vsel %vm603, %v1130, %v1134
      %v1137 = vshrl.u32 %v386, 16
      %v1139 = vrot.slane %v1137, 4
      %v1140 = vshll.u32 %v386, 16
      %v1142 = vrot.slane %v1140, 5
      %v1143 = vor.u32 %v1139, %v1142
      %v1144 = vrot.slane %v1143, 4
      %v1146 = vshll.u32 %v387, 16
      %v1148 = vrot.slane %v1146, 5
      %v1149 = vsel %vm603, %v1144, %v1148
      %s1150 = scalar_lea.vmem %s1, 10
      %v1151 = vld [vmem:[%s1150] sm:$0x3]
      %v1152 = vunpack.c.l.b16 %v1051
      %v1153 = vunpack.c.l.b16 %v1065
      %v1154 = vunpack.c.l.b16 %v1079
      %v1155 = vunpack.c.l.b16 %v1093
      %v1156 = vunpack.c.l.b16 %v1107
      %v1157 = vunpack.c.l.b16 %v1121
      %v1158 = vunpack.c.l.b16 %v1135
      %v1159 = vunpack.c.l.b16 %v1149
      %v1160 = vpack.c.b16 %v1153, %v1152
      %v1161 = vpack.c.b16 %v1155, %v1154
      %v1162 = vpack.c.b16 %v1157, %v1156
      %v1163 = vpack.c.b16 %v1159, %v1158
      %v1165 = vsel %vm419, %v1160, 0
      %v1168 = vsel %vm419, %v1161, 0
      %v1171 = vsel %vm419, %v1162, 0
      %v1174 = vsel %vm419, %v1163, 0
      %v1177 = vsel %vm432, %v1151, 0
      %1179 = vmatprep.subr.bf16.mxu0 0
      %1180 = vmatpush1.bf16.msra.mxu0 0
      %1181 = vmatprep.subr.bf16.mxu0 0
      %1182 = vmatpush1.bf16.msra.mxu0 0
      %1183 = vmatprep.subr.bf16.mxu0 0
      %1184 = vmatpush1.bf16.msra.mxu0 0
      %1185 = vmatprep.subr.bf16.mxu0 0
      %1186 = vmatpush1.bf16.msra.mxu0 0
      %1187 = vmatprep.subr.bf16.mxu0 0
      %1188 = vmatpush1.bf16.msra.mxu0 0
      %1189 = vmatprep.subr.bf16.mxu0 0
      %1190 = vmatpush1.bf16.msra.mxu0 0
      %1191 = vmatprep.subr.bf16.mxu0 0
      %1192 = vmatpush1.bf16.msra.mxu0 0
      %1193 = vmatprep.subr.bf16.mxu0 0
      %1194 = vmatpush1.bf16.msra.mxu0 %v1177
      %1195 = vmatprep.subr.bf16.mxu0 0
      %1196 = vmatpush2.bf16.msra.mxu0 0
      %1197 = vmatprep.subr.bf16.mxu0 0
      %1198 = vmatpush2.bf16.msra.mxu0 0
      %1199 = vmatprep.subr.bf16.mxu0 0
      %1200 = vmatpush2.bf16.msra.mxu0 0
      %1201 = vmatprep.subr.bf16.mxu0 0
      %1202 = vmatpush2.bf16.msra.mxu0 0
      %1203 = vmatprep.subr.bf16.mxu0 0
      %1204 = vmatpush2.bf16.msra.mxu0 0
      %1205 = vmatprep.subr.bf16.mxu0 0
      %1206 = vmatpush2.bf16.msra.mxu0 0
      %1207 = vmatprep.subr.bf16.mxu0 0
      %1208 = vmatpush2.bf16.msra.mxu0 0
      %1209 = vmatprep.subr.bf16.mxu0 0
      %1210 = vmatpush2.bf16.msra.mxu0 0
      %1211 = vmatprep.mubr.bf16.mxu0 0
      %1212 = vmatmul.mubr.bf16.gmra.mxu0 %v1165
      %v1213 = vpop.f32.mrf.mxu0
      %v1214 = vadd.f32 0.0, %v1213
      %v1215 = vpop.f32.mrf.mxu0
      %v1216 = vpop.f32.mrf.mxu0
      %v1217 = vadd.f32 0.0, %v1216
      %v1218 = vpop.f32.mrf.mxu0
      %1219 = vmatprep.mubr.bf16.mxu0 0
      %1220 = vmatmul.mubr.bf16.gmra.mxu0 %v1168
      %v1221 = vpop.f32.mrf.mxu0
      %v1222 = vadd.f32 0.0, %v1221
      %v1223 = vpop.f32.mrf.mxu0
      %v1224 = vpop.f32.mrf.mxu0
      %v1225 = vadd.f32 0.0, %v1224
      %v1226 = vpop.f32.mrf.mxu0
      %1227 = vmatprep.mubr.bf16.mxu0 0
      %1228 = vmatmul.mubr.bf16.gmra.mxu0 %v1171
      %v1229 = vpop.f32.mrf.mxu0
      %v1230 = vadd.f32 0.0, %v1229
      %v1231 = vpop.f32.mrf.mxu0
      %v1232 = vpop.f32.mrf.mxu0
      %v1233 = vadd.f32 0.0, %v1232
      %v1234 = vpop.f32.mrf.mxu0
      %1235 = vmatprep.mubr.bf16.mxu0 0
      %1236 = vmatmul.mubr.bf16.gmra.mxu0 %v1174
      %v1237 = vpop.f32.mrf.mxu0
      %v1238 = vadd.f32 0.0, %v1237
      %v1239 = vpop.f32.mrf.mxu0
      %v1240 = vpop.f32.mrf.mxu0
      %v1241 = vadd.f32 0.0, %v1240
      %v1242 = vpop.f32.mrf.mxu0
      %1243 = vdwg.mxu0
      %v1244 = vadd.f32 %v1030, %v1214
      %v1245 = vadd.f32 %v1031, %v1217
      %v1246 = vadd.f32 %v1032, %v1222
      %v1247 = vadd.f32 %v1033, %v1225
      %v1248 = vadd.f32 %v1034, %v1230
      %v1249 = vadd.f32 %v1035, %v1233
      %v1250 = vadd.f32 %v1036, %v1238
      %v1251 = vadd.f32 %v1037, %v1241
      %s1252 = scalar_lea.vmem %s1, 12
      %v1253 = vld [vmem:[%s1252] sm:$0x3]
      %v1255 = vunpack.c.l.b16 %v361
      %v1256 = vpack.c.b16 %v511, %v510
      %v1257 = vpack.c.b16 %v513, %v512
      %v1258 = vpack.c.b16 %v515, %v514
      %v1259 = vpack.c.b16 %v1255, %v516
      %v1261 = vsel %vm419, %v1256, 0
      %v1264 = vsel %vm419, %v1257, 0
      %v1267 = vsel %vm419, %v1258, 0
      %v1270 = vsel %vm419, %v1259, 0
      %v1273 = vsel %vm432, %v1253, 0
      %1275 = vmatprep.subr.bf16.mxu0 0
      %1276 = vmatpush1.bf16.msra.mxu0 0
      %1277 = vmatprep.subr.bf16.mxu0 0
      %1278 = vmatpush1.bf16.msra.mxu0 0
      %1279 = vmatprep.subr.bf16.mxu0 0
      %1280 = vmatpush1.bf16.msra.mxu0 0
      %1281 = vmatprep.subr.bf16.mxu0 0
      %1282 = vmatpush1.bf16.msra.mxu0 0
      %1283 = vmatprep.subr.bf16.mxu0 0
      %1284 = vmatpush1.bf16.msra.mxu0 0
      %1285 = vmatprep.subr.bf16.mxu0 0
      %1286 = vmatpush1.bf16.msra.mxu0 0
      %1287 = vmatprep.subr.bf16.mxu0 0
      %1288 = vmatpush1.bf16.msra.mxu0 0
      %1289 = vmatprep.subr.bf16.mxu0 0
      %1290 = vmatpush1.bf16.msra.mxu0 %v1273
      %1291 = vmatprep.subr.bf16.mxu0 0
      %1292 = vmatpush2.bf16.msra.mxu0 0
      %1293 = vmatprep.subr.bf16.mxu0 0
      %1294 = vmatpush2.bf16.msra.mxu0 0
      %1295 = vmatprep.subr.bf16.mxu0 0
      %1296 = vmatpush2.bf16.msra.mxu0 0
      %1297 = vmatprep.subr.bf16.mxu0 0
      %1298 = vmatpush2.bf16.msra.mxu0 0
      %1299 = vmatprep.subr.bf16.mxu0 0
      %1300 = vmatpush2.bf16.msra.mxu0 0
      %1301 = vmatprep.subr.bf16.mxu0 0
      %1302 = vmatpush2.bf16.msra.mxu0 0
      %1303 = vmatprep.subr.bf16.mxu0 0
      %1304 = vmatpush2.bf16.msra.mxu0 0
      %1305 = vmatprep.subr.bf16.mxu0 0
      %1306 = vmatpush2.bf16.msra.mxu0 0
      %1307 = vmatprep.mubr.bf16.mxu0 0
      %1308 = vmatmul.mubr.bf16.gmra.mxu0 %v1261
      %v1309 = vpop.f32.mrf.mxu0
      %v1310 = vadd.f32 0.0, %v1309
      %v1311 = vpop.f32.mrf.mxu0
      %v1312 = vpop.f32.mrf.mxu0
      %v1313 = vadd.f32 0.0, %v1312
      %v1314 = vpop.f32.mrf.mxu0
      %1315 = vmatprep.mubr.bf16.mxu0 0
      %1316 = vmatmul.mubr.bf16.gmra.mxu0 %v1264
      %v1317 = vpop.f32.mrf.mxu0
      %v1318 = vadd.f32 0.0, %v1317
      %v1319 = vpop.f32.mrf.mxu0
      %v1320 = vpop.f32.mrf.mxu0
      %v1321 = vadd.f32 0.0, %v1320
      %v1322 = vpop.f32.mrf.mxu0
      %1323 = vmatprep.mubr.bf16.mxu0 0
      %1324 = vmatmul.mubr.bf16.gmra.mxu0 %v1267
      %v1325 = vpop.f32.mrf.mxu0
      %v1326 = vadd.f32 0.0, %v1325
      %v1327 = vpop.f32.mrf.mxu0
      %v1328 = vpop.f32.mrf.mxu0
      %v1329 = vadd.f32 0.0, %v1328
      %v1330 = vpop.f32.mrf.mxu0
      %1331 = vmatprep.mubr.bf16.mxu0 0
      %1332 = vmatmul.mubr.bf16.gmra.mxu0 %v1270
      %v1333 = vpop.f32.mrf.mxu0
      %v1334 = vadd.f32 0.0, %v1333
      %v1335 = vpop.f32.mrf.mxu0
      %v1336 = vpop.f32.mrf.mxu0
      %v1337 = vadd.f32 0.0, %v1336
      %v1338 = vpop.f32.mrf.mxu0
      %1339 = vdwg.mxu0
      %v1340 = vadd.f32 %v1244, %v1310
      %v1341 = vadd.f32 %v1245, %v1313
      %v1342 = vadd.f32 %v1246, %v1318
      %v1343 = vadd.f32 %v1247, %v1321
      %v1344 = vadd.f32 %v1248, %v1326
      %v1345 = vadd.f32 %v1249, %v1329
      %v1346 = vadd.f32 %v1250, %v1334
      %v1347 = vadd.f32 %v1251, %v1337
      %s1348 = scalar_lea.vmem %s1, 14
      %v1349 = vld [vmem:[%s1348] sm:$0x3]
      %v1351 = vunpack.c.l.b16 %v371
      %v1352 = vpack.c.b16 %v409, %v408
      %v1353 = vpack.c.b16 %v411, %v410
      %v1354 = vpack.c.b16 %v413, %v412
      %v1355 = vpack.c.b16 %v1351, %v414
      %v1357 = vsel %vm419, %v1352, 0
      %v1360 = vsel %vm419, %v1353, 0
      %v1363 = vsel %vm419, %v1354, 0
      %v1366 = vsel %vm419, %v1355, 0
      %v1369 = vsel %vm432, %v1349, 0
      %1371 = vmatprep.subr.bf16.mxu0 0
      %1372 = vmatpush1.bf16.msra.mxu0 0
      %1373 = vmatprep.subr.bf16.mxu0 0
      %1374 = vmatpush1.bf16.msra.mxu0 0
      %1375 = vmatprep.subr.bf16.mxu0 0
      %1376 = vmatpush1.bf16.msra.mxu0 0
      %1377 = vmatprep.subr.bf16.mxu0 0
      %1378 = vmatpush1.bf16.msra.mxu0 0
      %1379 = vmatprep.subr.bf16.mxu0 0
      %1380 = vmatpush1.bf16.msra.mxu0 0
      %1381 = vmatprep.subr.bf16.mxu0 0
      %1382 = vmatpush1.bf16.msra.mxu0 0
      %1383 = vmatprep.subr.bf16.mxu0 0
      %1384 = vmatpush1.bf16.msra.mxu0 0
      %1385 = vmatprep.subr.bf16.mxu0 0
      %1386 = vmatpush1.bf16.msra.mxu0 %v1369
      %1387 = vmatprep.subr.bf16.mxu0 0
      %1388 = vmatpush2.bf16.msra.mxu0 0
      %1389 = vmatprep.subr.bf16.mxu0 0
      %1390 = vmatpush2.bf16.msra.mxu0 0
      %1391 = vmatprep.subr.bf16.mxu0 0
      %1392 = vmatpush2.bf16.msra.mxu0 0
      %1393 = vmatprep.subr.bf16.mxu0 0
      %1394 = vmatpush2.bf16.msra.mxu0 0
      %1395 = vmatprep.subr.bf16.mxu0 0
      %1396 = vmatpush2.bf16.msra.mxu0 0
      %1397 = vmatprep.subr.bf16.mxu0 0
      %1398 = vmatpush2.bf16.msra.mxu0 0
      %1399 = vmatprep.subr.bf16.mxu0 0
      %1400 = vmatpush2.bf16.msra.mxu0 0
      %1401 = vmatprep.subr.bf16.mxu0 0
      %1402 = vmatpush2.bf16.msra.mxu0 0
      %1403 = vmatprep.mubr.bf16.mxu0 0
      %1404 = vmatmul.mubr.bf16.gmra.mxu0 %v1357
      %v1405 = vpop.f32.mrf.mxu0
      %v1406 = vadd.f32 0.0, %v1405
      %v1407 = vpop.f32.mrf.mxu0
      %v1408 = vpop.f32.mrf.mxu0
      %v1409 = vadd.f32 0.0, %v1408
      %v1410 = vpop.f32.mrf.mxu0
      %1411 = vmatprep.mubr.bf16.mxu0 0
      %1412 = vmatmul.mubr.bf16.gmra.mxu0 %v1360
      %v1413 = vpop.f32.mrf.mxu0
      %v1414 = vadd.f32 0.0, %v1413
      %v1415 = vpop.f32.mrf.mxu0
      %v1416 = vpop.f32.mrf.mxu0
      %v1417 = vadd.f32 0.0, %v1416
      %v1418 = vpop.f32.mrf.mxu0
      %1419 = vmatprep.mubr.bf16.mxu0 0
      %1420 = vmatmul.mubr.bf16.gmra.mxu0 %v1363
      %v1421 = vpop.f32.mrf.mxu0
      %v1422 = vadd.f32 0.0, %v1421
      %v1423 = vpop.f32.mrf.mxu0
      %v1424 = vpop.f32.mrf.mxu0
      %v1425 = vadd.f32 0.0, %v1424
      %v1426 = vpop.f32.mrf.mxu0
      %1427 = vmatprep.mubr.bf16.mxu0 0
      %1428 = vmatmul.mubr.bf16.gmra.mxu0 %v1366
      %v1429 = vpop.f32.mrf.mxu0
      %v1430 = vadd.f32 0.0, %v1429
      %v1431 = vpop.f32.mrf.mxu0
      %v1432 = vpop.f32.mrf.mxu0
      %v1433 = vadd.f32 0.0, %v1432
      %v1434 = vpop.f32.mrf.mxu0
      %1435 = vdwg.mxu0
      %v1436 = vadd.f32 %v1340, %v1406
      %v1437 = vadd.f32 %v1341, %v1409
      %v1438 = vadd.f32 %v1342, %v1414
      %v1439 = vadd.f32 %v1343, %v1417
      %v1440 = vadd.f32 %v1344, %v1422
      %v1441 = vadd.f32 %v1345, %v1425
      %v1442 = vadd.f32 %v1346, %v1430
      %v1443 = vadd.f32 %v1347, %v1433
      %v1445 = vshrl.u32 %v361, 16
      %v1447 = vrot.slane %v1445, 4
      %v1448 = vshll.u32 %v361, 16
      %v1450 = vrot.slane %v1448, 5
      %v1451 = vor.u32 %v1447, %v1450
      %v1452 = vrot.slane %v1451, 4
      %v1454 = vshll.u32 %v362, 16
      %v1456 = vrot.slane %v1454, 5
      %v1457 = vsel %vm603, %v1452, %v1456
      %s1458 = scalar_lea.vmem %s1, 16
      %v1459 = vld [vmem:[%s1458] sm:$0x3]
      %v1460 = vunpack.c.l.b16 %v1457
      %v1461 = vpack.c.b16 %v720, %v719
      %v1462 = vpack.c.b16 %v722, %v721
      %v1463 = vpack.c.b16 %v724, %v723
      %v1464 = vpack.c.b16 %v1460, %v725
      %v1466 = vsel %vm419, %v1461, 0
      %v1469 = vsel %vm419, %v1462, 0
      %v1472 = vsel %vm419, %v1463, 0
      %v1475 = vsel %vm419, %v1464, 0
      %v1478 = vsel %vm432, %v1459, 0
      %1480 = vmatprep.subr.bf16.mxu0 0
      %1481 = vmatpush1.bf16.msra.mxu0 0
      %1482 = vmatprep.subr.bf16.mxu0 0
      %1483 = vmatpush1.bf16.msra.mxu0 0
      %1484 = vmatprep.subr.bf16.mxu0 0
      %1485 = vmatpush1.bf16.msra.mxu0 0
      %1486 = vmatprep.subr.bf16.mxu0 0
      %1487 = vmatpush1.bf16.msra.mxu0 0
      %1488 = vmatprep.subr.bf16.mxu0 0
      %1489 = vmatpush1.bf16.msra.mxu0 0
      %1490 = vmatprep.subr.bf16.mxu0 0
      %1491 = vmatpush1.bf16.msra.mxu0 0
      %1492 = vmatprep.subr.bf16.mxu0 0
      %1493 = vmatpush1.bf16.msra.mxu0 0
      %1494 = vmatprep.subr.bf16.mxu0 0
      %1495 = vmatpush1.bf16.msra.mxu0 %v1478
      %1496 = vmatprep.subr.bf16.mxu0 0
      %1497 = vmatpush2.bf16.msra.mxu0 0
      %1498 = vmatprep.subr.bf16.mxu0 0
      %1499 = vmatpush2.bf16.msra.mxu0 0
      %1500 = vmatprep.subr.bf16.mxu0 0
      %1501 = vmatpush2.bf16.msra.mxu0 0
      %1502 = vmatprep.subr.bf16.mxu0 0
      %1503 = vmatpush2.bf16.msra.mxu0 0
      %1504 = vmatprep.subr.bf16.mxu0 0
      %1505 = vmatpush2.bf16.msra.mxu0 0
      %1506 = vmatprep.subr.bf16.mxu0 0
      %1507 = vmatpush2.bf16.msra.mxu0 0
      %1508 = vmatprep.subr.bf16.mxu0 0
      %1509 = vmatpush2.bf16.msra.mxu0 0
      %1510 = vmatprep.subr.bf16.mxu0 0
      %1511 = vmatpush2.bf16.msra.mxu0 0
      %1512 = vmatprep.mubr.bf16.mxu0 0
      %1513 = vmatmul.mubr.bf16.gmra.mxu0 %v1466
      %v1514 = vpop.f32.mrf.mxu0
      %v1515 = vadd.f32 0.0, %v1514
      %v1516 = vpop.f32.mrf.mxu0
      %v1517 = vpop.f32.mrf.mxu0
      %v1518 = vadd.f32 0.0, %v1517
      %v1519 = vpop.f32.mrf.mxu0
      %1520 = vmatprep.mubr.bf16.mxu0 0
      %1521 = vmatmul.mubr.bf16.gmra.mxu0 %v1469
      %v1522 = vpop.f32.mrf.mxu0
      %v1523 = vadd.f32 0.0, %v1522
      %v1524 = vpop.f32.mrf.mxu0
      %v1525 = vpop.f32.mrf.mxu0
      %v1526 = vadd.f32 0.0, %v1525
      %v1527 = vpop.f32.mrf.mxu0
      %1528 = vmatprep.mubr.bf16.mxu0 0
      %1529 = vmatmul.mubr.bf16.gmra.mxu0 %v1472
      %v1530 = vpop.f32.mrf.mxu0
      %v1531 = vadd.f32 0.0, %v1530
      %v1532 = vpop.f32.mrf.mxu0
      %v1533 = vpop.f32.mrf.mxu0
      %v1534 = vadd.f32 0.0, %v1533
      %v1535 = vpop.f32.mrf.mxu0
      %1536 = vmatprep.mubr.bf16.mxu0 0
      %1537 = vmatmul.mubr.bf16.gmra.mxu0 %v1475
      %v1538 = vpop.f32.mrf.mxu0
      %v1539 = vadd.f32 0.0, %v1538
      %v1540 = vpop.f32.mrf.mxu0
      %v1541 = vpop.f32.mrf.mxu0
      %v1542 = vadd.f32 0.0, %v1541
      %v1543 = vpop.f32.mrf.mxu0
      %1544 = vdwg.mxu0
      %v1545 = vadd.f32 %v1436, %v1515
      %v1546 = vadd.f32 %v1437, %v1518
      %v1547 = vadd.f32 %v1438, %v1523
      %v1548 = vadd.f32 %v1439, %v1526
      %v1549 = vadd.f32 %v1440, %v1531
      %v1550 = vadd.f32 %v1441, %v1534
      %v1551 = vadd.f32 %v1442, %v1539
      %v1552 = vadd.f32 %v1443, %v1542
      %v1553 = vld [vmem:[%s2] sm:$0x1]
      %v1555 = vlaneseq
      %v1556 = vshrl.u32 %v1555, 7
      %v1557 = vsub.s32 0, %v1556
      %v1558 = vrot.slane %v1553, %v1557
      %v1560 = vadd.f32 %v1545, %v1558
      %v1561 = vadd.f32 %v1546, %v1558
      %v1562 = vadd.f32 %v1547, %v1558
      %v1563 = vadd.f32 %v1548, %v1558
      %v1564 = vadd.f32 %v1549, %v1558
      %v1565 = vadd.f32 %v1550, %v1558
      %v1566 = vadd.f32 %v1551, %v1558
      %v1567 = vadd.f32 %v1552, %v1558
      %v1568 = vpack.c.bf16 %v1561, %v1560
      %v1569 = vpack.c.bf16 %v1563, %v1562
      %v1570 = vpack.c.bf16 %v1565, %v1564
      %v1571 = vpack.c.bf16 %v1567, %v1566
      %v1572 = vunpack.c.l.bf16 %v1568
      %v1573 = vunpack.c.h.bf16 %v1568
      %v1574 = vunpack.c.l.bf16 %v1569
      %v1575 = vunpack.c.h.bf16 %v1569
      %v1576 = vunpack.c.l.bf16 %v1570
      %v1577 = vunpack.c.h.bf16 %v1570
      %v1578 = vunpack.c.l.bf16 %v1571
      %v1579 = vunpack.c.h.bf16 %v1571
      %v1584 = vunpack.c.l.b16 %v1568
      %v1585 = vunpack.c.h.b16 %v1568
      %v1586 = vunpack.c.l.b16 %v1569
      %v1587 = vunpack.c.h.b16 %v1569
      %v1588 = vunpack.c.l.b16 %v1570
      %v1589 = vunpack.c.h.b16 %v1570
      %v1590 = vunpack.c.l.b16 %v1571
      %v1591 = vunpack.c.h.b16 %v1571
      %v1592 = vpack.c.b16 %v1584, %v1584
      %v1593 = vpack.c.b16 %v1585, %v1585
      %v1594 = vpack.c.b16 %v1586, %v1586
      %v1595 = vpack.c.b16 %v1587, %v1587
      %v1596 = vpack.c.b16 %v1588, %v1588
      %v1597 = vpack.c.b16 %v1589, %v1589
      %v1598 = vpack.c.b16 %v1590, %v1590
      %v1599 = vpack.c.b16 %v1591, %v1591
      %1608 = vst [vmem:[%s330] sm:$0xf] %v1592
      %1609 = vst [vmem:[%s330 + $0x4] sm:$0xf] %v1593
      %1610 = vst [vmem:[%s330 + $0x8] sm:$0xf] %v1594
      %1611 = vst [vmem:[%s330 + $0xc] sm:$0xf] %v1595
      %1612 = vst [vmem:[%s330 + $0x10] sm:$0xf] %v1596
      %1613 = vst [vmem:[%s330 + $0x14] sm:$0xf] %v1597
      %1614 = vst [vmem:[%s330 + $0x18] sm:$0xf] %v1598
      %1615 = vst [vmem:[%s330 + $0x1c] sm:$0xf] %v1599
      %v1616 = vadd.f32 %v1572, %v1573
      %v1617 = vadd.f32 %v1616, %v1574
      %v1618 = vadd.f32 %v1617, %v1575
      %v1619 = vadd.f32 %v1618, %v1576
      %v1620 = vadd.f32 %v1619, %v1577
      %v1621 = vadd.f32 %v1620, %v1578
      %v1622 = vadd.f32 %v1621, %v1579
      %v1623 = vrot.slane %v1622, 4
      %v1624 = vadd.f32 %v1622, %v1623
      %v1625 = vrot.slane %v1624, 2
      %v1626 = vadd.f32 %v1624, %v1625
      %v1627 = vrot.slane %v1626, 1
      %v1628 = vadd.f32 %v1626, %v1627
      %1629 = vst [vmem:[%s334] sm:$0x1] %v1628
      %v1630 = vmul.f32 %v1572, %v1572
      %v1631 = vmul.f32 %v1573, %v1573
      %v1632 = vmul.f32 %v1574, %v1574
      %v1633 = vmul.f32 %v1575, %v1575
      %v1634 = vmul.f32 %v1576, %v1576
      %v1635 = vmul.f32 %v1577, %v1577
      %v1636 = vmul.f32 %v1578, %v1578
      %v1637 = vmul.f32 %v1579, %v1579
      %v1638 = vadd.f32 %v1630, %v1631
      %v1639 = vadd.f32 %v1638, %v1632
      %v1640 = vadd.f32 %v1639, %v1633
      %v1641 = vadd.f32 %v1640, %v1634
      %v1642 = vadd.f32 %v1641, %v1635
      %v1643 = vadd.f32 %v1642, %v1636
      %v1644 = vadd.f32 %v1643, %v1637
      %v1645 = vrot.slane %v1644, 4
      %v1646 = vadd.f32 %v1644, %v1645
      %v1647 = vrot.slane %v1646, 2
      %v1648 = vadd.f32 %v1646, %v1647
      %v1649 = vrot.slane %v1648, 1
      %v1650 = vadd.f32 %v1648, %v1649
      %1651 = vst [vmem:[%s334 + $0x1] sm:$0x1] %v1650
      %v1652 = vld [vmem:[%s3] sm:$0x3]
      %v1653 = vld [vmem:[%s4] sm:$0x1]
      %v1655 = vlaneseq
      %v1656 = vshrl.u32 %v1655, 7
      %v1657 = vsub.s32 0, %v1656
      %v1658 = vrot.slane %v1653, %v1657
      %v1661 = vsel %vm432, %v1652, 0
      %1663 = vmatprep.subr.bf16.mxu0 0
      %1664 = vmatpush1.bf16.msra.mxu0 0
      %1665 = vmatprep.subr.bf16.mxu0 0
      %1666 = vmatpush1.bf16.msra.mxu0 0
      %1667 = vmatprep.subr.bf16.mxu0 0
      %1668 = vmatpush1.bf16.msra.mxu0 0
      %1669 = vmatprep.subr.bf16.mxu0 0
      %1670 = vmatpush1.bf16.msra.mxu0 0
      %1671 = vmatprep.subr.bf16.mxu0 0
      %1672 = vmatpush1.bf16.msra.mxu0 0
      %1673 = vmatprep.subr.bf16.mxu0 0
      %1674 = vmatpush1.bf16.msra.mxu0 0
      %1675 = vmatprep.subr.bf16.mxu0 0
      %1676 = vmatpush1.bf16.msra.mxu0 0
      %1677 = vmatprep.subr.bf16.mxu0 0
      %1678 = vmatpush1.bf16.msra.mxu0 %v1661
      %1679 = vmatprep.subr.bf16.mxu0 0
      %1680 = vmatpush2.bf16.msra.mxu0 0
      %1681 = vmatprep.subr.bf16.mxu0 0
      %1682 = vmatpush2.bf16.msra.mxu0 0
      %1683 = vmatprep.subr.bf16.mxu0 0
      %1684 = vmatpush2.bf16.msra.mxu0 0
      %1685 = vmatprep.subr.bf16.mxu0 0
      %1686 = vmatpush2.bf16.msra.mxu0 0
      %1687 = vmatprep.subr.bf16.mxu0 0
      %1688 = vmatpush2.bf16.msra.mxu0 0
      %1689 = vmatprep.subr.bf16.mxu0 0
      %1690 = vmatpush2.bf16.msra.mxu0 0
      %1691 = vmatprep.subr.bf16.mxu0 0
      %1692 = vmatpush2.bf16.msra.mxu0 0
      %1693 = vmatprep.subr.bf16.mxu0 0
      %1694 = vmatpush2.bf16.msra.mxu0 0
      %1695 = vmatprep.mubr.bf16.mxu0 0
      %1696 = vmatmul.mubr.bf16.gmra.mxu0 %v951
      %v1697 = vpop.f32.mrf.mxu0
      %v1698 = vadd.f32 %v1658, %v1697
      %v1699 = vpop.f32.mrf.mxu0
      %v1700 = vpop.f32.mrf.mxu0
      %v1701 = vadd.f32 %v1658, %v1700
      %v1702 = vpop.f32.mrf.mxu0
      %1703 = vmatprep.mubr.bf16.mxu0 0
      %1704 = vmatmul.mubr.bf16.gmra.mxu0 %v954
      %v1705 = vpop.f32.mrf.mxu0
      %v1706 = vadd.f32 %v1658, %v1705
      %v1707 = vpop.f32.mrf.mxu0
      %v1708 = vpop.f32.mrf.mxu0
      %v1709 = vadd.f32 %v1658, %v1708
      %v1710 = vpop.f32.mrf.mxu0
      %1711 = vmatprep.mubr.bf16.mxu0 0
      %1712 = vmatmul.mubr.bf16.gmra.mxu0 %v957
      %v1713 = vpop.f32.mrf.mxu0
      %v1714 = vadd.f32 %v1658, %v1713
      %v1715 = vpop.f32.mrf.mxu0
      %v1716 = vpop.f32.mrf.mxu0
      %v1717 = vadd.f32 %v1658, %v1716
      %v1718 = vpop.f32.mrf.mxu0
      %1719 = vmatprep.mubr.bf16.mxu0 0
      %1720 = vmatmul.mubr.bf16.gmra.mxu0 %v960
      %v1721 = vpop.f32.mrf.mxu0
      %v1722 = vadd.f32 %v1658, %v1721
      %v1723 = vpop.f32.mrf.mxu0
      %v1724 = vpop.f32.mrf.mxu0
      %v1725 = vadd.f32 %v1658, %v1724
      %v1726 = vpop.f32.mrf.mxu0
      %1727 = vdwg.mxu0
      %v1728 = vpack.c.bf16 %v1701, %v1698
      %v1729 = vpack.c.bf16 %v1709, %v1706
      %v1730 = vpack.c.bf16 %v1717, %v1714
      %v1731 = vpack.c.bf16 %v1725, %v1722
      %v1732 = vunpack.c.l.bf16 %v1728
      %v1733 = vunpack.c.h.bf16 %v1728
      %v1734 = vunpack.c.l.bf16 %v1729
      %v1735 = vunpack.c.h.bf16 %v1729
      %v1736 = vunpack.c.l.bf16 %v1730
      %v1737 = vunpack.c.h.bf16 %v1730
      %v1738 = vunpack.c.l.bf16 %v1731
      %v1739 = vunpack.c.h.bf16 %v1731
      %v1744 = vunpack.c.l.b16 %v1728
      %v1745 = vunpack.c.h.b16 %v1728
      %v1746 = vunpack.c.l.b16 %v1729
      %v1747 = vunpack.c.h.b16 %v1729
      %v1748 = vunpack.c.l.b16 %v1730
      %v1749 = vunpack.c.h.b16 %v1730
      %v1750 = vunpack.c.l.b16 %v1731
      %v1751 = vunpack.c.h.b16 %v1731
      %v1752 = vpack.c.b16 %v1744, %v1744
      %v1753 = vpack.c.b16 %v1745, %v1745
      %v1754 = vpack.c.b16 %v1746, %v1746
      %v1755 = vpack.c.b16 %v1747, %v1747
      %v1756 = vpack.c.b16 %v1748, %v1748
      %v1757 = vpack.c.b16 %v1749, %v1749
      %v1758 = vpack.c.b16 %v1750, %v1750
      %v1759 = vpack.c.b16 %v1751, %v1751
      %1768 = vst [vmem:[%s339] sm:$0xf] %v1752
      %1769 = vst [vmem:[%s339 + $0x4] sm:$0xf] %v1753
      %1770 = vst [vmem:[%s339 + $0x8] sm:$0xf] %v1754
      %1771 = vst [vmem:[%s339 + $0xc] sm:$0xf] %v1755
      %1772 = vst [vmem:[%s339 + $0x10] sm:$0xf] %v1756
      %1773 = vst [vmem:[%s339 + $0x14] sm:$0xf] %v1757
      %1774 = vst [vmem:[%s339 + $0x18] sm:$0xf] %v1758
      %1775 = vst [vmem:[%s339 + $0x1c] sm:$0xf] %v1759
      %v1776 = vadd.f32 %v1732, %v1733
      %v1777 = vadd.f32 %v1776, %v1734
      %v1778 = vadd.f32 %v1777, %v1735
      %v1779 = vadd.f32 %v1778, %v1736
      %v1780 = vadd.f32 %v1779, %v1737
      %v1781 = vadd.f32 %v1780, %v1738
      %v1782 = vadd.f32 %v1781, %v1739
      %v1783 = vrot.slane %v1782, 4
      %v1784 = vadd.f32 %v1782, %v1783
      %v1785 = vrot.slane %v1784, 2
      %v1786 = vadd.f32 %v1784, %v1785
      %v1787 = vrot.slane %v1786, 1
      %v1788 = vadd.f32 %v1786, %v1787
      %1789 = vst [vmem:[%s343] sm:$0x1] %v1788
      %v1790 = vmul.f32 %v1732, %v1732
      %v1791 = vmul.f32 %v1733, %v1733
      %v1792 = vmul.f32 %v1734, %v1734
      %v1793 = vmul.f32 %v1735, %v1735
      %v1794 = vmul.f32 %v1736, %v1736
      %v1795 = vmul.f32 %v1737, %v1737
      %v1796 = vmul.f32 %v1738, %v1738
      %v1797 = vmul.f32 %v1739, %v1739
      %v1798 = vadd.f32 %v1790, %v1791
      %v1799 = vadd.f32 %v1798, %v1792
      %v1800 = vadd.f32 %v1799, %v1793
      %v1801 = vadd.f32 %v1800, %v1794
      %v1802 = vadd.f32 %v1801, %v1795
      %v1803 = vadd.f32 %v1802, %v1796
      %v1804 = vadd.f32 %v1803, %v1797
      %v1805 = vrot.slane %v1804, 4
      %v1806 = vadd.f32 %v1804, %v1805
      %v1807 = vrot.slane %v1806, 2
      %v1808 = vadd.f32 %v1806, %v1807
      %v1809 = vrot.slane %v1808, 1
      %v1810 = vadd.f32 %v1808, %v1809
      %1811 = vst [vmem:[%s343 + $0x1] sm:$0x1] %v1810
      %p1812 = scmp.lt.s32.totalorder %s20, 1
      %s1813 = scalar_select %p1812, %s20, 1
      %s1814 = smul.addr %s1813, 8
      %s1815 = smul.addr %s1814, 4
      %s1816 = scalar_lea.vmem %s5, %s1815
      %p1817 = scmp.lt.s32.totalorder %s20, 1
      %s1818 = scalar_select %p1817, %s20, 1
      %s1819 = smul.addr %s1818, 2
      %s1820 = scalar_lea.vmem %s6, %s1819
      %p1821 = scmp.lt.s32.totalorder %s20, 1
      %s1822 = scalar_select %p1821, %s20, 1
      %s1823 = smul.addr %s1822, 8
      %s1824 = smul.addr %s1823, 4
      %s1825 = scalar_lea.vmem %s7, %s1824
      %p1826 = scmp.lt.s32.totalorder %s20, 1
      %s1827 = scalar_select %p1826, %s20, 1
      %s1828 = smul.addr %s1827, 2
      %s1829 = scalar_lea.vmem %s8, %s1828
      // Predicated region
      $region41: #{resblk_forward.4} parent=39 // pred_check
        %p1830 = pneg %p148
      $region42: #{resblk_forward.4} parent=39 // pred_check_branch
        %1832 = sbr.rel (%p1830) target = $region44
      $region43: #{resblk_forward.4} parent=39 // pred_region
        _
      $region44: #{resblk_forward.4} parent=39 // pred_fallthru
        _
      // Predicated region
      $region45: #{resblk_forward.4} parent=39 // pred_check
        %p1833 = pneg %p174
      $region46: #{resblk_forward.4} parent=39 // pred_check_branch
        %1835 = sbr.rel (%p1833) target = $region48
      $region47: #{resblk_forward.4} parent=39 // pred_region
        _
      $region48: #{resblk_forward.4} parent=39 // pred_fallthru
        _
      // Predicated region
      $region49: #{resblk_forward.4} parent=39 // pred_check
        %p1836 = pneg %p200
      $region50: #{resblk_forward.4} parent=39 // pred_check_branch
        %1838 = sbr.rel (%p1836) target = $region52
      $region51: #{resblk_forward.4} parent=39 // pred_region
        _
      $region52: #{resblk_forward.4} parent=39 // pred_fallthru
        _
      // Predicated region
      $region53: #{resblk_forward.4} parent=39 // pred_check
        %p1839 = pneg %p226
      $region54: #{resblk_forward.4} parent=39 // pred_check_branch
        %1841 = sbr.rel (%p1839) target = $region56
      $region55: #{resblk_forward.4} parent=39 // pred_region
        _
      $region56: #{resblk_forward.4} parent=39 // pred_fallthru
        _
    $region40: #{resblk_forward.4} parent=5 // pred_fallthru
      _
    %p1842 = scmp.le.s32.totalorder 2, %s15
    // Predicated region
    $region57: #{resblk_forward.4} parent=5 // pred_check
      %p1843 = pneg %p1842
    $region58: #{resblk_forward.4} parent=5 // pred_check_branch
      %1845 = sbr.rel (%p1843) target = $region60
    $region59: #{resblk_forward.4} parent=5 // pred_region
      %s1846 = ssub.s32 %s15, 2
      // Predicated region
      $region61: #{resblk_forward.4} parent=59 // pred_check
        %p1847 = pneg %p154
      $region62: #{resblk_forward.4} parent=59 // pred_check_branch
        %1849 = sbr.rel (%p1847) target = $region64
      $region63: #{resblk_forward.4} parent=59 // pred_region
        %p1850 = scmp.lt.s32.totalorder %s21, 1
        %s1851 = scalar_select %p1850, %s21, 1
        %s1852 = smul.addr %s1851, 8
        %s1853 = smul.addr %s1852, 4
        %s1854 = scalar_lea.vmem %s5, %s1853
      $region64: #{resblk_forward.4} parent=59 // pred_fallthru
        _
      // Predicated region
      $region65: #{resblk_forward.4} parent=59 // pred_check
        %p1855 = pneg %p180
      $region66: #{resblk_forward.4} parent=59 // pred_check_branch
        %1857 = sbr.rel (%p1855) target = $region68
      $region67: #{resblk_forward.4} parent=59 // pred_region
        %p1858 = scmp.lt.s32.totalorder %s21, 1
        %s1859 = scalar_select %p1858, %s21, 1
        %s1860 = smul.addr %s1859, 2
        %s1861 = scalar_lea.vmem %s6, %s1860
      $region68: #{resblk_forward.4} parent=59 // pred_fallthru
        _
      // Predicated region
      $region69: #{resblk_forward.4} parent=59 // pred_check
        %p1862 = pneg %p206
      $region70: #{resblk_forward.4} parent=59 // pred_check_branch
        %1864 = sbr.rel (%p1862) target = $region72
      $region71: #{resblk_forward.4} parent=59 // pred_region
        %p1865 = scmp.lt.s32.totalorder %s21, 1
        %s1866 = scalar_select %p1865, %s21, 1
        %s1867 = smul.addr %s1866, 8
        %s1868 = smul.addr %s1867, 4
        %s1869 = scalar_lea.vmem %s7, %s1868
      $region72: #{resblk_forward.4} parent=59 // pred_fallthru
        _
      // Predicated region
      $region73: #{resblk_forward.4} parent=59 // pred_check
        %p1870 = pneg %p232
      $region74: #{resblk_forward.4} parent=59 // pred_check_branch
        %1872 = sbr.rel (%p1870) target = $region76
      $region75: #{resblk_forward.4} parent=59 // pred_region
        %p1873 = scmp.lt.s32.totalorder %s21, 1
        %s1874 = scalar_select %p1873, %s21, 1
        %s1875 = smul.addr %s1874, 2
        %s1876 = scalar_lea.vmem %s8, %s1875
      $region76: #{resblk_forward.4} parent=59 // pred_fallthru
        _
    $region60: #{resblk_forward.4} parent=5 // pred_fallthru
      _
  $region6: #{resblk_forward.4} parent=0 // loop_footer
    %s19 = sadd.s32 1, %s15
  $region7: #{resblk_forward.4} parent=0 // loop_footer_branch
    %14 = sbr.rel target = $region3
  $region8: #{resblk_forward.4} parent=0 // loop_exit
    _

// kernel: resblk_forward.7
$region0: #{resblk_forward.7}
  #allocation0 [shape = 'u32[]', space=smem, size = 0x4, offset = 0x4, fixed_abs, tag = 'smem constant byte address 0x4 - core index']
  #allocation1 [shape = 'u32[144,128]{1,0:T(1,128)}', space=vmem, size = 0x12000, scoped, tag = 'internal scratch']
  %s0 = inlined_call_operand.vmem [shape: bf16[2,8,8,128], index: 0, kind: input, shape index: {}]
  %s1 = inlined_call_operand.vmem [shape: f32[2,2,128], index: 1, kind: input, shape index: {}]
  %s2 = inlined_call_operand.vmem [shape: f32[1,128], index: 2, kind: input, shape index: {}]
  %s3 = inlined_call_operand.vmem [shape: f32[1,128], index: 3, kind: input, shape index: {}]
  %s4 = inlined_call_operand.vmem [shape: bf16[2,8,8,128], index: 4, kind: input, shape index: {}]
  %s5 = inlined_call_operand.vmem [shape: f32[2,2,128], index: 5, kind: input, shape index: {}]
  %s6 = inlined_call_operand.vmem [shape: f32[1,128], index: 6, kind: input, shape index: {}]
  %s7 = inlined_call_operand.vmem [shape: f32[1,128], index: 7, kind: input, shape index: {}]
  %s8 = inlined_call_operand.vmem [shape: f32[2,8,8,128], index: 8, kind: output, shape index: {}]
  %s9 = sld [smem:[#allocation0]]
  $region65: #{resblk_forward.7} parent=0
    _
  %s11 = ssub.s32 1, %s9
  %s12 = scalar_select 0, %s11, %s9
  loop: start=0, step=1, limit=4
  $region2: #{resblk_forward.7} parent=0 // loop_pre_header
    _
  $region3: #{resblk_forward.7} parent=0 // loop_header
    %s14 = sphi 0, %s18
    %p15 = scmp.ge.s32.totalorder %s14, 4
    %s24 = sphi 0, %s26
    %s27 = sphi 0, %s24
    %s28 = sphi 0, %s27
    %s44 = sphi 0, %s28
    %s48 = sphi 0, %s48
    %s50 = sphi 0, %s48
    %s51 = sphi 0, %s50
    %s65 = sphi 0, %s51
    %s69 = sphi 0, %s69
    %s71 = sphi 0, %s69
    %s72 = sphi 0, %s71
    %s86 = sphi 0, %s72
    %s90 = sphi 0, %s90
    %s92 = sphi 0, %s90
    %s93 = sphi 0, %s92
    %s107 = sphi 0, %s93
    %s113 = sphi 0, %s115
    %s116 = sphi 0, %s113
    %s117 = sphi 0, %s116
    %s133 = sphi 0, %s117
    %s137 = sphi 0, %s137
    %s139 = sphi 0, %s137
    %s140 = sphi 0, %s139
    %s154 = sphi 0, %s140
    %s158 = sphi 0, %s158
    %s160 = sphi 0, %s158
    %s161 = sphi 0, %s160
    %s175 = sphi 0, %s161
    %s179 = sphi 0, %s179
    %s181 = sphi 0, %s179
    %s182 = sphi 0, %s181
    %s196 = sphi 0, %s182
    %s202 = sphi 0, %s204
    %s205 = sphi 0, %s202
    %s206 = sphi 0, %s205
    %s222 = sphi 0, %s206
  $region4: #{resblk_forward.7} parent=0 // loop_header_branch
    %17 = sbr.rel (%p15) target = $region8
  $region5: #{resblk_forward.7} parent=0 // loop_body
    %s19 = ssub.s32 %s14, 1
    %s20 = ssub.s32 %s14, 2
    %s21 = sadd.s32 %s14, 1
    %s22 = ssub.s32 %s14, %s21
    %p23 = scmp.eq.s32.totalorder %s22, 0
    %s25 = sadd.s32 %s24, 1
    %s26 = scalar_select %p23, %s24, %s25
    %p29 = pneg %p23
    %p30 = scmp.eq.s32.totalorder %s14, 1
    %p31 = por %p29, %p30
    %p32 = scmp.ne.s32.totalorder %s24, %s27
    %p33 = scmp.eq.s32.totalorder %s14, 0
    %p34 = por %p32, %p33
    %p35 = scmp.ne.s32.totalorder %s24, %s27
    %p36 = scmp.eq.s32.totalorder %s19, 1
    %p37 = por %p35, %p36
    %p38 = scmp.ne.s32.totalorder %s27, %s28
    %p39 = scmp.eq.s32.totalorder %s19, 0
    %p40 = por %p38, %p39
    %p41 = scmp.ne.s32.totalorder %s27, %s28
    %p42 = scmp.eq.s32.totalorder %s20, 1
    %p43 = por %p41, %p42
    %p45 = scmp.ne.s32.totalorder %s28, %s44
    %p46 = scmp.eq.s32.totalorder %s20, 0
    %p47 = por %p45, %p46
    %s49 = sadd.s32 %s48, 1
    %p52 = scmp.eq.s32.totalorder %s14, 1
    %p53 = scmp.ne.s32.totalorder %s48, %s50
    %p54 = scmp.eq.s32.totalorder %s14, 0
    %p55 = por %p53, %p54
    %p56 = scmp.ne.s32.totalorder %s48, %s50
    %p57 = scmp.eq.s32.totalorder %s19, 1
    %p58 = por %p56, %p57
    %p59 = scmp.ne.s32.totalorder %s50, %s51
    %p60 = scmp.eq.s32.totalorder %s19, 0
    %p61 = por %p59, %p60
    %p62 = scmp.ne.s32.totalorder %s50, %s51
    %p63 = scmp.eq.s32.totalorder %s20, 1
    %p64 = por %p62, %p63
    %p66 = scmp.ne.s32.totalorder %s51, %s65
    %p67 = scmp.eq.s32.totalorder %s20, 0
    %p68 = por %p66, %p67
    %s70 = sadd.s32 %s69, 1
    %p73 = scmp.eq.s32.totalorder %s14, 1
    %p74 = scmp.ne.s32.totalorder %s69, %s71
    %p75 = scmp.eq.s32.totalorder %s14, 0
    %p76 = por %p74, %p75
    %p77 = scmp.ne.s32.totalorder %s69, %s71
    %p78 = scmp.eq.s32.totalorder %s19, 1
    %p79 = por %p77, %p78
    %p80 = scmp.ne.s32.totalorder %s71, %s72
    %p81 = scmp.eq.s32.totalorder %s19, 0
    %p82 = por %p80, %p81
    %p83 = scmp.ne.s32.totalorder %s71, %s72
    %p84 = scmp.eq.s32.totalorder %s20, 1
    %p85 = por %p83, %p84
    %p87 = scmp.ne.s32.totalorder %s72, %s86
    %p88 = scmp.eq.s32.totalorder %s20, 0
    %p89 = por %p87, %p88
    %s91 = sadd.s32 %s90, 1
    %p94 = scmp.eq.s32.totalorder %s14, 1
    %p95 = scmp.ne.s32.totalorder %s90, %s92
    %p96 = scmp.eq.s32.totalorder %s14, 0
    %p97 = por %p95, %p96
    %p98 = scmp.ne.s32.totalorder %s90, %s92
    %p99 = scmp.eq.s32.totalorder %s19, 1
    %p100 = por %p98, %p99
    %p101 = scmp.ne.s32.totalorder %s92, %s93
    %p102 = scmp.eq.s32.totalorder %s19, 0
    %p103 = por %p101, %p102
    %p104 = scmp.ne.s32.totalorder %s92, %s93
    %p105 = scmp.eq.s32.totalorder %s20, 1
    %p106 = por %p104, %p105
    %p108 = scmp.ne.s32.totalorder %s93, %s107
    %p109 = scmp.eq.s32.totalorder %s20, 0
    %p110 = por %p108, %p109
    %s111 = ssub.s32 %s14, %s21
    %p112 = scmp.eq.s32.totalorder %s111, 0
    %s114 = sadd.s32 %s113, 1
    %s115 = scalar_select %p112, %s113, %s114
    %p118 = pneg %p112
    %p119 = scmp.eq.s32.totalorder %s14, 1
    %p120 = por %p118, %p119
    %p121 = scmp.ne.s32.totalorder %s113, %s116
    %p122 = scmp.eq.s32.totalorder %s14, 0
    %p123 = por %p121, %p122
    %p124 = scmp.ne.s32.totalorder %s113, %s116
    %p125 = scmp.eq.s32.totalorder %s19, 1
    %p126 = por %p124, %p125
    %p127 = scmp.ne.s32.totalorder %s116, %s117
    %p128 = scmp.eq.s32.totalorder %s19, 0
    %p129 = por %p127, %p128
    %p130 = scmp.ne.s32.totalorder %s116, %s117
    %p131 = scmp.eq.s32.totalorder %s20, 1
    %p132 = por %p130, %p131
    %p134 = scmp.ne.s32.totalorder %s117, %s133
    %p135 = scmp.eq.s32.totalorder %s20, 0
    %p136 = por %p134, %p135
    %s138 = sadd.s32 %s137, 1
    %p141 = scmp.eq.s32.totalorder %s14, 1
    %p142 = scmp.ne.s32.totalorder %s137, %s139
    %p143 = scmp.eq.s32.totalorder %s14, 0
    %p144 = por %p142, %p143
    %p145 = scmp.ne.s32.totalorder %s137, %s139
    %p146 = scmp.eq.s32.totalorder %s19, 1
    %p147 = por %p145, %p146
    %p148 = scmp.ne.s32.totalorder %s139, %s140
    %p149 = scmp.eq.s32.totalorder %s19, 0
    %p150 = por %p148, %p149
    %p151 = scmp.ne.s32.totalorder %s139, %s140
    %p152 = scmp.eq.s32.totalorder %s20, 1
    %p153 = por %p151, %p152
    %p155 = scmp.ne.s32.totalorder %s140, %s154
    %p156 = scmp.eq.s32.totalorder %s20, 0
    %p157 = por %p155, %p156
    %s159 = sadd.s32 %s158, 1
    %p162 = scmp.eq.s32.totalorder %s14, 1
    %p163 = scmp.ne.s32.totalorder %s158, %s160
    %p164 = scmp.eq.s32.totalorder %s14, 0
    %p165 = por %p163, %p164
    %p166 = scmp.ne.s32.totalorder %s158, %s160
    %p167 = scmp.eq.s32.totalorder %s19, 1
    %p168 = por %p166, %p167
    %p169 = scmp.ne.s32.totalorder %s160, %s161
    %p170 = scmp.eq.s32.totalorder %s19, 0
    %p171 = por %p169, %p170
    %p172 = scmp.ne.s32.totalorder %s160, %s161
    %p173 = scmp.eq.s32.totalorder %s20, 1
    %p174 = por %p172, %p173
    %p176 = scmp.ne.s32.totalorder %s161, %s175
    %p177 = scmp.eq.s32.totalorder %s20, 0
    %p178 = por %p176, %p177
    %s180 = sadd.s32 %s179, 1
    %p183 = scmp.eq.s32.totalorder %s14, 1
    %p184 = scmp.ne.s32.totalorder %s179, %s181
    %p185 = scmp.eq.s32.totalorder %s14, 0
    %p186 = por %p184, %p185
    %p187 = scmp.ne.s32.totalorder %s179, %s181
    %p188 = scmp.eq.s32.totalorder %s19, 1
    %p189 = por %p187, %p188
    %p190 = scmp.ne.s32.totalorder %s181, %s182
    %p191 = scmp.eq.s32.totalorder %s19, 0
    %p192 = por %p190, %p191
    %p193 = scmp.ne.s32.totalorder %s181, %s182
    %p194 = scmp.eq.s32.totalorder %s20, 1
    %p195 = por %p193, %p194
    %p197 = scmp.ne.s32.totalorder %s182, %s196
    %p198 = scmp.eq.s32.totalorder %s20, 0
    %p199 = por %p197, %p198
    %s200 = ssub.s32 %s14, %s21
    %p201 = scmp.eq.s32.totalorder %s200, 0
    %s203 = sadd.s32 %s202, 1
    %s204 = scalar_select %p201, %s202, %s203
    %p207 = pneg %p201
    %p208 = scmp.eq.s32.totalorder %s14, 1
    %p209 = por %p207, %p208
    %p210 = scmp.ne.s32.totalorder %s202, %s205
    %p211 = scmp.eq.s32.totalorder %s14, 0
    %p212 = por %p210, %p211
    %p213 = scmp.ne.s32.totalorder %s202, %s205
    %p214 = scmp.eq.s32.totalorder %s19, 1
    %p215 = por %p213, %p214
    %p216 = scmp.ne.s32.totalorder %s205, %s206
    %p217 = scmp.eq.s32.totalorder %s19, 0
    %p218 = por %p216, %p217
    %p219 = scmp.ne.s32.totalorder %s205, %s206
    %p220 = scmp.eq.s32.totalorder %s20, 1
    %p221 = por %p219, %p220
    %p223 = scmp.ne.s32.totalorder %s206, %s222
    %p224 = scmp.eq.s32.totalorder %s20, 0
    %p225 = por %p223, %p224
    %p226 = scmp.le.s32.totalorder 1, %s14
    %p227 = scmp.lt.s32.totalorder %s14, 3
    %p228 = pnand %p226, %p227
    %p229 = pneg %p228
    // Predicated region
    $region9: #{resblk_forward.7} parent=5 // pred_check
      _
    $region10: #{resblk_forward.7} parent=5 // pred_check_branch
      %231 = sbr.rel (%p228) target = $region12
    $region11: #{resblk_forward.7} parent=5 // pred_region
      %s232 = ssub.s32 %s14, 1
      // Predicated region
      $region13: #{resblk_forward.7} parent=11 // pred_check
        %p233 = pneg %p61
      $region14: #{resblk_forward.7} parent=11 // pred_check_branch
        %235 = sbr.rel (%p233) target = $region16
      $region15: #{resblk_forward.7} parent=11 // pred_region
        _
      $region16: #{resblk_forward.7} parent=11 // pred_fallthru
        _
      // Predicated region
      $region17: #{resblk_forward.7} parent=11 // pred_check
        %p236 = pneg %p82
      $region18: #{resblk_forward.7} parent=11 // pred_check_branch
        %238 = sbr.rel (%p236) target = $region20
      $region19: #{resblk_forward.7} parent=11 // pred_region
        _
      $region20: #{resblk_forward.7} parent=11 // pred_fallthru
        _
      // Predicated region
      $region21: #{resblk_forward.7} parent=11 // pred_check
        %p239 = pneg %p103
      $region22: #{resblk_forward.7} parent=11 // pred_check_branch
        %241 = sbr.rel (%p239) target = $region24
      $region23: #{resblk_forward.7} parent=11 // pred_region
        _
      $region24: #{resblk_forward.7} parent=11 // pred_fallthru
        _
      // Predicated region
      $region25: #{resblk_forward.7} parent=11 // pred_check
        %p242 = pneg %p150
      $region26: #{resblk_forward.7} parent=11 // pred_check_branch
        %244 = sbr.rel (%p242) target = $region28
      $region27: #{resblk_forward.7} parent=11 // pred_region
        _
      $region28: #{resblk_forward.7} parent=11 // pred_fallthru
        _
      // Predicated region
      $region29: #{resblk_forward.7} parent=11 // pred_check
        %p245 = pneg %p171
      $region30: #{resblk_forward.7} parent=11 // pred_check_branch
        %247 = sbr.rel (%p245) target = $region32
      $region31: #{resblk_forward.7} parent=11 // pred_region
        _
      $region32: #{resblk_forward.7} parent=11 // pred_fallthru
        _
      // Predicated region
      $region33: #{resblk_forward.7} parent=11 // pred_check
        %p248 = pneg %p192
      $region34: #{resblk_forward.7} parent=11 // pred_check_branch
        %250 = sbr.rel (%p248) target = $region36
      $region35: #{resblk_forward.7} parent=11 // pred_region
        _
      $region36: #{resblk_forward.7} parent=11 // pred_fallthru
        _
    $region12: #{resblk_forward.7} parent=5 // pred_fallthru
      _
    %p251 = scmp.lt.s32.totalorder %s14, 2
    // Predicated region
    $region37: #{resblk_forward.7} parent=5 // pred_check
      %p252 = pneg %p251
    $region38: #{resblk_forward.7} parent=5 // pred_check_branch
      %254 = sbr.rel (%p252) target = $region40
    $region39: #{resblk_forward.7} parent=5 // pred_region
      // Predicated region
      $region41: #{resblk_forward.7} parent=39 // pred_check
        %p255 = pneg %p34
      $region42: #{resblk_forward.7} parent=39 // pred_check_branch
        %257 = sbr.rel (%p255) target = $region44
      $region43: #{resblk_forward.7} parent=39 // pred_region
        %p258 = scmp.lt.s32.totalorder %s14, 1
        %s259 = scalar_select %p258, %s14, 1
        %s260 = smul.addr %s259, 8
        %s261 = smul.addr %s260, 4
        %s262 = scalar_lea.vmem %s0, %s261
      $region44: #{resblk_forward.7} parent=39 // pred_fallthru
        _
      // Predicated region
      $region45: #{resblk_forward.7} parent=39 // pred_check
        %p263 = pneg %p123
      $region46: #{resblk_forward.7} parent=39 // pred_check_branch
        %265 = sbr.rel (%p263) target = $region48
      $region47: #{resblk_forward.7} parent=39 // pred_region
        %p266 = scmp.lt.s32.totalorder %s14, 1
        %s267 = scalar_select %p266, %s14, 1
        %s268 = smul.addr %s267, 8
        %s269 = smul.addr %s268, 4
        %s270 = scalar_lea.vmem %s4, %s269
      $region48: #{resblk_forward.7} parent=39 // pred_fallthru
        _
    $region40: #{resblk_forward.7} parent=5 // pred_fallthru
      _
    %p271 = scmp.le.s32.totalorder 1, %s14
    %p272 = scmp.lt.s32.totalorder %s14, 3
    %p273 = pnand %p271, %p272
    %p274 = pneg %p273
    // Predicated region
    $region49: #{resblk_forward.7} parent=5 // pred_check
      _
    $region50: #{resblk_forward.7} parent=5 // pred_check_branch
      %276 = sbr.rel (%p273) target = $region52
    $region51: #{resblk_forward.7} parent=5 // pred_region
      %s277 = ssub.s32 %s14, 1
      %p278 = scmp.lt.s32.totalorder %s19, 1
      %s279 = scalar_select %p278, %s19, 1
      %s280 = smul.addr %s279, 8
      %s281 = smul.addr %s280, 4
      %s282 = scalar_lea.vmem %s0, %s281
      %p283 = pneg %p40
      %p284 = pneg %p37
      %p285 = pneg %p61
      %p286 = pneg %p58
      %p287 = pneg %p82
      %p288 = pneg %p79
      %p289 = pneg %p103
      %p290 = pneg %p100
      %p291 = scmp.lt.s32.totalorder %s19, 1
      %s292 = scalar_select %p291, %s19, 1
      %s293 = smul.addr %s292, 8
      %s294 = smul.addr %s293, 4
      %s295 = scalar_lea.vmem %s4, %s294
      %p296 = pneg %p129
      %p297 = pneg %p126
      %p298 = pneg %p150
      %p299 = pneg %p147
      %p300 = pneg %p171
      %p301 = pneg %p168
      %p302 = pneg %p192
      %p303 = pneg %p189
      %p304 = pneg %p218
      %p305 = pneg %p215
      %p306 = scmp.lt.s32.totalorder %s19, 1
      %s307 = scalar_select %p306, %s19, 1
      %s308 = smul.addr %s307, 8
      %s309 = smul.addr %s308, 8
      %s310 = scalar_lea.vmem %s8, %s309
      %p311 = scmp.lt.s32.totalorder %s19, 1
      %s312 = scalar_select %p311, %s19, 1
      %s313 = smul.addr %s312, 8
      %s314 = smul.addr %s313, 4
      %s315 = scalar_lea.vmem %s0, %s314
      %p316 = scmp.lt.s32.totalorder %s19, 1
      %s317 = scalar_select %p316, %s19, 1
      %s318 = smul.addr %s317, 8
      %s319 = smul.addr %s318, 4
      %s320 = scalar_lea.vmem %s4, %s319
      %p321 = scmp.lt.s32.totalorder %s19, 1
      %s322 = scalar_select %p321, %s19, 1
      %s323 = smul.addr %s322, 8
      %s324 = smul.addr %s323, 8
      %s325 = scalar_lea.vmem %s8, %s324
      %v326 = vld [vmem:[%s1] sm:$0x3]
      %v327 = vld [vmem:[%s1 + $0x2] sm:$0x3]
      %v328 = vld [vmem:[%s2] sm:$0x1]
      %v329 = vld [vmem:[%s3] sm:$0x1]
      %vm330 = vcmask 1041408
      %v331 = vsel %vm330, %v326, 0.0
      %v332 = vsel %vm330, %v327, 0.0
      %v333 = vadd.f32 %v331, %v332
      %v334 = vmul.f32 %v333, 0.0078125
      %v335 = vmul.f32 %v334, %v334
      %v337 = vrot.slane %v335, 7
      %v339 = vsub.f32 %v334, %v337
      %v340 = vadd.f32 %v339, 1e-05
      %v341 = vrsqrt.pop %v340
      %v344 = vunpack.c.l.s4 1966171168
      %v345 = vunpack.c.0.s8 %v344
      %v346 = vlaneseq
      %v347 = vshrl.u32 %v346, 7
      %v348 = vsub.s32 %v345, %v347
      %v349 = vrot.slane %v341, %v348
      %v350 = vcombine.high %v349, %v349
      %v352 = vunpack.c.l.s4 1966171168
      %v353 = vunpack.c.0.s8 %v352
      %v354 = vlaneseq
      %v355 = vshrl.u32 %v354, 7
      %v356 = vsub.s32 %v353, %v355
      %v357 = vrot.slane %v350, %v356
      %v359 = vmul.f32 %v328, %v357
      %v360 = vmul.f32 %v334, %v359
      %v361 = vsub.f32 %v329, %v360
      %v362 = vld [vmem:[%s315] sm:$0xf]
      %v363 = vld [vmem:[%s315 + $0x4] sm:$0xf]
      %v364 = vld [vmem:[%s315 + $0x8] sm:$0xf]
      %v365 = vld [vmem:[%s315 + $0xc] sm:$0xf]
      %v366 = vld [vmem:[%s315 + $0x10] sm:$0xf]
      %v367 = vld [vmem:[%s315 + $0x14] sm:$0xf]
      %v368 = vld [vmem:[%s315 + $0x18] sm:$0xf]
      %v369 = vld [vmem:[%s315 + $0x1c] sm:$0xf]
      %v370 = vunpack.c.l.bf16 %v362
      %v371 = vunpack.c.l.bf16 %v363
      %v372 = vunpack.c.l.bf16 %v364
      %v373 = vunpack.c.l.bf16 %v365
      %v374 = vunpack.c.l.bf16 %v366
      %v375 = vunpack.c.l.bf16 %v367
      %v376 = vunpack.c.l.bf16 %v368
      %v377 = vunpack.c.l.bf16 %v369
      %v379 = vlaneseq
      %v380 = vshrl.u32 %v379, 7
      %v381 = vsub.s32 0, %v380
      %v382 = vrot.slane %v359, %v381
      %v384 = vmul.f32 %v370, %v382
      %v385 = vmul.f32 %v371, %v382
      %v386 = vmul.f32 %v372, %v382
      %v387 = vmul.f32 %v373, %v382
      %v388 = vmul.f32 %v374, %v382
      %v389 = vmul.f32 %v375, %v382
      %v390 = vmul.f32 %v376, %v382
      %v391 = vmul.f32 %v377, %v382
      %v393 = vlaneseq
      %v394 = vshrl.u32 %v393, 7
      %v395 = vsub.s32 0, %v394
      %v396 = vrot.slane %v361, %v395
      %v398 = vadd.f32 %v384, %v396
      %v399 = vadd.f32 %v385, %v396
      %v400 = vadd.f32 %v386, %v396
      %v401 = vadd.f32 %v387, %v396
      %v402 = vadd.f32 %v388, %v396
      %v403 = vadd.f32 %v389, %v396
      %v404 = vadd.f32 %v390, %v396
      %v405 = vadd.f32 %v391, %v396
      %v406 = vld [vmem:[%s5] sm:$0x3]
      %v407 = vld [vmem:[%s5 + $0x2] sm:$0x3]
      %v408 = vld [vmem:[%s6] sm:$0x1]
      %v409 = vld [vmem:[%s7] sm:$0x1]
      %v410 = vsel %vm330, %v406, 0.0
      %v411 = vsel %vm330, %v407, 0.0
      %v412 = vadd.f32 %v410, %v411
      %v413 = vmul.f32 %v412, 0.0078125
      %v414 = vmul.f32 %v413, %v413
      %v416 = vrot.slane %v414, 7
      %v418 = vsub.f32 %v413, %v416
      %v419 = vadd.f32 %v418, 1e-05
      %v420 = vrsqrt.pop %v419
      %v423 = vunpack.c.l.s4 1966171168
      %v424 = vunpack.c.0.s8 %v423
      %v425 = vlaneseq
      %v426 = vshrl.u32 %v425, 7
      %v427 = vsub.s32 %v424, %v426
      %v428 = vrot.slane %v420, %v427
      %v429 = vcombine.high %v428, %v428
      %v431 = vunpack.c.l.s4 1966171168
      %v432 = vunpack.c.0.s8 %v431
      %v433 = vlaneseq
      %v434 = vshrl.u32 %v433, 7
      %v435 = vsub.s32 %v432, %v434
      %v436 = vrot.slane %v429, %v435
      %v438 = vmul.f32 %v408, %v436
      %v439 = vmul.f32 %v413, %v438
      %v440 = vsub.f32 %v409, %v439
      %v441 = vld [vmem:[%s320] sm:$0xf]
      %v442 = vld [vmem:[%s320 + $0x4] sm:$0xf]
      %v443 = vld [vmem:[%s320 + $0x8] sm:$0xf]
      %v444 = vld [vmem:[%s320 + $0xc] sm:$0xf]
      %v445 = vld [vmem:[%s320 + $0x10] sm:$0xf]
      %v446 = vld [vmem:[%s320 + $0x14] sm:$0xf]
      %v447 = vld [vmem:[%s320 + $0x18] sm:$0xf]
      %v448 = vld [vmem:[%s320 + $0x1c] sm:$0xf]
      %v449 = vunpack.c.l.bf16 %v441
      %v450 = vunpack.c.l.bf16 %v442
      %v451 = vunpack.c.l.bf16 %v443
      %v452 = vunpack.c.l.bf16 %v444
      %v453 = vunpack.c.l.bf16 %v445
      %v454 = vunpack.c.l.bf16 %v446
      %v455 = vunpack.c.l.bf16 %v447
      %v456 = vunpack.c.l.bf16 %v448
      %v458 = vlaneseq
      %v459 = vshrl.u32 %v458, 7
      %v460 = vsub.s32 0, %v459
      %v461 = vrot.slane %v438, %v460
      %v463 = vmul.f32 %v449, %v461
      %v464 = vmul.f32 %v450, %v461
      %v465 = vmul.f32 %v451, %v461
      %v466 = vmul.f32 %v452, %v461
      %v467 = vmul.f32 %v453, %v461
      %v468 = vmul.f32 %v454, %v461
      %v469 = vmul.f32 %v455, %v461
      %v470 = vmul.f32 %v456, %v461
      %v471 = vadd.f32 %v398, %v463
      %v472 = vadd.f32 %v399, %v464
      %v473 = vadd.f32 %v400, %v465
      %v474 = vadd.f32 %v401, %v466
      %v475 = vadd.f32 %v402, %v467
      %v476 = vadd.f32 %v403, %v468
      %v477 = vadd.f32 %v404, %v469
      %v478 = vadd.f32 %v405, %v470
      %v480 = vlaneseq
      %v481 = vshrl.u32 %v480, 7
      %v482 = vsub.s32 0, %v481
      %v483 = vrot.slane %v440, %v482
      %v485 = vadd.f32 %v471, %v483
      %v486 = vadd.f32 %v472, %v483
      %v487 = vadd.f32 %v473, %v483
      %v488 = vadd.f32 %v474, %v483
      %v489 = vadd.f32 %v475, %v483
      %v490 = vadd.f32 %v476, %v483
      %v491 = vadd.f32 %v477, %v483
      %v492 = vadd.f32 %v478, %v483
      %v493 = vmax.f32 %v485, 0.0
      %v494 = vmax.f32 %v486, 0.0
      %v495 = vmax.f32 %v487, 0.0
      %v496 = vmax.f32 %v488, 0.0
      %v497 = vmax.f32 %v489, 0.0
      %v498 = vmax.f32 %v490, 0.0
      %v499 = vmax.f32 %v491, 0.0
      %v500 = vmax.f32 %v492, 0.0
      %501 = vst [vmem:[%s325] sm:$0xff] %v493
      %502 = vst [vmem:[%s325 + $0x8] sm:$0xff] %v494
      %503 = vst [vmem:[%s325 + $0x10] sm:$0xff] %v495
      %504 = vst [vmem:[%s325 + $0x18] sm:$0xff] %v496
      %505 = vst [vmem:[%s325 + $0x20] sm:$0xff] %v497
      %506 = vst [vmem:[%s325 + $0x28] sm:$0xff] %v498
      %507 = vst [vmem:[%s325 + $0x30] sm:$0xff] %v499
      %508 = vst [vmem:[%s325 + $0x38] sm:$0xff] %v500
      %p509 = scmp.lt.s32.totalorder %s19, 1
      %s510 = scalar_select %p509, %s19, 1
      %s511 = smul.addr %s510, 8
      %s512 = smul.addr %s511, 8
      %s513 = scalar_lea.vmem %s8, %s512
      // Predicated region
      $region53: #{resblk_forward.7} parent=51 // pred_check
        %p514 = pneg %p215
      $region54: #{resblk_forward.7} parent=51 // pred_check_branch
        %516 = sbr.rel (%p514) target = $region56
      $region55: #{resblk_forward.7} parent=51 // pred_region
        _
      $region56: #{resblk_forward.7} parent=51 // pred_fallthru
        _
    $region52: #{resblk_forward.7} parent=5 // pred_fallthru
      _
    %p517 = scmp.le.s32.totalorder 2, %s14
    // Predicated region
    $region57: #{resblk_forward.7} parent=5 // pred_check
      %p518 = pneg %p517
    $region58: #{resblk_forward.7} parent=5 // pred_check_branch
      %520 = sbr.rel (%p518) target = $region60
    $region59: #{resblk_forward.7} parent=5 // pred_region
      %s521 = ssub.s32 %s14, 2
      // Predicated region
      $region61: #{resblk_forward.7} parent=59 // pred_check
        %p522 = pneg %p221
      $region62: #{resblk_forward.7} parent=59 // pred_check_branch
        %524 = sbr.rel (%p522) target = $region64
      $region63: #{resblk_forward.7} parent=59 // pred_region
        %p525 = scmp.lt.s32.totalorder %s20, 1
        %s526 = scalar_select %p525, %s20, 1
        %s527 = smul.addr %s526, 8
        %s528 = smul.addr %s527, 8
        %s529 = scalar_lea.vmem %s8, %s528
      $region64: #{resblk_forward.7} parent=59 // pred_fallthru
        _
    $region60: #{resblk_forward.7} parent=5 // pred_fallthru
      _
  $region6: #{resblk_forward.7} parent=0 // loop_footer
    %s18 = sadd.s32 1, %s14
  $region7: #{resblk_forward.7} parent=0 // loop_footer_branch
    %13 = sbr.rel target = $region3
  $region8: #{resblk_forward.7} parent=0 // loop_exit
    _

// kernel: resblk_forward.6
$region0: #{resblk_forward.6}
  #allocation0 [shape = 'u32[]', space=smem, size = 0x4, offset = 0x4, fixed_abs, tag = 'smem constant byte address 0x4 - core index']
  #allocation1 [shape = 'u32[144,128]{1,0:T(1,128)}', space=vmem, size = 0x12000, scoped, tag = 'internal scratch']
  %s0 = inlined_call_operand.vmem [shape: bf16[2,10,10,128], index: 0, kind: input, shape index: {}]
  %s1 = inlined_call_operand.vmem [shape: bf16[9,128,128], index: 1, kind: input, shape index: {}]
  %s2 = inlined_call_operand.vmem [shape: f32[1,128], index: 2, kind: input, shape index: {}]
  %s3 = inlined_call_operand.vmem [shape: bf16[2,8,8,128], index: 3, kind: output, shape index: {0}]
  %s4 = inlined_call_operand.vmem [shape: f32[2,2,128], index: 4, kind: output, shape index: {1}]
  %5 = xla_tuple %s3, %s4
  %s6 = sld [smem:[#allocation0]]
  $region53: #{resblk_forward.6} parent=0
    _
  %s8 = ssub.s32 1, %s6
  %s9 = scalar_select 0, %s8, %s6
  loop: start=0, step=1, limit=4
  $region2: #{resblk_forward.6} parent=0 // loop_pre_header
    _
  $region3: #{resblk_forward.6} parent=0 // loop_header
    %s11 = sphi 0, %s15
    %p12 = scmp.ge.s32.totalorder %s11, 4
    %s21 = sphi 0, %s23
    %s24 = sphi 0, %s21
    %s25 = sphi 0, %s24
    %s41 = sphi 0, %s25
    %s45 = sphi 0, %s45
    %s47 = sphi 0, %s45
    %s48 = sphi 0, %s47
    %s62 = sphi 0, %s48
    %s66 = sphi 0, %s66
    %s68 = sphi 0, %s66
    %s69 = sphi 0, %s68
    %s83 = sphi 0, %s69
    %s89 = sphi 0, %s91
    %s92 = sphi 0, %s89
    %s93 = sphi 0, %s92
    %s109 = sphi 0, %s93
    %s115 = sphi 0, %s117
    %s118 = sphi 0, %s115
    %s119 = sphi 0, %s118
    %s135 = sphi 0, %s119
  $region4: #{resblk_forward.6} parent=0 // loop_header_branch
    %14 = sbr.rel (%p12) target = $region8
  $region5: #{resblk_forward.6} parent=0 // loop_body
    %s16 = ssub.s32 %s11, 1
    %s17 = ssub.s32 %s11, 2
    %s18 = sadd.s32 %s11, 1
    %s19 = ssub.s32 %s11, %s18
    %p20 = scmp.eq.s32.totalorder %s19, 0
    %s22 = sadd.s32 %s21, 1
    %s23 = scalar_select %p20, %s21, %s22
    %p26 = pneg %p20
    %p27 = scmp.eq.s32.totalorder %s11, 1
    %p28 = por %p26, %p27
    %p29 = scmp.ne.s32.totalorder %s21, %s24
    %p30 = scmp.eq.s32.totalorder %s11, 0
    %p31 = por %p29, %p30
    %p32 = scmp.ne.s32.totalorder %s21, %s24
    %p33 = scmp.eq.s32.totalorder %s16, 1
    %p34 = por %p32, %p33
    %p35 = scmp.ne.s32.totalorder %s24, %s25
    %p36 = scmp.eq.s32.totalorder %s16, 0
    %p37 = por %p35, %p36
    %p38 = scmp.ne.s32.totalorder %s24, %s25
    %p39 = scmp.eq.s32.totalorder %s17, 1
    %p40 = por %p38, %p39
    %p42 = scmp.ne.s32.totalorder %s25, %s41
    %p43 = scmp.eq.s32.totalorder %s17, 0
    %p44 = por %p42, %p43
    %s46 = sadd.s32 %s45, 1
    %p49 = scmp.eq.s32.totalorder %s11, 1
    %p50 = scmp.ne.s32.totalorder %s45, %s47
    %p51 = scmp.eq.s32.totalorder %s11, 0
    %p52 = por %p50, %p51
    %p53 = scmp.ne.s32.totalorder %s45, %s47
    %p54 = scmp.eq.s32.totalorder %s16, 1
    %p55 = por %p53, %p54
    %p56 = scmp.ne.s32.totalorder %s47, %s48
    %p57 = scmp.eq.s32.totalorder %s16, 0
    %p58 = por %p56, %p57
    %p59 = scmp.ne.s32.totalorder %s47, %s48
    %p60 = scmp.eq.s32.totalorder %s17, 1
    %p61 = por %p59, %p60
    %p63 = scmp.ne.s32.totalorder %s48, %s62
    %p64 = scmp.eq.s32.totalorder %s17, 0
    %p65 = por %p63, %p64
    %s67 = sadd.s32 %s66, 1
    %p70 = scmp.eq.s32.totalorder %s11, 1
    %p71 = scmp.ne.s32.totalorder %s66, %s68
    %p72 = scmp.eq.s32.totalorder %s11, 0
    %p73 = por %p71, %p72
    %p74 = scmp.ne.s32.totalorder %s66, %s68
    %p75 = scmp.eq.s32.totalorder %s16, 1
    %p76 = por %p74, %p75
    %p77 = scmp.ne.s32.totalorder %s68, %s69
    %p78 = scmp.eq.s32.totalorder %s16, 0
    %p79 = por %p77, %p78
    %p80 = scmp.ne.s32.totalorder %s68, %s69
    %p81 = scmp.eq.s32.totalorder %s17, 1
    %p82 = por %p80, %p81
    %p84 = scmp.ne.s32.totalorder %s69, %s83
    %p85 = scmp.eq.s32.totalorder %s17, 0
    %p86 = por %p84, %p85
    %s87 = ssub.s32 %s11, %s18
    %p88 = scmp.eq.s32.totalorder %s87, 0
    %s90 = sadd.s32 %s89, 1
    %s91 = scalar_select %p88, %s89, %s90
    %p94 = pneg %p88
    %p95 = scmp.eq.s32.totalorder %s11, 1
    %p96 = por %p94, %p95
    %p97 = scmp.ne.s32.totalorder %s89, %s92
    %p98 = scmp.eq.s32.totalorder %s11, 0
    %p99 = por %p97, %p98
    %p100 = scmp.ne.s32.totalorder %s89, %s92
    %p101 = scmp.eq.s32.totalorder %s16, 1
    %p102 = por %p100, %p101
    %p103 = scmp.ne.s32.totalorder %s92, %s93
    %p104 = scmp.eq.s32.totalorder %s16, 0
    %p105 = por %p103, %p104
    %p106 = scmp.ne.s32.totalorder %s92, %s93
    %p107 = scmp.eq.s32.totalorder %s17, 1
    %p108 = por %p106, %p107
    %p110 = scmp.ne.s32.totalorder %s93, %s109
    %p111 = scmp.eq.s32.totalorder %s17, 0
    %p112 = por %p110, %p111
    %s113 = ssub.s32 %s11, %s18
    %p114 = scmp.eq.s32.totalorder %s113, 0
    %s116 = sadd.s32 %s115, 1
    %s117 = scalar_select %p114, %s115, %s116
    %p120 = pneg %p114
    %p121 = scmp.eq.s32.totalorder %s11, 1
    %p122 = por %p120, %p121
    %p123 = scmp.ne.s32.totalorder %s115, %s118
    %p124 = scmp.eq.s32.totalorder %s11, 0
    %p125 = por %p123, %p124
    %p126 = scmp.ne.s32.totalorder %s115, %s118
    %p127 = scmp.eq.s32.totalorder %s16, 1
    %p128 = por %p126, %p127
    %p129 = scmp.ne.s32.totalorder %s118, %s119
    %p130 = scmp.eq.s32.totalorder %s16, 0
    %p131 = por %p129, %p130
    %p132 = scmp.ne.s32.totalorder %s118, %s119
    %p133 = scmp.eq.s32.totalorder %s17, 1
    %p134 = por %p132, %p133
    %p136 = scmp.ne.s32.totalorder %s119, %s135
    %p137 = scmp.eq.s32.totalorder %s17, 0
    %p138 = por %p136, %p137
    %p139 = scmp.le.s32.totalorder 1, %s11
    %p140 = scmp.lt.s32.totalorder %s11, 3
    %p141 = pnand %p139, %p140
    %p142 = pneg %p141
    // Predicated region
    $region9: #{resblk_forward.6} parent=5 // pred_check
      _
    $region10: #{resblk_forward.6} parent=5 // pred_check_branch
      %144 = sbr.rel (%p141) target = $region12
    $region11: #{resblk_forward.6} parent=5 // pred_region
      %s145 = ssub.s32 %s11, 1
      // Predicated region
      $region13: #{resblk_forward.6} parent=11 // pred_check
        %p146 = pneg %p58
      $region14: #{resblk_forward.6} parent=11 // pred_check_branch
        %148 = sbr.rel (%p146) target = $region16
      $region15: #{resblk_forward.6} parent=11 // pred_region
        _
      $region16: #{resblk_forward.6} parent=11 // pred_fallthru
        _
      // Predicated region
      $region17: #{resblk_forward.6} parent=11 // pred_check
        %p149 = pneg %p79
      $region18: #{resblk_forward.6} parent=11 // pred_check_branch
        %151 = sbr.rel (%p149) target = $region20
      $region19: #{resblk_forward.6} parent=11 // pred_region
        _
      $region20: #{resblk_forward.6} parent=11 // pred_fallthru
        _
    $region12: #{resblk_forward.6} parent=5 // pred_fallthru
      _
    %p152 = scmp.lt.s32.totalorder %s11, 2
    // Predicated region
    $region21: #{resblk_forward.6} parent=5 // pred_check
      %p153 = pneg %p152
    $region22: #{resblk_forward.6} parent=5 // pred_check_branch
      %155 = sbr.rel (%p153) target = $region24
    $region23: #{resblk_forward.6} parent=5 // pred_region
      // Predicated region
      $region25: #{resblk_forward.6} parent=23 // pred_check
        %p156 = pneg %p31
      $region26: #{resblk_forward.6} parent=23 // pred_check_branch
        %158 = sbr.rel (%p156) target = $region28
      $region27: #{resblk_forward.6} parent=23 // pred_region
        %p159 = scmp.lt.s32.totalorder %s11, 1
        %s160 = scalar_select %p159, %s11, 1
        %s161 = smul.addr %s160, 20
        %s162 = smul.addr %s161, 4
        %s163 = scalar_lea.vmem %s0, %s162
      $region28: #{resblk_forward.6} parent=23 // pred_fallthru
        _
    $region24: #{resblk_forward.6} parent=5 // pred_fallthru
      _
    %p164 = scmp.le.s32.totalorder 1, %s11
    %p165 = scmp.lt.s32.totalorder %s11, 3
    %p166 = pnand %p164, %p165
    %p167 = pneg %p166
    // Predicated region
    $region29: #{resblk_forward.6} parent=5 // pred_check
      _
    $region30: #{resblk_forward.6} parent=5 // pred_check_branch
      %169 = sbr.rel (%p166) target = $region32
    $region31: #{resblk_forward.6} parent=5 // pred_region
      %s170 = ssub.s32 %s11, 1
      %p171 = scmp.lt.s32.totalorder %s16, 1
      %s172 = scalar_select %p171, %s16, 1
      %s173 = smul.addr %s172, 20
      %s174 = smul.addr %s173, 4
      %s175 = scalar_lea.vmem %s0, %s174
      %p176 = pneg %p37
      %p177 = pneg %p34
      %p178 = pneg %p58
      %p179 = pneg %p55
      %p180 = pneg %p79
      %p181 = pneg %p76
      %p182 = pneg %p105
      %p183 = pneg %p102
      %p184 = scmp.lt.s32.totalorder %s16, 1
      %s185 = scalar_select %p184, %s16, 1
      %s186 = smul.addr %s185, 8
      %s187 = smul.addr %s186, 4
      %s188 = scalar_lea.vmem %s3, %s187
      %p189 = pneg %p131
      %p190 = pneg %p128
      %p191 = scmp.lt.s32.totalorder %s16, 1
      %s192 = scalar_select %p191, %s16, 1
      %s193 = smul.addr %s192, 2
      %s194 = scalar_lea.vmem %s4, %s193
      %p195 = scmp.lt.s32.totalorder %s16, 1
      %s196 = scalar_select %p195, %s16, 1
      %s197 = smul.addr %s196, 20
      %s198 = smul.addr %s197, 4
      %s199 = scalar_lea.vmem %s0, %s198
      %p200 = scmp.lt.s32.totalorder %s16, 1
      %s201 = scalar_select %p200, %s16, 1
      %s202 = smul.addr %s201, 8
      %s203 = smul.addr %s202, 4
      %s204 = scalar_lea.vmem %s3, %s203
      %p205 = scmp.lt.s32.totalorder %s16, 1
      %s206 = scalar_select %p205, %s16, 1
      %s207 = smul.addr %s206, 2
      %s208 = scalar_lea.vmem %s4, %s207
      %v210 = vld [vmem:[%s199] sm:$0xf]
      %v211 = vld [vmem:[%s199 + $0x4] sm:$0x1]
      %v212 = vld [vmem:[%s199 + $0x8] sm:$0xf]
      %v213 = vld [vmem:[%s199 + $0xc] sm:$0x1]
      %v214 = vld [vmem:[%s199 + $0x10] sm:$0xf]
      %v215 = vld [vmem:[%s199 + $0x14] sm:$0x1]
      %v216 = vld [vmem:[%s199 + $0x18] sm:$0xf]
      %v217 = vld [vmem:[%s199 + $0x1c] sm:$0x1]
      %v218 = vld [vmem:[%s199 + $0x20] sm:$0xf]
      %v219 = vld [vmem:[%s199 + $0x24] sm:$0x1]
      %v220 = vld [vmem:[%s199 + $0x28] sm:$0xf]
      %v221 = vld [vmem:[%s199 + $0x2c] sm:$0x1]
      %v222 = vld [vmem:[%s199 + $0x30] sm:$0xf]
      %v223 = vld [vmem:[%s199 + $0x34] sm:$0x1]
      %v224 = vld [vmem:[%s199 + $0x38] sm:$0xf]
      %v225 = vld [vmem:[%s199 + $0x3c] sm:$0x1]
      %v226 = vld [vmem:[%s199 + $0x40] sm:$0xf]
      %v227 = vld [vmem:[%s199 + $0x44] sm:$0x1]
      %v228 = vld [vmem:[%s199 + $0x48] sm:$0xf]
      %v229 = vld [vmem:[%s199 + $0x4c] sm:$0x1]
      %v230 = vld [vmem:[%s1] sm:$0xf]
      %v231 = vld [vmem:[%s1 + $0x4] sm:$0xf]
      %v232 = vld [vmem:[%s1 + $0x8] sm:$0xf]
      %v233 = vld [vmem:[%s1 + $0xc] sm:$0xf]
      %v234 = vld [vmem:[%s1 + $0x10] sm:$0xf]
      %v235 = vld [vmem:[%s1 + $0x14] sm:$0xf]
      %v236 = vld [vmem:[%s1 + $0x18] sm:$0xf]
      %v237 = vld [vmem:[%s1 + $0x1c] sm:$0xf]
      %v238 = vld [vmem:[%s1 + $0x20] sm:$0xf]
      %v239 = vld [vmem:[%s1 + $0x24] sm:$0xf]
      %v240 = vld [vmem:[%s1 + $0x28] sm:$0xf]
      %v241 = vld [vmem:[%s1 + $0x2c] sm:$0xf]
      %v242 = vld [vmem:[%s1 + $0x30] sm:$0xf]
      %v243 = vld [vmem:[%s1 + $0x34] sm:$0xf]
      %v244 = vld [vmem:[%s1 + $0x38] sm:$0xf]
      %v245 = vld [vmem:[%s1 + $0x3c] sm:$0xf]
      %vm246 = vsmask.f32 3328
      %vm247 = vsmask.f32 7440
      %vm248 = vmor %vm246, %vm247
      %v250 = vshrl.u32 %v210, 16
      %v252 = vrot.slane %v250, 4
      %v253 = vshll.u32 %v210, 16
      %v255 = vrot.slane %v253, 5
      %v256 = vor.u32 %v252, %v255
      %v257 = vrot.slane %v256, 4
      %v259 = vshll.u32 %v211, 16
      %v261 = vrot.slane %v259, 5
      %v262 = vsel %vm248, %v257, %v261
      %v264 = vshrl.u32 %v212, 16
      %v266 = vrot.slane %v264, 4
      %v267 = vshll.u32 %v212, 16
      %v269 = vrot.slane %v267, 5
      %v270 = vor.u32 %v266, %v269
      %v271 = vrot.slane %v270, 4
      %v273 = vshll.u32 %v213, 16
      %v275 = vrot.slane %v273, 5
      %v276 = vsel %vm248, %v271, %v275
      %v278 = vshrl.u32 %v214, 16
      %v280 = vrot.slane %v278, 4
      %v281 = vshll.u32 %v214, 16
      %v283 = vrot.slane %v281, 5
      %v284 = vor.u32 %v280, %v283
      %v285 = vrot.slane %v284, 4
      %v287 = vshll.u32 %v215, 16
      %v289 = vrot.slane %v287, 5
      %v290 = vsel %vm248, %v285, %v289
      %v292 = vshrl.u32 %v216, 16
      %v294 = vrot.slane %v292, 4
      %v295 = vshll.u32 %v216, 16
      %v297 = vrot.slane %v295, 5
      %v298 = vor.u32 %v294, %v297
      %v299 = vrot.slane %v298, 4
      %v301 = vshll.u32 %v217, 16
      %v303 = vrot.slane %v301, 5
      %v304 = vsel %vm248, %v299, %v303
      %v306 = vshrl.u32 %v218, 16
      %v308 = vrot.slane %v306, 4
      %v309 = vshll.u32 %v218, 16
      %v311 = vrot.slane %v309, 5
      %v312 = vor.u32 %v308, %v311
      %v313 = vrot.slane %v312, 4
      %v315 = vshll.u32 %v219, 16
      %v317 = vrot.slane %v315, 5
      %v318 = vsel %vm248, %v313, %v317
      %v320 = vshrl.u32 %v220, 16
      %v322 = vrot.slane %v320, 4
      %v323 = vshll.u32 %v220, 16
      %v325 = vrot.slane %v323, 5
      %v326 = vor.u32 %v322, %v325
      %v327 = vrot.slane %v326, 4
      %v329 = vshll.u32 %v221, 16
      %v331 = vrot.slane %v329, 5
      %v332 = vsel %vm248, %v327, %v331
      %v334 = vshrl.u32 %v222, 16
      %v336 = vrot.slane %v334, 4
      %v337 = vshll.u32 %v222, 16
      %v339 = vrot.slane %v337, 5
      %v340 = vor.u32 %v336, %v339
      %v341 = vrot.slane %v340, 4
      %v343 = vshll.u32 %v223, 16
      %v345 = vrot.slane %v343, 5
      %v346 = vsel %vm248, %v341, %v345
      %v348 = vshrl.u32 %v224, 16
      %v350 = vrot.slane %v348, 4
      %v351 = vshll.u32 %v224, 16
      %v353 = vrot.slane %v351, 5
      %v354 = vor.u32 %v350, %v353
      %v355 = vrot.slane %v354, 4
      %v357 = vshll.u32 %v225, 16
      %v359 = vrot.slane %v357, 5
      %v360 = vsel %vm248, %v355, %v359
      %s361 = scalar_lea.vmem %s1, 64
      %v362 = vld [vmem:[%s361] sm:$0xf]
      %v363 = vld [vmem:[%s361 + $0x4] sm:$0xf]
      %v364 = vld [vmem:[%s361 + $0x8] sm:$0xf]
      %v365 = vld [vmem:[%s361 + $0xc] sm:$0xf]
      %v366 = vld [vmem:[%s361 + $0x10] sm:$0xf]
      %v367 = vld [vmem:[%s361 + $0x14] sm:$0xf]
      %v368 = vld [vmem:[%s361 + $0x18] sm:$0xf]
      %v369 = vld [vmem:[%s361 + $0x1c] sm:$0xf]
      %v370 = vld [vmem:[%s361 + $0x20] sm:$0xf]
      %v371 = vld [vmem:[%s361 + $0x24] sm:$0xf]
      %v372 = vld [vmem:[%s361 + $0x28] sm:$0xf]
      %v373 = vld [vmem:[%s361 + $0x2c] sm:$0xf]
      %v374 = vld [vmem:[%s361 + $0x30] sm:$0xf]
      %v375 = vld [vmem:[%s361 + $0x34] sm:$0xf]
      %v376 = vld [vmem:[%s361 + $0x38] sm:$0xf]
      %v377 = vld [vmem:[%s361 + $0x3c] sm:$0xf]
      %v378 = vunpack.c.l.b16 %v262
      %v379 = vunpack.c.l.b16 %v276
      %v380 = vunpack.c.l.b16 %v290
      %v381 = vunpack.c.l.b16 %v304
      %v382 = vunpack.c.l.b16 %v318
      %v383 = vunpack.c.l.b16 %v332
      %v384 = vunpack.c.l.b16 %v346
      %v385 = vunpack.c.l.b16 %v360
      %v386 = vpack.c.b16 %v379, %v378
      %v387 = vpack.c.b16 %v381, %v380
      %v388 = vpack.c.b16 %v383, %v382
      %v389 = vpack.c.b16 %v385, %v384
      %v410 = vunpack.c.l.b16 %v362
      %v411 = vunpack.c.l.b16 %v363
      %v412 = vunpack.c.l.b16 %v364
      %v413 = vunpack.c.l.b16 %v365
      %v414 = vunpack.c.l.b16 %v366
      %v415 = vunpack.c.l.b16 %v367
      %v416 = vunpack.c.l.b16 %v368
      %v417 = vunpack.c.l.b16 %v369
      %v418 = vunpack.c.l.b16 %v370
      %v419 = vunpack.c.l.b16 %v371
      %v420 = vunpack.c.l.b16 %v372
      %v421 = vunpack.c.l.b16 %v373
      %v422 = vunpack.c.l.b16 %v374
      %v423 = vunpack.c.l.b16 %v375
      %v424 = vunpack.c.l.b16 %v376
      %v425 = vunpack.c.l.b16 %v377
      %v426 = vpack.c.b16 %v411, %v410
      %v427 = vpack.c.b16 %v413, %v412
      %v428 = vpack.c.b16 %v415, %v414
      %v429 = vpack.c.b16 %v417, %v416
      %v430 = vpack.c.b16 %v419, %v418
      %v431 = vpack.c.b16 %v421, %v420
      %v432 = vpack.c.b16 %v423, %v422
      %v433 = vpack.c.b16 %v425, %v424
      %442 = vmatprep.subr.bf16.mxu0 0
      %443 = vmatpush1.bf16.msra.mxu0 %v433
      %444 = vmatprep.subr.bf16.mxu0 0
      %445 = vmatpush1.bf16.msra.mxu0 %v432
      %446 = vmatprep.subr.bf16.mxu0 0
      %447 = vmatpush1.bf16.msra.mxu0 %v431
      %448 = vmatprep.subr.bf16.mxu0 0
      %449 = vmatpush1.bf16.msra.mxu0 %v430
      %450 = vmatprep.subr.bf16.mxu0 0
      %451 = vmatpush1.bf16.msra.mxu0 %v429
      %452 = vmatprep.subr.bf16.mxu0 0
      %453 = vmatpush1.bf16.msra.mxu0 %v428
      %454 = vmatprep.subr.bf16.mxu0 0
      %455 = vmatpush1.bf16.msra.mxu0 %v427
      %456 = vmatprep.subr.bf16.mxu0 0
      %457 = vmatpush1.bf16.msra.mxu0 %v426
      %458 = vmatprep.subr.bf16.mxu0 0
      %459 = vmatpush2.bf16.msra.mxu0 0
      %460 = vmatprep.subr.bf16.mxu0 0
      %461 = vmatpush2.bf16.msra.mxu0 0
      %462 = vmatprep.subr.bf16.mxu0 0
      %463 = vmatpush2.bf16.msra.mxu0 0
      %464 = vmatprep.subr.bf16.mxu0 0
      %465 = vmatpush2.bf16.msra.mxu0 0
      %466 = vmatprep.subr.bf16.mxu0 0
      %467 = vmatpush2.bf16.msra.mxu0 0
      %468 = vmatprep.subr.bf16.mxu0 0
      %469 = vmatpush2.bf16.msra.mxu0 0
      %470 = vmatprep.subr.bf16.mxu0 0
      %471 = vmatpush2.bf16.msra.mxu0 0
      %472 = vmatprep.subr.bf16.mxu0 0
      %473 = vmatpush2.bf16.msra.mxu0 0
      %474 = vmatprep.mubr.bf16.mxu0 0
      %475 = vmatmul.mubr.bf16.gmra.mxu0 %v386
      %v476 = vpop.f32.mrf.mxu0
      %v477 = vadd.f32 0.0, %v476
      %v478 = vpop.f32.mrf.mxu0
      %v479 = vpop.f32.mrf.mxu0
      %v480 = vadd.f32 0.0, %v479
      %v481 = vpop.f32.mrf.mxu0
      %482 = vmatprep.mubr.bf16.mxu0 0
      %483 = vmatmul.mubr.bf16.gmra.mxu0 %v387
      %v484 = vpop.f32.mrf.mxu0
      %v485 = vadd.f32 0.0, %v484
      %v486 = vpop.f32.mrf.mxu0
      %v487 = vpop.f32.mrf.mxu0
      %v488 = vadd.f32 0.0, %v487
      %v489 = vpop.f32.mrf.mxu0
      %490 = vmatprep.mubr.bf16.mxu0 0
      %491 = vmatmul.mubr.bf16.gmra.mxu0 %v388
      %v492 = vpop.f32.mrf.mxu0
      %v493 = vadd.f32 0.0, %v492
      %v494 = vpop.f32.mrf.mxu0
      %v495 = vpop.f32.mrf.mxu0
      %v496 = vadd.f32 0.0, %v495
      %v497 = vpop.f32.mrf.mxu0
      %498 = vmatprep.mubr.bf16.mxu0 0
      %499 = vmatmul.mubr.bf16.gmra.mxu0 %v389
      %v500 = vpop.f32.mrf.mxu0
      %v501 = vadd.f32 0.0, %v500
      %v502 = vpop.f32.mrf.mxu0
      %v503 = vpop.f32.mrf.mxu0
      %v504 = vadd.f32 0.0, %v503
      %v505 = vpop.f32.mrf.mxu0
      %506 = vdwg.mxu0
      %v515 = vunpack.c.l.b16 %v210
      %v516 = vunpack.c.l.b16 %v212
      %v517 = vunpack.c.l.b16 %v214
      %v518 = vunpack.c.l.b16 %v216
      %v519 = vunpack.c.l.b16 %v218
      %v520 = vunpack.c.l.b16 %v220
      %v521 = vunpack.c.l.b16 %v222
      %v522 = vunpack.c.l.b16 %v224
      %v523 = vpack.c.b16 %v516, %v515
      %v524 = vpack.c.b16 %v518, %v517
      %v525 = vpack.c.b16 %v520, %v519
      %v526 = vpack.c.b16 %v522, %v521
      %v547 = vunpack.c.l.b16 %v230
      %v548 = vunpack.c.l.b16 %v231
      %v549 = vunpack.c.l.b16 %v232
      %v550 = vunpack.c.l.b16 %v233
      %v551 = vunpack.c.l.b16 %v234
      %v552 = vunpack.c.l.b16 %v235
      %v553 = vunpack.c.l.b16 %v236
      %v554 = vunpack.c.l.b16 %v237
      %v555 = vunpack.c.l.b16 %v238
      %v556 = vunpack.c.l.b16 %v239
      %v557 = vunpack.c.l.b16 %v240
      %v558 = vunpack.c.l.b16 %v241
      %v559 = vunpack.c.l.b16 %v242
      %v560 = vunpack.c.l.b16 %v243
      %v561 = vunpack.c.l.b16 %v244
      %v562 = vunpack.c.l.b16 %v245
      %v563 = vpack.c.b16 %v548, %v547
      %v564 = vpack.c.b16 %v550, %v549
      %v565 = vpack.c.b16 %v552, %v551
      %v566 = vpack.c.b16 %v554, %v553
      %v567 = vpack.c.b16 %v556, %v555
      %v568 = vpack.c.b16 %v558, %v557
      %v569 = vpack.c.b16 %v560, %v559
      %v570 = vpack.c.b16 %v562, %v561
      %579 = vmatprep.subr.bf16.mxu0 0
      %580 = vmatpush1.bf16.msra.mxu0 %v570
      %581 = vmatprep.subr.bf16.mxu0 0
      %582 = vmatpush1.bf16.msra.mxu0 %v569
      %583 = vmatprep.subr.bf16.mxu0 0
      %584 = vmatpush1.bf16.msra.mxu0 %v568
      %585 = vmatprep.subr.bf16.mxu0 0
      %586 = vmatpush1.bf16.msra.mxu0 %v567
      %587 = vmatprep.subr.bf16.mxu0 0
      %588 = vmatpush1.bf16.msra.mxu0 %v566
      %589 = vmatprep.subr.bf16.mxu0 0
      %590 = vmatpush1.bf16.msra.mxu0 %v565
      %591 = vmatprep.subr.bf16.mxu0 0
      %592 = vmatpush1.bf16.msra.mxu0 %v564
      %593 = vmatprep.subr.bf16.mxu0 0
      %594 = vmatpush1.bf16.msra.mxu0 %v563
      %595 = vmatprep.subr.bf16.mxu0 0
      %596 = vmatpush2.bf16.msra.mxu0 0
      %597 = vmatprep.subr.bf16.mxu0 0
      %598 = vmatpush2.bf16.msra.mxu0 0
      %599 = vmatprep.subr.bf16.mxu0 0
      %600 = vmatpush2.bf16.msra.mxu0 0
      %601 = vmatprep.subr.bf16.mxu0 0
      %602 = vmatpush2.bf16.msra.mxu0 0
      %603 = vmatprep.subr.bf16.mxu0 0
      %604 = vmatpush2.bf16.msra.mxu0 0
      %605 = vmatprep.subr.bf16.mxu0 0
      %606 = vmatpush2.bf16.msra.mxu0 0
      %607 = vmatprep.subr.bf16.mxu0 0
      %608 = vmatpush2.bf16.msra.mxu0 0
      %609 = vmatprep.subr.bf16.mxu0 0
      %610 = vmatpush2.bf16.msra.mxu0 0
      %611 = vmatprep.mubr.bf16.mxu0 0
      %612 = vmatmul.mubr.bf16.gmra.mxu0 %v523
      %v613 = vpop.f32.mrf.mxu0
      %v614 = vadd.f32 %v477, %v613
      %v615 = vpop.f32.mrf.mxu0
      %v616 = vpop.f32.mrf.mxu0
      %v617 = vadd.f32 %v480, %v616
      %v618 = vpop.f32.mrf.mxu0
      %619 = vmatprep.mubr.bf16.mxu0 0
      %620 = vmatmul.mubr.bf16.gmra.mxu0 %v524
      %v621 = vpop.f32.mrf.mxu0
      %v622 = vadd.f32 %v485, %v621
      %v623 = vpop.f32.mrf.mxu0
      %v624 = vpop.f32.mrf.mxu0
      %v625 = vadd.f32 %v488, %v624
      %v626 = vpop.f32.mrf.mxu0
      %627 = vmatprep.mubr.bf16.mxu0 0
      %628 = vmatmul.mubr.bf16.gmra.mxu0 %v525
      %v629 = vpop.f32.mrf.mxu0
      %v630 = vadd.f32 %v493, %v629
      %v631 = vpop.f32.mrf.mxu0
      %v632 = vpop.f32.mrf.mxu0
      %v633 = vadd.f32 %v496, %v632
      %v634 = vpop.f32.mrf.mxu0
      %635 = vmatprep.mubr.bf16.mxu0 0
      %636 = vmatmul.mubr.bf16.gmra.mxu0 %v526
      %v637 = vpop.f32.mrf.mxu0
      %v638 = vadd.f32 %v501, %v637
      %v639 = vpop.f32.mrf.mxu0
      %v640 = vpop.f32.mrf.mxu0
      %v641 = vadd.f32 %v504, %v640
      %v642 = vpop.f32.mrf.mxu0
      %643 = vdwg.mxu0
      %vm652 = vcmask 1042432
      %vm653 = vcmask 1046532
      %vm654 = vmor %vm652, %vm653
      %v655 = vrot.slane %v210, 5
      %v656 = vrot.slane %v655, 4
      %v657 = vrot.slane %v211, 5
      %v658 = vsel %vm654, %v656, %v657
      %v659 = vrot.slane %v212, 5
      %v660 = vrot.slane %v659, 4
      %v661 = vrot.slane %v213, 5
      %v662 = vsel %vm654, %v660, %v661
      %v663 = vrot.slane %v214, 5
      %v664 = vrot.slane %v663, 4
      %v665 = vrot.slane %v215, 5
      %v666 = vsel %vm654, %v664, %v665
      %v667 = vrot.slane %v216, 5
      %v668 = vrot.slane %v667, 4
      %v669 = vrot.slane %v217, 5
      %v670 = vsel %vm654, %v668, %v669
      %v671 = vrot.slane %v218, 5
      %v672 = vrot.slane %v671, 4
      %v673 = vrot.slane %v219, 5
      %v674 = vsel %vm654, %v672, %v673
      %v675 = vrot.slane %v220, 5
      %v676 = vrot.slane %v675, 4
      %v677 = vrot.slane %v221, 5
      %v678 = vsel %vm654, %v676, %v677
      %v679 = vrot.slane %v222, 5
      %v680 = vrot.slane %v679, 4
      %v681 = vrot.slane %v223, 5
      %v682 = vsel %vm654, %v680, %v681
      %v683 = vrot.slane %v224, 5
      %v684 = vrot.slane %v683, 4
      %v685 = vrot.slane %v225, 5
      %v686 = vsel %vm654, %v684, %v685
      %s687 = scalar_lea.vmem %s1, 128
      %v688 = vld [vmem:[%s687] sm:$0xf]
      %v689 = vld [vmem:[%s687 + $0x4] sm:$0xf]
      %v690 = vld [vmem:[%s687 + $0x8] sm:$0xf]
      %v691 = vld [vmem:[%s687 + $0xc] sm:$0xf]
      %v692 = vld [vmem:[%s687 + $0x10] sm:$0xf]
      %v693 = vld [vmem:[%s687 + $0x14] sm:$0xf]
      %v694 = vld [vmem:[%s687 + $0x18] sm:$0xf]
      %v695 = vld [vmem:[%s687 + $0x1c] sm:$0xf]
      %v696 = vld [vmem:[%s687 + $0x20] sm:$0xf]
      %v697 = vld [vmem:[%s687 + $0x24] sm:$0xf]
      %v698 = vld [vmem:[%s687 + $0x28] sm:$0xf]
      %v699 = vld [vmem:[%s687 + $0x2c] sm:$0xf]
      %v700 = vld [vmem:[%s687 + $0x30] sm:$0xf]
      %v701 = vld [vmem:[%s687 + $0x34] sm:$0xf]
      %v702 = vld [vmem:[%s687 + $0x38] sm:$0xf]
      %v703 = vld [vmem:[%s687 + $0x3c] sm:$0xf]
      %v704 = vunpack.c.l.b16 %v658
      %v705 = vunpack.c.l.b16 %v662
      %v706 = vunpack.c.l.b16 %v666
      %v707 = vunpack.c.l.b16 %v670
      %v708 = vunpack.c.l.b16 %v674
      %v709 = vunpack.c.l.b16 %v678
      %v710 = vunpack.c.l.b16 %v682
      %v711 = vunpack.c.l.b16 %v686
      %v712 = vpack.c.b16 %v705, %v704
      %v713 = vpack.c.b16 %v707, %v706
      %v714 = vpack.c.b16 %v709, %v708
      %v715 = vpack.c.b16 %v711, %v710
      %v736 = vunpack.c.l.b16 %v688
      %v737 = vunpack.c.l.b16 %v689
      %v738 = vunpack.c.l.b16 %v690
      %v739 = vunpack.c.l.b16 %v691
      %v740 = vunpack.c.l.b16 %v692
      %v741 = vunpack.c.l.b16 %v693
      %v742 = vunpack.c.l.b16 %v694
      %v743 = vunpack.c.l.b16 %v695
      %v744 = vunpack.c.l.b16 %v696
      %v745 = vunpack.c.l.b16 %v697
      %v746 = vunpack.c.l.b16 %v698
      %v747 = vunpack.c.l.b16 %v699
      %v748 = vunpack.c.l.b16 %v700
      %v749 = vunpack.c.l.b16 %v701
      %v750 = vunpack.c.l.b16 %v702
      %v751 = vunpack.c.l.b16 %v703
      %v752 = vpack.c.b16 %v737, %v736
      %v753 = vpack.c.b16 %v739, %v738
      %v754 = vpack.c.b16 %v741, %v740
      %v755 = vpack.c.b16 %v743, %v742
      %v756 = vpack.c.b16 %v745, %v744
      %v757 = vpack.c.b16 %v747, %v746
      %v758 = vpack.c.b16 %v749, %v748
      %v759 = vpack.c.b16 %v751, %v750
      %768 = vmatprep.subr.bf16.mxu0 0
      %769 = vmatpush1.bf16.msra.mxu0 %v759
      %770 = vmatprep.subr.bf16.mxu0 0
      %771 = vmatpush1.bf16.msra.mxu0 %v758
      %772 = vmatprep.subr.bf16.mxu0 0
      %773 = vmatpush1.bf16.msra.mxu0 %v757
      %774 = vmatprep.subr.bf16.mxu0 0
      %775 = vmatpush1.bf16.msra.mxu0 %v756
      %776 = vmatprep.subr.bf16.mxu0 0
      %777 = vmatpush1.bf16.msra.mxu0 %v755
      %778 = vmatprep.subr.bf16.mxu0 0
      %779 = vmatpush1.bf16.msra.mxu0 %v754
      %780 = vmatprep.subr.bf16.mxu0 0
      %781 = vmatpush1.bf16.msra.mxu0 %v753
      %782 = vmatprep.subr.bf16.mxu0 0
      %783 = vmatpush1.bf16.msra.mxu0 %v752
      %784 = vmatprep.subr.bf16.mxu0 0
      %785 = vmatpush2.bf16.msra.mxu0 0
      %786 = vmatprep.subr.bf16.mxu0 0
      %787 = vmatpush2.bf16.msra.mxu0 0
      %788 = vmatprep.subr.bf16.mxu0 0
      %789 = vmatpush2.bf16.msra.mxu0 0
      %790 = vmatprep.subr.bf16.mxu0 0
      %791 = vmatpush2.bf16.msra.mxu0 0
      %792 = vmatprep.subr.bf16.mxu0 0
      %793 = vmatpush2.bf16.msra.mxu0 0
      %794 = vmatprep.subr.bf16.mxu0 0
      %795 = vmatpush2.bf16.msra.mxu0 0
      %796 = vmatprep.subr.bf16.mxu0 0
      %797 = vmatpush2.bf16.msra.mxu0 0
      %798 = vmatprep.subr.bf16.mxu0 0
      %799 = vmatpush2.bf16.msra.mxu0 0
      %800 = vmatprep.mubr.bf16.mxu0 0
      %801 = vmatmul.mubr.bf16.gmra.mxu0 %v712
      %v802 = vpop.f32.mrf.mxu0
      %v803 = vadd.f32 0.0, %v802
      %v804 = vpop.f32.mrf.mxu0
      %v805 = vpop.f32.mrf.mxu0
      %v806 = vadd.f32 0.0, %v805
      %v807 = vpop.f32.mrf.mxu0
      %808 = vmatprep.mubr.bf16.mxu0 0
      %809 = vmatmul.mubr.bf16.gmra.mxu0 %v713
      %v810 = vpop.f32.mrf.mxu0
      %v811 = vadd.f32 0.0, %v810
      %v812 = vpop.f32.mrf.mxu0
      %v813 = vpop.f32.mrf.mxu0
      %v814 = vadd.f32 0.0, %v813
      %v815 = vpop.f32.mrf.mxu0
      %816 = vmatprep.mubr.bf16.mxu0 0
      %817 = vmatmul.mubr.bf16.gmra.mxu0 %v714
      %v818 = vpop.f32.mrf.mxu0
      %v819 = vadd.f32 0.0, %v818
      %v820 = vpop.f32.mrf.mxu0
      %v821 = vpop.f32.mrf.mxu0
      %v822 = vadd.f32 0.0, %v821
      %v823 = vpop.f32.mrf.mxu0
      %824 = vmatprep.mubr.bf16.mxu0 0
      %825 = vmatmul.mubr.bf16.gmra.mxu0 %v715
      %v826 = vpop.f32.mrf.mxu0
      %v827 = vadd.f32 0.0, %v826
      %v828 = vpop.f32.mrf.mxu0
      %v829 = vpop.f32.mrf.mxu0
      %v830 = vadd.f32 0.0, %v829
      %v831 = vpop.f32.mrf.mxu0
      %832 = vdwg.mxu0
      %v833 = vadd.f32 %v614, %v803
      %v834 = vadd.f32 %v617, %v806
      %v835 = vadd.f32 %v622, %v811
      %v836 = vadd.f32 %v625, %v814
      %v837 = vadd.f32 %v630, %v819
      %v838 = vadd.f32 %v633, %v822
      %v839 = vadd.f32 %v638, %v827
      %v840 = vadd.f32 %v641, %v830
      %s841 = scalar_lea.vmem %s1, 192
      %v842 = vld [vmem:[%s841] sm:$0xf]
      %v843 = vld [vmem:[%s841 + $0x4] sm:$0xf]
      %v844 = vld [vmem:[%s841 + $0x8] sm:$0xf]
      %v845 = vld [vmem:[%s841 + $0xc] sm:$0xf]
      %v846 = vld [vmem:[%s841 + $0x10] sm:$0xf]
      %v847 = vld [vmem:[%s841 + $0x14] sm:$0xf]
      %v848 = vld [vmem:[%s841 + $0x18] sm:$0xf]
      %v849 = vld [vmem:[%s841 + $0x1c] sm:$0xf]
      %v850 = vld [vmem:[%s841 + $0x20] sm:$0xf]
      %v851 = vld [vmem:[%s841 + $0x24] sm:$0xf]
      %v852 = vld [vmem:[%s841 + $0x28] sm:$0xf]
      %v853 = vld [vmem:[%s841 + $0x2c] sm:$0xf]
      %v854 = vld [vmem:[%s841 + $0x30] sm:$0xf]
      %v855 = vld [vmem:[%s841 + $0x34] sm:$0xf]
      %v856 = vld [vmem:[%s841 + $0x38] sm:$0xf]
      %v857 = vld [vmem:[%s841 + $0x3c] sm:$0xf]
      %v859 = vunpack.c.l.b16 %v226
      %v860 = vpack.c.b16 %v517, %v516
      %v861 = vpack.c.b16 %v519, %v518
      %v862 = vpack.c.b16 %v521, %v520
      %v863 = vpack.c.b16 %v859, %v522
      %v884 = vunpack.c.l.b16 %v842
      %v885 = vunpack.c.l.b16 %v843
      %v886 = vunpack.c.l.b16 %v844
      %v887 = vunpack.c.l.b16 %v845
      %v888 = vunpack.c.l.b16 %v846
      %v889 = vunpack.c.l.b16 %v847
      %v890 = vunpack.c.l.b16 %v848
      %v891 = vunpack.c.l.b16 %v849
      %v892 = vunpack.c.l.b16 %v850
      %v893 = vunpack.c.l.b16 %v851
      %v894 = vunpack.c.l.b16 %v852
      %v895 = vunpack.c.l.b16 %v853
      %v896 = vunpack.c.l.b16 %v854
      %v897 = vunpack.c.l.b16 %v855
      %v898 = vunpack.c.l.b16 %v856
      %v899 = vunpack.c.l.b16 %v857
      %v900 = vpack.c.b16 %v885, %v884
      %v901 = vpack.c.b16 %v887, %v886
      %v902 = vpack.c.b16 %v889, %v888
      %v903 = vpack.c.b16 %v891, %v890
      %v904 = vpack.c.b16 %v893, %v892
      %v905 = vpack.c.b16 %v895, %v894
      %v906 = vpack.c.b16 %v897, %v896
      %v907 = vpack.c.b16 %v899, %v898
      %916 = vmatprep.subr.bf16.mxu0 0
      %917 = vmatpush1.bf16.msra.mxu0 %v907
      %918 = vmatprep.subr.bf16.mxu0 0
      %919 = vmatpush1.bf16.msra.mxu0 %v906
      %920 = vmatprep.subr.bf16.mxu0 0
      %921 = vmatpush1.bf16.msra.mxu0 %v905
      %922 = vmatprep.subr.bf16.mxu0 0
      %923 = vmatpush1.bf16.msra.mxu0 %v904
      %924 = vmatprep.subr.bf16.mxu0 0
      %925 = vmatpush1.bf16.msra.mxu0 %v903
      %926 = vmatprep.subr.bf16.mxu0 0
      %927 = vmatpush1.bf16.msra.mxu0 %v902
      %928 = vmatprep.subr.bf16.mxu0 0
      %929 = vmatpush1.bf16.msra.mxu0 %v901
      %930 = vmatprep.subr.bf16.mxu0 0
      %931 = vmatpush1.bf16.msra.mxu0 %v900
      %932 = vmatprep.subr.bf16.mxu0 0
      %933 = vmatpush2.bf16.msra.mxu0 0
      %934 = vmatprep.subr.bf16.mxu0 0
      %935 = vmatpush2.bf16.msra.mxu0 0
      %936 = vmatprep.subr.bf16.mxu0 0
      %937 = vmatpush2.bf16.msra.mxu0 0
      %938 = vmatprep.subr.bf16.mxu0 0
      %939 = vmatpush2.bf16.msra.mxu0 0
      %940 = vmatprep.subr.bf16.mxu0 0
      %941 = vmatpush2.bf16.msra.mxu0 0
      %942 = vmatprep.subr.bf16.mxu0 0
      %943 = vmatpush2.bf16.msra.mxu0 0
      %944 = vmatprep.subr.bf16.mxu0 0
      %945 = vmatpush2.bf16.msra.mxu0 0
      %946 = vmatprep.subr.bf16.mxu0 0
      %947 = vmatpush2.bf16.msra.mxu0 0
      %948 = vmatprep.mubr.bf16.mxu0 0
      %949 = vmatmul.mubr.bf16.gmra.mxu0 %v860
      %v950 = vpop.f32.mrf.mxu0
      %v951 = vadd.f32 0.0, %v950
      %v952 = vpop.f32.mrf.mxu0
      %v953 = vpop.f32.mrf.mxu0
      %v954 = vadd.f32 0.0, %v953
      %v955 = vpop.f32.mrf.mxu0
      %956 = vmatprep.mubr.bf16.mxu0 0
      %957 = vmatmul.mubr.bf16.gmra.mxu0 %v861
      %v958 = vpop.f32.mrf.mxu0
      %v959 = vadd.f32 0.0, %v958
      %v960 = vpop.f32.mrf.mxu0
      %v961 = vpop.f32.mrf.mxu0
      %v962 = vadd.f32 0.0, %v961
      %v963 = vpop.f32.mrf.mxu0
      %964 = vmatprep.mubr.bf16.mxu0 0
      %965 = vmatmul.mubr.bf16.gmra.mxu0 %v862
      %v966 = vpop.f32.mrf.mxu0
      %v967 = vadd.f32 0.0, %v966
      %v968 = vpop.f32.mrf.mxu0
      %v969 = vpop.f32.mrf.mxu0
      %v970 = vadd.f32 0.0, %v969
      %v971 = vpop.f32.mrf.mxu0
      %972 = vmatprep.mubr.bf16.mxu0 0
      %973 = vmatmul.mubr.bf16.gmra.mxu0 %v863
      %v974 = vpop.f32.mrf.mxu0
      %v975 = vadd.f32 0.0, %v974
      %v976 = vpop.f32.mrf.mxu0
      %v977 = vpop.f32.mrf.mxu0
      %v978 = vadd.f32 0.0, %v977
      %v979 = vpop.f32.mrf.mxu0
      %980 = vdwg.mxu0
      %v981 = vadd.f32 %v833, %v951
      %v982 = vadd.f32 %v834, %v954
      %v983 = vadd.f32 %v835, %v959
      %v984 = vadd.f32 %v836, %v962
      %v985 = vadd.f32 %v837, %v967
      %v986 = vadd.f32 %v838, %v970
      %v987 = vadd.f32 %v839, %v975
      %v988 = vadd.f32 %v840, %v978
      %v990 = vshrl.u32 %v226, 16
      %v992 = vrot.slane %v990, 4
      %v993 = vshll.u32 %v226, 16
      %v995 = vrot.slane %v993, 5
      %v996 = vor.u32 %v992, %v995
      %v997 = vrot.slane %v996, 4
      %v999 = vshll.u32 %v227, 16
      %v1001 = vrot.slane %v999, 5
      %v1002 = vsel %vm248, %v997, %v1001
      %s1003 = scalar_lea.vmem %s1, 256
      %v1004 = vld [vmem:[%s1003] sm:$0xf]
      %v1005 = vld [vmem:[%s1003 + $0x4] sm:$0xf]
      %v1006 = vld [vmem:[%s1003 + $0x8] sm:$0xf]
      %v1007 = vld [vmem:[%s1003 + $0xc] sm:$0xf]
      %v1008 = vld [vmem:[%s1003 + $0x10] sm:$0xf]
      %v1009 = vld [vmem:[%s1003 + $0x14] sm:$0xf]
      %v1010 = vld [vmem:[%s1003 + $0x18] sm:$0xf]
      %v1011 = vld [vmem:[%s1003 + $0x1c] sm:$0xf]
      %v1012 = vld [vmem:[%s1003 + $0x20] sm:$0xf]
      %v1013 = vld [vmem:[%s1003 + $0x24] sm:$0xf]
      %v1014 = vld [vmem:[%s1003 + $0x28] sm:$0xf]
      %v1015 = vld [vmem:[%s1003 + $0x2c] sm:$0xf]
      %v1016 = vld [vmem:[%s1003 + $0x30] sm:$0xf]
      %v1017 = vld [vmem:[%s1003 + $0x34] sm:$0xf]
      %v1018 = vld [vmem:[%s1003 + $0x38] sm:$0xf]
      %v1019 = vld [vmem:[%s1003 + $0x3c] sm:$0xf]
      %v1020 = vunpack.c.l.b16 %v1002
      %v1021 = vpack.c.b16 %v380, %v379
      %v1022 = vpack.c.b16 %v382, %v381
      %v1023 = vpack.c.b16 %v384, %v383
      %v1024 = vpack.c.b16 %v1020, %v385
      %v1045 = vunpack.c.l.b16 %v1004
      %v1046 = vunpack.c.l.b16 %v1005
      %v1047 = vunpack.c.l.b16 %v1006
      %v1048 = vunpack.c.l.b16 %v1007
      %v1049 = vunpack.c.l.b16 %v1008
      %v1050 = vunpack.c.l.b16 %v1009
      %v1051 = vunpack.c.l.b16 %v1010
      %v1052 = vunpack.c.l.b16 %v1011
      %v1053 = vunpack.c.l.b16 %v1012
      %v1054 = vunpack.c.l.b16 %v1013
      %v1055 = vunpack.c.l.b16 %v1014
      %v1056 = vunpack.c.l.b16 %v1015
      %v1057 = vunpack.c.l.b16 %v1016
      %v1058 = vunpack.c.l.b16 %v1017
      %v1059 = vunpack.c.l.b16 %v1018
      %v1060 = vunpack.c.l.b16 %v1019
      %v1061 = vpack.c.b16 %v1046, %v1045
      %v1062 = vpack.c.b16 %v1048, %v1047
      %v1063 = vpack.c.b16 %v1050, %v1049
      %v1064 = vpack.c.b16 %v1052, %v1051
      %v1065 = vpack.c.b16 %v1054, %v1053
      %v1066 = vpack.c.b16 %v1056, %v1055
      %v1067 = vpack.c.b16 %v1058, %v1057
      %v1068 = vpack.c.b16 %v1060, %v1059
      %1077 = vmatprep.subr.bf16.mxu0 0
      %1078 = vmatpush1.bf16.msra.mxu0 %v1068
      %1079 = vmatprep.subr.bf16.mxu0 0
      %1080 = vmatpush1.bf16.msra.mxu0 %v1067
      %1081 = vmatprep.subr.bf16.mxu0 0
      %1082 = vmatpush1.bf16.msra.mxu0 %v1066
      %1083 = vmatprep.subr.bf16.mxu0 0
      %1084 = vmatpush1.bf16.msra.mxu0 %v1065
      %1085 = vmatprep.subr.bf16.mxu0 0
      %1086 = vmatpush1.bf16.msra.mxu0 %v1064
      %1087 = vmatprep.subr.bf16.mxu0 0
      %1088 = vmatpush1.bf16.msra.mxu0 %v1063
      %1089 = vmatprep.subr.bf16.mxu0 0
      %1090 = vmatpush1.bf16.msra.mxu0 %v1062
      %1091 = vmatprep.subr.bf16.mxu0 0
      %1092 = vmatpush1.bf16.msra.mxu0 %v1061
      %1093 = vmatprep.subr.bf16.mxu0 0
      %1094 = vmatpush2.bf16.msra.mxu0 0
      %1095 = vmatprep.subr.bf16.mxu0 0
      %1096 = vmatpush2.bf16.msra.mxu0 0
      %1097 = vmatprep.subr.bf16.mxu0 0
      %1098 = vmatpush2.bf16.msra.mxu0 0
      %1099 = vmatprep.subr.bf16.mxu0 0
      %1100 = vmatpush2.bf16.msra.mxu0 0
      %1101 = vmatprep.subr.bf16.mxu0 0
      %1102 = vmatpush2.bf16.msra.mxu0 0
      %1103 = vmatprep.subr.bf16.mxu0 0
      %1104 = vmatpush2.bf16.msra.mxu0 0
      %1105 = vmatprep.subr.bf16.mxu0 0
      %1106 = vmatpush2.bf16.msra.mxu0 0
      %1107 = vmatprep.subr.bf16.mxu0 0
      %1108 = vmatpush2.bf16.msra.mxu0 0
      %1109 = vmatprep.mubr.bf16.mxu0 0
      %1110 = vmatmul.mubr.bf16.gmra.mxu0 %v1021
      %v1111 = vpop.f32.mrf.mxu0
      %v1112 = vadd.f32 0.0, %v1111
      %v1113 = vpop.f32.mrf.mxu0
      %v1114 = vpop.f32.mrf.mxu0
      %v1115 = vadd.f32 0.0, %v1114
      %v1116 = vpop.f32.mrf.mxu0
      %1117 = vmatprep.mubr.bf16.mxu0 0
      %1118 = vmatmul.mubr.bf16.gmra.mxu0 %v1022
      %v1119 = vpop.f32.mrf.mxu0
      %v1120 = vadd.f32 0.0, %v1119
      %v1121 = vpop.f32.mrf.mxu0
      %v1122 = vpop.f32.mrf.mxu0
      %v1123 = vadd.f32 0.0, %v1122
      %v1124 = vpop.f32.mrf.mxu0
      %1125 = vmatprep.mubr.bf16.mxu0 0
      %1126 = vmatmul.mubr.bf16.gmra.mxu0 %v1023
      %v1127 = vpop.f32.mrf.mxu0
      %v1128 = vadd.f32 0.0, %v1127
      %v1129 = vpop.f32.mrf.mxu0
      %v1130 = vpop.f32.mrf.mxu0
      %v1131 = vadd.f32 0.0, %v1130
      %v1132 = vpop.f32.mrf.mxu0
      %1133 = vmatprep.mubr.bf16.mxu0 0
      %1134 = vmatmul.mubr.bf16.gmra.mxu0 %v1024
      %v1135 = vpop.f32.mrf.mxu0
      %v1136 = vadd.f32 0.0, %v1135
      %v1137 = vpop.f32.mrf.mxu0
      %v1138 = vpop.f32.mrf.mxu0
      %v1139 = vadd.f32 0.0, %v1138
      %v1140 = vpop.f32.mrf.mxu0
      %1141 = vdwg.mxu0
      %v1142 = vadd.f32 %v981, %v1112
      %v1143 = vadd.f32 %v982, %v1115
      %v1144 = vadd.f32 %v983, %v1120
      %v1145 = vadd.f32 %v984, %v1123
      %v1146 = vadd.f32 %v985, %v1128
      %v1147 = vadd.f32 %v986, %v1131
      %v1148 = vadd.f32 %v987, %v1136
      %v1149 = vadd.f32 %v988, %v1139
      %v1151 = vrot.slane %v226, 5
      %v1152 = vrot.slane %v1151, 4
      %v1153 = vrot.slane %v227, 5
      %v1154 = vsel %vm654, %v1152, %v1153
      %s1155 = scalar_lea.vmem %s1, 320
      %v1156 = vld [vmem:[%s1155] sm:$0xf]
      %v1157 = vld [vmem:[%s1155 + $0x4] sm:$0xf]
      %v1158 = vld [vmem:[%s1155 + $0x8] sm:$0xf]
      %v1159 = vld [vmem:[%s1155 + $0xc] sm:$0xf]
      %v1160 = vld [vmem:[%s1155 + $0x10] sm:$0xf]
      %v1161 = vld [vmem:[%s1155 + $0x14] sm:$0xf]
      %v1162 = vld [vmem:[%s1155 + $0x18] sm:$0xf]
      %v1163 = vld [vmem:[%s1155 + $0x1c] sm:$0xf]
      %v1164 = vld [vmem:[%s1155 + $0x20] sm:$0xf]
      %v1165 = vld [vmem:[%s1155 + $0x24] sm:$0xf]
      %v1166 = vld [vmem:[%s1155 + $0x28] sm:$0xf]
      %v1167 = vld [vmem:[%s1155 + $0x2c] sm:$0xf]
      %v1168 = vld [vmem:[%s1155 + $0x30] sm:$0xf]
      %v1169 = vld [vmem:[%s1155 + $0x34] sm:$0xf]
      %v1170 = vld [vmem:[%s1155 + $0x38] sm:$0xf]
      %v1171 = vld [vmem:[%s1155 + $0x3c] sm:$0xf]
      %v1172 = vunpack.c.l.b16 %v1154
      %v1173 = vpack.c.b16 %v706, %v705
      %v1174 = vpack.c.b16 %v708, %v707
      %v1175 = vpack.c.b16 %v710, %v709
      %v1176 = vpack.c.b16 %v1172, %v711
      %v1197 = vunpack.c.l.b16 %v1156
      %v1198 = vunpack.c.l.b16 %v1157
      %v1199 = vunpack.c.l.b16 %v1158
      %v1200 = vunpack.c.l.b16 %v1159
      %v1201 = vunpack.c.l.b16 %v1160
      %v1202 = vunpack.c.l.b16 %v1161
      %v1203 = vunpack.c.l.b16 %v1162
      %v1204 = vunpack.c.l.b16 %v1163
      %v1205 = vunpack.c.l.b16 %v1164
      %v1206 = vunpack.c.l.b16 %v1165
      %v1207 = vunpack.c.l.b16 %v1166
      %v1208 = vunpack.c.l.b16 %v1167
      %v1209 = vunpack.c.l.b16 %v1168
      %v1210 = vunpack.c.l.b16 %v1169
      %v1211 = vunpack.c.l.b16 %v1170
      %v1212 = vunpack.c.l.b16 %v1171
      %v1213 = vpack.c.b16 %v1198, %v1197
      %v1214 = vpack.c.b16 %v1200, %v1199
      %v1215 = vpack.c.b16 %v1202, %v1201
      %v1216 = vpack.c.b16 %v1204, %v1203
      %v1217 = vpack.c.b16 %v1206, %v1205
      %v1218 = vpack.c.b16 %v1208, %v1207
      %v1219 = vpack.c.b16 %v1210, %v1209
      %v1220 = vpack.c.b16 %v1212, %v1211
      %1229 = vmatprep.subr.bf16.mxu0 0
      %1230 = vmatpush1.bf16.msra.mxu0 %v1220
      %1231 = vmatprep.subr.bf16.mxu0 0
      %1232 = vmatpush1.bf16.msra.mxu0 %v1219
      %1233 = vmatprep.subr.bf16.mxu0 0
      %1234 = vmatpush1.bf16.msra.mxu0 %v1218
      %1235 = vmatprep.subr.bf16.mxu0 0
      %1236 = vmatpush1.bf16.msra.mxu0 %v1217
      %1237 = vmatprep.subr.bf16.mxu0 0
      %1238 = vmatpush1.bf16.msra.mxu0 %v1216
      %1239 = vmatprep.subr.bf16.mxu0 0
      %1240 = vmatpush1.bf16.msra.mxu0 %v1215
      %1241 = vmatprep.subr.bf16.mxu0 0
      %1242 = vmatpush1.bf16.msra.mxu0 %v1214
      %1243 = vmatprep.subr.bf16.mxu0 0
      %1244 = vmatpush1.bf16.msra.mxu0 %v1213
      %1245 = vmatprep.subr.bf16.mxu0 0
      %1246 = vmatpush2.bf16.msra.mxu0 0
      %1247 = vmatprep.subr.bf16.mxu0 0
      %1248 = vmatpush2.bf16.msra.mxu0 0
      %1249 = vmatprep.subr.bf16.mxu0 0
      %1250 = vmatpush2.bf16.msra.mxu0 0
      %1251 = vmatprep.subr.bf16.mxu0 0
      %1252 = vmatpush2.bf16.msra.mxu0 0
      %1253 = vmatprep.subr.bf16.mxu0 0
      %1254 = vmatpush2.bf16.msra.mxu0 0
      %1255 = vmatprep.subr.bf16.mxu0 0
      %1256 = vmatpush2.bf16.msra.mxu0 0
      %1257 = vmatprep.subr.bf16.mxu0 0
      %1258 = vmatpush2.bf16.msra.mxu0 0
      %1259 = vmatprep.subr.bf16.mxu0 0
      %1260 = vmatpush2.bf16.msra.mxu0 0
      %1261 = vmatprep.mubr.bf16.mxu0 0
      %1262 = vmatmul.mubr.bf16.gmra.mxu0 %v1173
      %v1263 = vpop.f32.mrf.mxu0
      %v1264 = vadd.f32 0.0, %v1263
      %v1265 = vpop.f32.mrf.mxu0
      %v1266 = vpop.f32.mrf.mxu0
      %v1267 = vadd.f32 0.0, %v1266
      %v1268 = vpop.f32.mrf.mxu0
      %1269 = vmatprep.mubr.bf16.mxu0 0
      %1270 = vmatmul.mubr.bf16.gmra.mxu0 %v1174
      %v1271 = vpop.f32.mrf.mxu0
      %v1272 = vadd.f32 0.0, %v1271
      %v1273 = vpop.f32.mrf.mxu0
      %v1274 = vpop.f32.mrf.mxu0
      %v1275 = vadd.f32 0.0, %v1274
      %v1276 = vpop.f32.mrf.mxu0
      %1277 = vmatprep.mubr.bf16.mxu0 0
      %1278 = vmatmul.mubr.bf16.gmra.mxu0 %v1175
      %v1279 = vpop.f32.mrf.mxu0
      %v1280 = vadd.f32 0.0, %v1279
      %v1281 = vpop.f32.mrf.mxu0
      %v1282 = vpop.f32.mrf.mxu0
      %v1283 = vadd.f32 0.0, %v1282
      %v1284 = vpop.f32.mrf.mxu0
      %1285 = vmatprep.mubr.bf16.mxu0 0
      %1286 = vmatmul.mubr.bf16.gmra.mxu0 %v1176
      %v1287 = vpop.f32.mrf.mxu0
      %v1288 = vadd.f32 0.0, %v1287
      %v1289 = vpop.f32.mrf.mxu0
      %v1290 = vpop.f32.mrf.mxu0
      %v1291 = vadd.f32 0.0, %v1290
      %v1292 = vpop.f32.mrf.mxu0
      %1293 = vdwg.mxu0
      %v1294 = vadd.f32 %v1142, %v1264
      %v1295 = vadd.f32 %v1143, %v1267
      %v1296 = vadd.f32 %v1144, %v1272
      %v1297 = vadd.f32 %v1145, %v1275
      %v1298 = vadd.f32 %v1146, %v1280
      %v1299 = vadd.f32 %v1147, %v1283
      %v1300 = vadd.f32 %v1148, %v1288
      %v1301 = vadd.f32 %v1149, %v1291
      %s1302 = scalar_lea.vmem %s1, 384
      %v1303 = vld [vmem:[%s1302] sm:$0xf]
      %v1304 = vld [vmem:[%s1302 + $0x4] sm:$0xf]
      %v1305 = vld [vmem:[%s1302 + $0x8] sm:$0xf]
      %v1306 = vld [vmem:[%s1302 + $0xc] sm:$0xf]
      %v1307 = vld [vmem:[%s1302 + $0x10] sm:$0xf]
      %v1308 = vld [vmem:[%s1302 + $0x14] sm:$0xf]
      %v1309 = vld [vmem:[%s1302 + $0x18] sm:$0xf]
      %v1310 = vld [vmem:[%s1302 + $0x1c] sm:$0xf]
      %v1311 = vld [vmem:[%s1302 + $0x20] sm:$0xf]
      %v1312 = vld [vmem:[%s1302 + $0x24] sm:$0xf]
      %v1313 = vld [vmem:[%s1302 + $0x28] sm:$0xf]
      %v1314 = vld [vmem:[%s1302 + $0x2c] sm:$0xf]
      %v1315 = vld [vmem:[%s1302 + $0x30] sm:$0xf]
      %v1316 = vld [vmem:[%s1302 + $0x34] sm:$0xf]
      %v1317 = vld [vmem:[%s1302 + $0x38] sm:$0xf]
      %v1318 = vld [vmem:[%s1302 + $0x3c] sm:$0xf]
      %v1320 = vunpack.c.l.b16 %v228
      %v1321 = vpack.c.b16 %v1320, %v859
      %v1339 = vunpack.c.l.b16 %v1303
      %v1340 = vunpack.c.l.b16 %v1304
      %v1341 = vunpack.c.l.b16 %v1305
      %v1342 = vunpack.c.l.b16 %v1306
      %v1343 = vunpack.c.l.b16 %v1307
      %v1344 = vunpack.c.l.b16 %v1308
      %v1345 = vunpack.c.l.b16 %v1309
      %v1346 = vunpack.c.l.b16 %v1310
      %v1347 = vunpack.c.l.b16 %v1311
      %v1348 = vunpack.c.l.b16 %v1312
      %v1349 = vunpack.c.l.b16 %v1313
      %v1350 = vunpack.c.l.b16 %v1314
      %v1351 = vunpack.c.l.b16 %v1315
      %v1352 = vunpack.c.l.b16 %v1316
      %v1353 = vunpack.c.l.b16 %v1317
      %v1354 = vunpack.c.l.b16 %v1318
      %v1355 = vpack.c.b16 %v1340, %v1339
      %v1356 = vpack.c.b16 %v1342, %v1341
      %v1357 = vpack.c.b16 %v1344, %v1343
      %v1358 = vpack.c.b16 %v1346, %v1345
      %v1359 = vpack.c.b16 %v1348, %v1347
      %v1360 = vpack.c.b16 %v1350, %v1349
      %v1361 = vpack.c.b16 %v1352, %v1351
      %v1362 = vpack.c.b16 %v1354, %v1353
      %1371 = vmatprep.subr.bf16.mxu0 0
      %1372 = vmatpush1.bf16.msra.mxu0 %v1362
      %1373 = vmatprep.subr.bf16.mxu0 0
      %1374 = vmatpush1.bf16.msra.mxu0 %v1361
      %1375 = vmatprep.subr.bf16.mxu0 0
      %1376 = vmatpush1.bf16.msra.mxu0 %v1360
      %1377 = vmatprep.subr.bf16.mxu0 0
      %1378 = vmatpush1.bf16.msra.mxu0 %v1359
      %1379 = vmatprep.subr.bf16.mxu0 0
      %1380 = vmatpush1.bf16.msra.mxu0 %v1358
      %1381 = vmatprep.subr.bf16.mxu0 0
      %1382 = vmatpush1.bf16.msra.mxu0 %v1357
      %1383 = vmatprep.subr.bf16.mxu0 0
      %1384 = vmatpush1.bf16.msra.mxu0 %v1356
      %1385 = vmatprep.subr.bf16.mxu0 0
      %1386 = vmatpush1.bf16.msra.mxu0 %v1355
      %1387 = vmatprep.subr.bf16.mxu0 0
      %1388 = vmatpush2.bf16.msra.mxu0 0
      %1389 = vmatprep.subr.bf16.mxu0 0
      %1390 = vmatpush2.bf16.msra.mxu0 0
      %1391 = vmatprep.subr.bf16.mxu0 0
      %1392 = vmatpush2.bf16.msra.mxu0 0
      %1393 = vmatprep.subr.bf16.mxu0 0
      %1394 = vmatpush2.bf16.msra.mxu0 0
      %1395 = vmatprep.subr.bf16.mxu0 0
      %1396 = vmatpush2.bf16.msra.mxu0 0
      %1397 = vmatprep.subr.bf16.mxu0 0
      %1398 = vmatpush2.bf16.msra.mxu0 0
      %1399 = vmatprep.subr.bf16.mxu0 0
      %1400 = vmatpush2.bf16.msra.mxu0 0
      %1401 = vmatprep.subr.bf16.mxu0 0
      %1402 = vmatpush2.bf16.msra.mxu0 0
      %1403 = vmatprep.mubr.bf16.mxu0 0
      %1404 = vmatmul.mubr.bf16.gmra.mxu0 %v524
      %v1405 = vpop.f32.mrf.mxu0
      %v1406 = vadd.f32 0.0, %v1405
      %v1407 = vpop.f32.mrf.mxu0
      %v1408 = vpop.f32.mrf.mxu0
      %v1409 = vadd.f32 0.0, %v1408
      %v1410 = vpop.f32.mrf.mxu0
      %1411 = vmatprep.mubr.bf16.mxu0 0
      %1412 = vmatmul.mubr.bf16.gmra.mxu0 %v525
      %v1413 = vpop.f32.mrf.mxu0
      %v1414 = vadd.f32 0.0, %v1413
      %v1415 = vpop.f32.mrf.mxu0
      %v1416 = vpop.f32.mrf.mxu0
      %v1417 = vadd.f32 0.0, %v1416
      %v1418 = vpop.f32.mrf.mxu0
      %1419 = vmatprep.mubr.bf16.mxu0 0
      %1420 = vmatmul.mubr.bf16.gmra.mxu0 %v526
      %v1421 = vpop.f32.mrf.mxu0
      %v1422 = vadd.f32 0.0, %v1421
      %v1423 = vpop.f32.mrf.mxu0
      %v1424 = vpop.f32.mrf.mxu0
      %v1425 = vadd.f32 0.0, %v1424
      %v1426 = vpop.f32.mrf.mxu0
      %1427 = vmatprep.mubr.bf16.mxu0 0
      %1428 = vmatmul.mubr.bf16.gmra.mxu0 %v1321
      %v1429 = vpop.f32.mrf.mxu0
      %v1430 = vadd.f32 0.0, %v1429
      %v1431 = vpop.f32.mrf.mxu0
      %v1432 = vpop.f32.mrf.mxu0
      %v1433 = vadd.f32 0.0, %v1432
      %v1434 = vpop.f32.mrf.mxu0
      %1435 = vdwg.mxu0
      %v1436 = vadd.f32 %v1294, %v1406
      %v1437 = vadd.f32 %v1295, %v1409
      %v1438 = vadd.f32 %v1296, %v1414
      %v1439 = vadd.f32 %v1297, %v1417
      %v1440 = vadd.f32 %v1298, %v1422
      %v1441 = vadd.f32 %v1299, %v1425
      %v1442 = vadd.f32 %v1300, %v1430
      %v1443 = vadd.f32 %v1301, %v1433
      %v1445 = vshrl.u32 %v228, 16
      %v1447 = vrot.slane %v1445, 4
      %v1448 = vshll.u32 %v228, 16
      %v1450 = vrot.slane %v1448, 5
      %v1451 = vor.u32 %v1447, %v1450
      %v1452 = vrot.slane %v1451, 4
      %v1454 = vshll.u32 %v229, 16
      %v1456 = vrot.slane %v1454, 5
      %v1457 = vsel %vm248, %v1452, %v1456
      %s1458 = scalar_lea.vmem %s1, 448
      %v1459 = vld [vmem:[%s1458] sm:$0xf]
      %v1460 = vld [vmem:[%s1458 + $0x4] sm:$0xf]
      %v1461 = vld [vmem:[%s1458 + $0x8] sm:$0xf]
      %v1462 = vld [vmem:[%s1458 + $0xc] sm:$0xf]
      %v1463 = vld [vmem:[%s1458 + $0x10] sm:$0xf]
      %v1464 = vld [vmem:[%s1458 + $0x14] sm:$0xf]
      %v1465 = vld [vmem:[%s1458 + $0x18] sm:$0xf]
      %v1466 = vld [vmem:[%s1458 + $0x1c] sm:$0xf]
      %v1467 = vld [vmem:[%s1458 + $0x20] sm:$0xf]
      %v1468 = vld [vmem:[%s1458 + $0x24] sm:$0xf]
      %v1469 = vld [vmem:[%s1458 + $0x28] sm:$0xf]
      %v1470 = vld [vmem:[%s1458 + $0x2c] sm:$0xf]
      %v1471 = vld [vmem:[%s1458 + $0x30] sm:$0xf]
      %v1472 = vld [vmem:[%s1458 + $0x34] sm:$0xf]
      %v1473 = vld [vmem:[%s1458 + $0x38] sm:$0xf]
      %v1474 = vld [vmem:[%s1458 + $0x3c] sm:$0xf]
      %v1475 = vunpack.c.l.b16 %v1457
      %v1476 = vpack.c.b16 %v1475, %v1020
      %v1494 = vunpack.c.l.b16 %v1459
      %v1495 = vunpack.c.l.b16 %v1460
      %v1496 = vunpack.c.l.b16 %v1461
      %v1497 = vunpack.c.l.b16 %v1462
      %v1498 = vunpack.c.l.b16 %v1463
      %v1499 = vunpack.c.l.b16 %v1464
      %v1500 = vunpack.c.l.b16 %v1465
      %v1501 = vunpack.c.l.b16 %v1466
      %v1502 = vunpack.c.l.b16 %v1467
      %v1503 = vunpack.c.l.b16 %v1468
      %v1504 = vunpack.c.l.b16 %v1469
      %v1505 = vunpack.c.l.b16 %v1470
      %v1506 = vunpack.c.l.b16 %v1471
      %v1507 = vunpack.c.l.b16 %v1472
      %v1508 = vunpack.c.l.b16 %v1473
      %v1509 = vunpack.c.l.b16 %v1474
      %v1510 = vpack.c.b16 %v1495, %v1494
      %v1511 = vpack.c.b16 %v1497, %v1496
      %v1512 = vpack.c.b16 %v1499, %v1498
      %v1513 = vpack.c.b16 %v1501, %v1500
      %v1514 = vpack.c.b16 %v1503, %v1502
      %v1515 = vpack.c.b16 %v1505, %v1504
      %v1516 = vpack.c.b16 %v1507, %v1506
      %v1517 = vpack.c.b16 %v1509, %v1508
      %1526 = vmatprep.subr.bf16.mxu0 0
      %1527 = vmatpush1.bf16.msra.mxu0 %v1517
      %1528 = vmatprep.subr.bf16.mxu0 0
      %1529 = vmatpush1.bf16.msra.mxu0 %v1516
      %1530 = vmatprep.subr.bf16.mxu0 0
      %1531 = vmatpush1.bf16.msra.mxu0 %v1515
      %1532 = vmatprep.subr.bf16.mxu0 0
      %1533 = vmatpush1.bf16.msra.mxu0 %v1514
      %1534 = vmatprep.subr.bf16.mxu0 0
      %1535 = vmatpush1.bf16.msra.mxu0 %v1513
      %1536 = vmatprep.subr.bf16.mxu0 0
      %1537 = vmatpush1.bf16.msra.mxu0 %v1512
      %1538 = vmatprep.subr.bf16.mxu0 0
      %1539 = vmatpush1.bf16.msra.mxu0 %v1511
      %1540 = vmatprep.subr.bf16.mxu0 0
      %1541 = vmatpush1.bf16.msra.mxu0 %v1510
      %1542 = vmatprep.subr.bf16.mxu0 0
      %1543 = vmatpush2.bf16.msra.mxu0 0
      %1544 = vmatprep.subr.bf16.mxu0 0
      %1545 = vmatpush2.bf16.msra.mxu0 0
      %1546 = vmatprep.subr.bf16.mxu0 0
      %1547 = vmatpush2.bf16.msra.mxu0 0
      %1548 = vmatprep.subr.bf16.mxu0 0
      %1549 = vmatpush2.bf16.msra.mxu0 0
      %1550 = vmatprep.subr.bf16.mxu0 0
      %1551 = vmatpush2.bf16.msra.mxu0 0
      %1552 = vmatprep.subr.bf16.mxu0 0
      %1553 = vmatpush2.bf16.msra.mxu0 0
      %1554 = vmatprep.subr.bf16.mxu0 0
      %1555 = vmatpush2.bf16.msra.mxu0 0
      %1556 = vmatprep.subr.bf16.mxu0 0
      %1557 = vmatpush2.bf16.msra.mxu0 0
      %1558 = vmatprep.mubr.bf16.mxu0 0
      %1559 = vmatmul.mubr.bf16.gmra.mxu0 %v387
      %v1560 = vpop.f32.mrf.mxu0
      %v1561 = vadd.f32 0.0, %v1560
      %v1562 = vpop.f32.mrf.mxu0
      %v1563 = vpop.f32.mrf.mxu0
      %v1564 = vadd.f32 0.0, %v1563
      %v1565 = vpop.f32.mrf.mxu0
      %1566 = vmatprep.mubr.bf16.mxu0 0
      %1567 = vmatmul.mubr.bf16.gmra.mxu0 %v388
      %v1568 = vpop.f32.mrf.mxu0
      %v1569 = vadd.f32 0.0, %v1568
      %v1570 = vpop.f32.mrf.mxu0
      %v1571 = vpop.f32.mrf.mxu0
      %v1572 = vadd.f32 0.0, %v1571
      %v1573 = vpop.f32.mrf.mxu0
      %1574 = vmatprep.mubr.bf16.mxu0 0
      %1575 = vmatmul.mubr.bf16.gmra.mxu0 %v389
      %v1576 = vpop.f32.mrf.mxu0
      %v1577 = vadd.f32 0.0, %v1576
      %v1578 = vpop.f32.mrf.mxu0
      %v1579 = vpop.f32.mrf.mxu0
      %v1580 = vadd.f32 0.0, %v1579
      %v1581 = vpop.f32.mrf.mxu0
      %1582 = vmatprep.mubr.bf16.mxu0 0
      %1583 = vmatmul.mubr.bf16.gmra.mxu0 %v1476
      %v1584 = vpop.f32.mrf.mxu0
      %v1585 = vadd.f32 0.0, %v1584
      %v1586 = vpop.f32.mrf.mxu0
      %v1587 = vpop.f32.mrf.mxu0
      %v1588 = vadd.f32 0.0, %v1587
      %v1589 = vpop.f32.mrf.mxu0
      %1590 = vdwg.mxu0
      %v1591 = vadd.f32 %v1436, %v1561
      %v1592 = vadd.f32 %v1437, %v1564
      %v1593 = vadd.f32 %v1438, %v1569
      %v1594 = vadd.f32 %v1439, %v1572
      %v1595 = vadd.f32 %v1440, %v1577
      %v1596 = vadd.f32 %v1441, %v1580
      %v1597 = vadd.f32 %v1442, %v1585
      %v1598 = vadd.f32 %v1443, %v1588
      %v1600 = vrot.slane %v228, 5
      %v1601 = vrot.slane %v1600, 4
      %v1602 = vrot.slane %v229, 5
      %v1603 = vsel %vm654, %v1601, %v1602
      %s1604 = scalar_lea.vmem %s1, 512
      %v1605 = vld [vmem:[%s1604] sm:$0xf]
      %v1606 = vld [vmem:[%s1604 + $0x4] sm:$0xf]
      %v1607 = vld [vmem:[%s1604 + $0x8] sm:$0xf]
      %v1608 = vld [vmem:[%s1604 + $0xc] sm:$0xf]
      %v1609 = vld [vmem:[%s1604 + $0x10] sm:$0xf]
      %v1610 = vld [vmem:[%s1604 + $0x14] sm:$0xf]
      %v1611 = vld [vmem:[%s1604 + $0x18] sm:$0xf]
      %v1612 = vld [vmem:[%s1604 + $0x1c] sm:$0xf]
      %v1613 = vld [vmem:[%s1604 + $0x20] sm:$0xf]
      %v1614 = vld [vmem:[%s1604 + $0x24] sm:$0xf]
      %v1615 = vld [vmem:[%s1604 + $0x28] sm:$0xf]
      %v1616 = vld [vmem:[%s1604 + $0x2c] sm:$0xf]
      %v1617 = vld [vmem:[%s1604 + $0x30] sm:$0xf]
      %v1618 = vld [vmem:[%s1604 + $0x34] sm:$0xf]
      %v1619 = vld [vmem:[%s1604 + $0x38] sm:$0xf]
      %v1620 = vld [vmem:[%s1604 + $0x3c] sm:$0xf]
      %v1621 = vunpack.c.l.b16 %v1603
      %v1622 = vpack.c.b16 %v1621, %v1172
      %v1640 = vunpack.c.l.b16 %v1605
      %v1641 = vunpack.c.l.b16 %v1606
      %v1642 = vunpack.c.l.b16 %v1607
      %v1643 = vunpack.c.l.b16 %v1608
      %v1644 = vunpack.c.l.b16 %v1609
      %v1645 = vunpack.c.l.b16 %v1610
      %v1646 = vunpack.c.l.b16 %v1611
      %v1647 = vunpack.c.l.b16 %v1612
      %v1648 = vunpack.c.l.b16 %v1613
      %v1649 = vunpack.c.l.b16 %v1614
      %v1650 = vunpack.c.l.b16 %v1615
      %v1651 = vunpack.c.l.b16 %v1616
      %v1652 = vunpack.c.l.b16 %v1617
      %v1653 = vunpack.c.l.b16 %v1618
      %v1654 = vunpack.c.l.b16 %v1619
      %v1655 = vunpack.c.l.b16 %v1620
      %v1656 = vpack.c.b16 %v1641, %v1640
      %v1657 = vpack.c.b16 %v1643, %v1642
      %v1658 = vpack.c.b16 %v1645, %v1644
      %v1659 = vpack.c.b16 %v1647, %v1646
      %v1660 = vpack.c.b16 %v1649, %v1648
      %v1661 = vpack.c.b16 %v1651, %v1650
      %v1662 = vpack.c.b16 %v1653, %v1652
      %v1663 = vpack.c.b16 %v1655, %v1654
      %1672 = vmatprep.subr.bf16.mxu0 0
      %1673 = vmatpush1.bf16.msra.mxu0 %v1663
      %1674 = vmatprep.subr.bf16.mxu0 0
      %1675 = vmatpush1.bf16.msra.mxu0 %v1662
      %1676 = vmatprep.subr.bf16.mxu0 0
      %1677 = vmatpush1.bf16.msra.mxu0 %v1661
      %1678 = vmatprep.subr.bf16.mxu0 0
      %1679 = vmatpush1.bf16.msra.mxu0 %v1660
      %1680 = vmatprep.subr.bf16.mxu0 0
      %1681 = vmatpush1.bf16.msra.mxu0 %v1659
      %1682 = vmatprep.subr.bf16.mxu0 0
      %1683 = vmatpush1.bf16.msra.mxu0 %v1658
      %1684 = vmatprep.subr.bf16.mxu0 0
      %1685 = vmatpush1.bf16.msra.mxu0 %v1657
      %1686 = vmatprep.subr.bf16.mxu0 0
      %1687 = vmatpush1.bf16.msra.mxu0 %v1656
      %1688 = vmatprep.subr.bf16.mxu0 0
      %1689 = vmatpush2.bf16.msra.mxu0 0
      %1690 = vmatprep.subr.bf16.mxu0 0
      %1691 = vmatpush2.bf16.msra.mxu0 0
      %1692 = vmatprep.subr.bf16.mxu0 0
      %1693 = vmatpush2.bf16.msra.mxu0 0
      %1694 = vmatprep.subr.bf16.mxu0 0
      %1695 = vmatpush2.bf16.msra.mxu0 0
      %1696 = vmatprep.subr.bf16.mxu0 0
      %1697 = vmatpush2.bf16.msra.mxu0 0
      %1698 = vmatprep.subr.bf16.mxu0 0
      %1699 = vmatpush2.bf16.msra.mxu0 0
      %1700 = vmatprep.subr.bf16.mxu0 0
      %1701 = vmatpush2.bf16.msra.mxu0 0
      %1702 = vmatprep.subr.bf16.mxu0 0
      %1703 = vmatpush2.bf16.msra.mxu0 0
      %1704 = vmatprep.mubr.bf16.mxu0 0
      %1705 = vmatmul.mubr.bf16.gmra.mxu0 %v713
      %v1706 = vpop.f32.mrf.mxu0
      %v1707 = vadd.f32 0.0, %v1706
      %v1708 = vpop.f32.mrf.mxu0
      %v1709 = vpop.f32.mrf.mxu0
      %v1710 = vadd.f32 0.0, %v1709
      %v1711 = vpop.f32.mrf.mxu0
      %1712 = vmatprep.mubr.bf16.mxu0 0
      %1713 = vmatmul.mubr.bf16.gmra.mxu0 %v714
      %v1714 = vpop.f32.mrf.mxu0
      %v1715 = vadd.f32 0.0, %v1714
      %v1716 = vpop.f32.mrf.mxu0
      %v1717 = vpop.f32.mrf.mxu0
      %v1718 = vadd.f32 0.0, %v1717
      %v1719 = vpop.f32.mrf.mxu0
      %1720 = vmatprep.mubr.bf16.mxu0 0
      %1721 = vmatmul.mubr.bf16.gmra.mxu0 %v715
      %v1722 = vpop.f32.mrf.mxu0
      %v1723 = vadd.f32 0.0, %v1722
      %v1724 = vpop.f32.mrf.mxu0
      %v1725 = vpop.f32.mrf.mxu0
      %v1726 = vadd.f32 0.0, %v1725
      %v1727 = vpop.f32.mrf.mxu0
      %1728 = vmatprep.mubr.bf16.mxu0 0
      %1729 = vmatmul.mubr.bf16.gmra.mxu0 %v1622
      %v1730 = vpop.f32.mrf.mxu0
      %v1731 = vadd.f32 0.0, %v1730
      %v1732 = vpop.f32.mrf.mxu0
      %v1733 = vpop.f32.mrf.mxu0
      %v1734 = vadd.f32 0.0, %v1733
      %v1735 = vpop.f32.mrf.mxu0
      %1736 = vdwg.mxu0
      %v1737 = vadd.f32 %v1591, %v1707
      %v1738 = vadd.f32 %v1592, %v1710
      %v1739 = vadd.f32 %v1593, %v1715
      %v1740 = vadd.f32 %v1594, %v1718
      %v1741 = vadd.f32 %v1595, %v1723
      %v1742 = vadd.f32 %v1596, %v1726
      %v1743 = vadd.f32 %v1597, %v1731
      %v1744 = vadd.f32 %v1598, %v1734
      %v1745 = vld [vmem:[%s2] sm:$0x1]
      %v1747 = vlaneseq
      %v1748 = vshrl.u32 %v1747, 7
      %v1749 = vsub.s32 0, %v1748
      %v1750 = vrot.slane %v1745, %v1749
      %v1752 = vadd.f32 %v1737, %v1750
      %v1753 = vadd.f32 %v1738, %v1750
      %v1754 = vadd.f32 %v1739, %v1750
      %v1755 = vadd.f32 %v1740, %v1750
      %v1756 = vadd.f32 %v1741, %v1750
      %v1757 = vadd.f32 %v1742, %v1750
      %v1758 = vadd.f32 %v1743, %v1750
      %v1759 = vadd.f32 %v1744, %v1750
      %v1760 = vpack.c.bf16 %v1753, %v1752
      %v1761 = vpack.c.bf16 %v1755, %v1754
      %v1762 = vpack.c.bf16 %v1757, %v1756
      %v1763 = vpack.c.bf16 %v1759, %v1758
      %v1764 = vunpack.c.l.bf16 %v1760
      %v1765 = vunpack.c.h.bf16 %v1760
      %v1766 = vunpack.c.l.bf16 %v1761
      %v1767 = vunpack.c.h.bf16 %v1761
      %v1768 = vunpack.c.l.bf16 %v1762
      %v1769 = vunpack.c.h.bf16 %v1762
      %v1770 = vunpack.c.l.bf16 %v1763
      %v1771 = vunpack.c.h.bf16 %v1763
      %v1776 = vunpack.c.l.b16 %v1760
      %v1777 = vunpack.c.h.b16 %v1760
      %v1778 = vunpack.c.l.b16 %v1761
      %v1779 = vunpack.c.h.b16 %v1761
      %v1780 = vunpack.c.l.b16 %v1762
      %v1781 = vunpack.c.h.b16 %v1762
      %v1782 = vunpack.c.l.b16 %v1763
      %v1783 = vunpack.c.h.b16 %v1763
      %v1784 = vpack.c.b16 %v1776, %v1776
      %v1785 = vpack.c.b16 %v1777, %v1777
      %v1786 = vpack.c.b16 %v1778, %v1778
      %v1787 = vpack.c.b16 %v1779, %v1779
      %v1788 = vpack.c.b16 %v1780, %v1780
      %v1789 = vpack.c.b16 %v1781, %v1781
      %v1790 = vpack.c.b16 %v1782, %v1782
      %v1791 = vpack.c.b16 %v1783, %v1783
      %1800 = vst [vmem:[%s204] sm:$0xf] %v1784
      %1801 = vst [vmem:[%s204 + $0x4] sm:$0xf] %v1785
      %1802 = vst [vmem:[%s204 + $0x8] sm:$0xf] %v1786
      %1803 = vst [vmem:[%s204 + $0xc] sm:$0xf] %v1787
      %1804 = vst [vmem:[%s204 + $0x10] sm:$0xf] %v1788
      %1805 = vst [vmem:[%s204 + $0x14] sm:$0xf] %v1789
      %1806 = vst [vmem:[%s204 + $0x18] sm:$0xf] %v1790
      %1807 = vst [vmem:[%s204 + $0x1c] sm:$0xf] %v1791
      %v1808 = vadd.f32 %v1764, %v1765
      %v1809 = vadd.f32 %v1808, %v1766
      %v1810 = vadd.f32 %v1809, %v1767
      %v1811 = vadd.f32 %v1810, %v1768
      %v1812 = vadd.f32 %v1811, %v1769
      %v1813 = vadd.f32 %v1812, %v1770
      %v1814 = vadd.f32 %v1813, %v1771
      %v1815 = vrot.slane %v1814, 4
      %v1816 = vadd.f32 %v1814, %v1815
      %v1817 = vrot.slane %v1816, 2
      %v1818 = vadd.f32 %v1816, %v1817
      %v1819 = vrot.slane %v1818, 1
      %v1820 = vadd.f32 %v1818, %v1819
      %1821 = vst [vmem:[%s208] sm:$0x1] %v1820
      %v1822 = vmul.f32 %v1764, %v1764
      %v1823 = vmul.f32 %v1765, %v1765
      %v1824 = vmul.f32 %v1766, %v1766
      %v1825 = vmul.f32 %v1767, %v1767
      %v1826 = vmul.f32 %v1768, %v1768
      %v1827 = vmul.f32 %v1769, %v1769
      %v1828 = vmul.f32 %v1770, %v1770
      %v1829 = vmul.f32 %v1771, %v1771
      %v1830 = vadd.f32 %v1822, %v1823
      %v1831 = vadd.f32 %v1830, %v1824
      %v1832 = vadd.f32 %v1831, %v1825
      %v1833 = vadd.f32 %v1832, %v1826
      %v1834 = vadd.f32 %v1833, %v1827
      %v1835 = vadd.f32 %v1834, %v1828
      %v1836 = vadd.f32 %v1835, %v1829
      %v1837 = vrot.slane %v1836, 4
      %v1838 = vadd.f32 %v1836, %v1837
      %v1839 = vrot.slane %v1838, 2
      %v1840 = vadd.f32 %v1838, %v1839
      %v1841 = vrot.slane %v1840, 1
      %v1842 = vadd.f32 %v1840, %v1841
      %1843 = vst [vmem:[%s208 + $0x1] sm:$0x1] %v1842
      %p1844 = scmp.lt.s32.totalorder %s16, 1
      %s1845 = scalar_select %p1844, %s16, 1
      %s1846 = smul.addr %s1845, 8
      %s1847 = smul.addr %s1846, 4
      %s1848 = scalar_lea.vmem %s3, %s1847
      %p1849 = scmp.lt.s32.totalorder %s16, 1
      %s1850 = scalar_select %p1849, %s16, 1
      %s1851 = smul.addr %s1850, 2
      %s1852 = scalar_lea.vmem %s4, %s1851
      // Predicated region
      $region33: #{resblk_forward.6} parent=31 // pred_check
        %p1853 = pneg %p102
      $region34: #{resblk_forward.6} parent=31 // pred_check_branch
        %1855 = sbr.rel (%p1853) target = $region36
      $region35: #{resblk_forward.6} parent=31 // pred_region
        _
      $region36: #{resblk_forward.6} parent=31 // pred_fallthru
        _
      // Predicated region
      $region37: #{resblk_forward.6} parent=31 // pred_check
        %p1856 = pneg %p128
      $region38: #{resblk_forward.6} parent=31 // pred_check_branch
        %1858 = sbr.rel (%p1856) target = $region40
      $region39: #{resblk_forward.6} parent=31 // pred_region
        _
      $region40: #{resblk_forward.6} parent=31 // pred_fallthru
        _
    $region32: #{resblk_forward.6} parent=5 // pred_fallthru
      _
    %p1859 = scmp.le.s32.totalorder 2, %s11
    // Predicated region
    $region41: #{resblk_forward.6} parent=5 // pred_check
      %p1860 = pneg %p1859
    $region42: #{resblk_forward.6} parent=5 // pred_check_branch
      %1862 = sbr.rel (%p1860) target = $region44
    $region43: #{resblk_forward.6} parent=5 // pred_region
      %s1863 = ssub.s32 %s11, 2
      // Predicated region
      $region45: #{resblk_forward.6} parent=43 // pred_check
        %p1864 = pneg %p108
      $region46: #{resblk_forward.6} parent=43 // pred_check_branch
        %1866 = sbr.rel (%p1864) target = $region48
      $region47: #{resblk_forward.6} parent=43 // pred_region
        %p1867 = scmp.lt.s32.totalorder %s17, 1
        %s1868 = scalar_select %p1867, %s17, 1
        %s1869 = smul.addr %s1868, 8
        %s1870 = smul.addr %s1869, 4
        %s1871 = scalar_lea.vmem %s3, %s1870
      $region48: #{resblk_forward.6} parent=43 // pred_fallthru
        _
      // Predicated region
      $region49: #{resblk_forward.6} parent=43 // pred_check
        %p1872 = pneg %p134
      $region50: #{resblk_forward.6} parent=43 // pred_check_branch
        %1874 = sbr.rel (%p1872) target = $region52
      $region51: #{resblk_forward.6} parent=43 // pred_region
        %p1875 = scmp.lt.s32.totalorder %s17, 1
        %s1876 = scalar_select %p1875, %s17, 1
        %s1877 = smul.addr %s1876, 2
        %s1878 = scalar_lea.vmem %s4, %s1877
      $region52: #{resblk_forward.6} parent=43 // pred_fallthru
        _
    $region44: #{resblk_forward.6} parent=5 // pred_fallthru
      _
  $region6: #{resblk_forward.6} parent=0 // loop_footer
    %s15 = sadd.s32 1, %s11
  $region7: #{resblk_forward.6} parent=0 // loop_footer_branch
    %10 = sbr.rel target = $region3
  $region8: #{resblk_forward.6} parent=0 // loop_exit
    _

</llo_original>
